<compile_context>
chip_gen: v7x
topology: tpu7x:2x2x1
jax: 0.10.0
libtpu: 0.0.40
codegen_flags: <defaults>
</compile_context>

<pallas_src>
import functools

import jax
import jax.numpy as jnp
from jax import lax
from jax.experimental import pallas as pl
from jax.experimental.pallas import tpu as pltpu


def _round_up(x, m):
    return (x + m - 1) // m * m


@functools.lru_cache(maxsize=None)
def _vmem_limit():
    """Per-generation scoped-VMEM limit: half the chip's VMEM capacity, capped at
    100 MiB (v5e/v6e -> 64 MiB, v7x -> 32 MiB).  Safe 32 MiB fallback."""
    try:
        cap = int(pltpu.get_tpu_info().vmem_capacity_bytes)
        return int(min(cap // 2, 100 * 1024 * 1024))
    except Exception:
        return 32 * 1024 * 1024


def _choose_row_tile(m, tm_max=2048):
    """Row tile: multiple of 16 (bf16 sublane packing), <= tm_max, and >= 2 tiles
    whenever possible so the single 'parallel' axis can shard over v7x's 2 TCs."""
    tm = _round_up(m, 16)
    if m >= 32:
        tm = min(tm, _round_up(-(-m // 2), 16))
    return min(tm, tm_max)


# ---------------------------------------------------------------------------
# Kernels
# ---------------------------------------------------------------------------
def _matmul_stats_kernel(p_ref, w_ref, mask_ref, conv_ref, sum_ref, sq_ref):
    """im2col GEMM (block 1 only, tiny K) + per-tile BN partial sums from the f32 acc."""
    acc = jnp.dot(p_ref[...], w_ref[...], preferred_element_type=jnp.float32)
    conv_ref[...] = acc.astype(conv_ref.dtype)            # bf16, real channels only
    am = acc * mask_ref[...]                               # mask = 1 for real rows
    sum_ref[...] = jnp.sum(am, axis=0, keepdims=True)[None]
    sq_ref[...] = jnp.sum(acc * am, axis=0, keepdims=True)[None]


def _shift_conv_stats_kernel(x_ref, xh_ref, w_ref, mask_ref,
                             conv_ref, sum_ref, sq_ref, buf_ref, *, shifts, tm):
    """Stride-1 conv without an HBM im2col: stage tile + halo rows of the flattened,
    zero-padded activation in a VMEM scratch, then accumulate one small MXU matmul per
    kernel tap from a shifted VMEM slice.  Emits masked per-tile BN partials."""
    buf_ref[pl.ds(0, tm), :] = x_ref[...].astype(jnp.float32)
    buf_ref[pl.ds(tm, tm), :] = xh_ref[...].astype(jnp.float32)
    acc = jnp.zeros(conv_ref.shape, jnp.float32)
    for t, sh in enumerate(shifts):                        # static unroll over kh*kw taps
        xt = buf_ref[pl.ds(sh, tm), :].astype(jnp.bfloat16)
        acc = acc + jnp.dot(xt, w_ref[t], preferred_element_type=jnp.float32)
    conv_ref[...] = acc.astype(conv_ref.dtype)
    am = acc * mask_ref[...]                               # mask = 1 only for valid rows
    sum_ref[...] = jnp.sum(am, axis=0, keepdims=True)[None]
    sq_ref[...] = jnp.sum(acc * am, axis=0, keepdims=True)[None]


def _bn_relu_kernel(conv_ref, scale_ref, shift_ref, o_ref):
    """Per-channel affine (precomputed BN scale/shift) + ReLU; bf16 in/out, f32 math."""
    y = conv_ref[...].astype(jnp.float32) * scale_ref[...] + shift_ref[...]
    o_ref[...] = jnp.maximum(y, 0.0).astype(o_ref.dtype)


def _bn_relu_maxpool_kernel(t_ref, mask_ref, scale_ref, shift_ref, o_ref, *, num_taps):
    """Block-3 BN+ReLU fused with MaxPool.  Taps stacked on the leading axis so the max
    is an elementwise (VPU) chain, not a sublane reduction."""
    scale = scale_ref[...]
    shift = shift_ref[...]
    out = None
    for a in range(num_taps):
        v = jnp.maximum(t_ref[a].astype(jnp.float32) * scale + shift, 0.0)
        v = v * mask_ref[a]          # out-of-window taps -> 0; never beat the max (>=0)
        out = v if out is None else jnp.maximum(out, v)
    o_ref[...] = out


# ---------------------------------------------------------------------------
# Wrappers
# ---------------------------------------------------------------------------
def _bn_scale_shift(sums, sqs, count, gamma, beta, eps):
    """Finalize training-mode BN from per-tile partial sums (tiny (C,) f32 math)."""
    s = jnp.sum(sums, axis=(0, 1))
    q = jnp.sum(sqs, axis=(0, 1))
    mean = s / count
    # NOTE: E[x^2]-E[x]^2 can cancel when |mean| >> std; clamped (fine for conv acts).
    var = jnp.maximum(q / count - mean * mean, 0.0)
    inv_std = lax.rsqrt(var + eps)
    scale = gamma.astype(jnp.float32) * inv_std
    shift = beta.astype(jnp.float32) - mean * scale
    return scale.reshape(1, -1), shift.reshape(1, -1)


def _im2col_conv_pass1(x_nhwc, weight, *, stride, padding):
    """Block 1 (strided) conv: wrapper-side im2col (K = kh*kw*Cin is tiny here) +
    single MXU GEMM + BN partials.  Returns bf16 pre-BN conv rows at real channels."""
    n, h, w, c_in = x_nhwc.shape
    c_out, _, kh, kw = weight.shape
    h_out = (h + 2 * padding - kh) // stride + 1
    w_out = (w + 2 * padding - kw) // stride + 1
    m = n * h_out * w_out
    k = kh * kw * c_in
    k_pad = _round_up(k, 16)                 # bf16 sublane packing on contraction dim
    tm = _choose_row_tile(m)
    num_tiles = -(-m // tm)
    m_pad = num_tiles * tm

    x_p = jnp.pad(x_nhwc, ((0, 0), (padding, padding), (padding, padding), (0, 0)))
    taps = []
    for i in range(kh):
        for j in range(kw):
            taps.append(x_p[:, i:i + (h_out - 1) * stride + 1:stride,
                               j:j + (w_out - 1) * stride + 1:stride, :])
    patches = jnp.concatenate(taps, axis=-1).reshape(m, k)
    patches = jnp.pad(patches, ((0, m_pad - m), (0, k_pad - k))).astype(jnp.bfloat16)
    # (Cout,Cin,KH,KW) -> (KH,KW,Cin,Cout) -> (K,Cout): matches the im2col ordering.
    w2d = jnp.transpose(weight, (2, 3, 1, 0)).reshape(k, c_out)
    w2d = jnp.pad(w2d, ((0, k_pad - k), (0, 0))).astype(jnp.bfloat16)
    mask = jnp.pad(jnp.ones((m, 1), jnp.float32), ((0, m_pad - m), (0, 0)))

    conv, sums, sqs = pl.pallas_call(
        _matmul_stats_kernel,
        out_shape=(jax.ShapeDtypeStruct((m_pad, c_out), jnp.bfloat16),
                   jax.ShapeDtypeStruct((num_tiles, 1, c_out), jnp.float32),
                   jax.ShapeDtypeStruct((num_tiles, 1, c_out), jnp.float32)),
        grid_spec=pltpu.PrefetchScalarGridSpec(
            num_scalar_prefetch=0,
            grid=(num_tiles,),
            in_specs=[pl.BlockSpec((tm, k_pad), lambda i: (i, 0)),
                      pl.BlockSpec((k_pad, c_out), lambda i: (0, 0)),
                      pl.BlockSpec((tm, 1), lambda i: (i, 0))],
            out_specs=(pl.BlockSpec((tm, c_out), lambda i: (i, 0)),
                       pl.BlockSpec((1, 1, c_out), lambda i: (i, 0, 0)),
                       pl.BlockSpec((1, 1, c_out), lambda i: (i, 0, 0)))),
        compiler_params=pltpu.CompilerParams(
            dimension_semantics=("parallel",),
            vmem_limit_bytes=_vmem_limit()),
    )(patches, w2d, mask)
    return conv, sums, sqs, (n, h_out, w_out), m, tm, num_tiles


def _shift_conv_pass1(x_nhwc, weight, *, padding):
    """Stride-1 conv pass 1 (blocks 2/3): no im2col in HBM.  The zero-padded NHWC
    activation is flattened to (pixels, Cin); each kernel tap is a fixed row shift,
    handled in-kernel from a VMEM-staged tile + one halo block."""
    x = x_nhwc.astype(jnp.bfloat16)
    n, h, w, c_in = x.shape
    c_out, c_in_w, kh, kw = weight.shape
    assert c_in_w == c_in
    hp, wp = h + 2 * padding, w + 2 * padding
    h_out = hp - kh + 1
    w_out = wp - kw + 1
    m_grid = n * hp * wp                       # one output row per padded-grid position
    max_shift = (kh - 1) * wp + (kw - 1)
    tm = max(_choose_row_tile(m_grid), _round_up(max_shift, 16))
    num_tiles = -(-m_grid // tm)
    m_pad = num_tiles * tm

    x_pad = jnp.pad(x, ((0, 0), (padding, padding), (padding, padding), (0, 0)))
    flat = x_pad.reshape(m_grid, c_in)
    flat = jnp.pad(flat, ((0, m_pad + tm - m_grid), (0, 0)))   # + one halo block of rows

    # Per-tap (Cin, Cout) weights; tap order t = di*kw + dj matches `shifts`.
    w_taps = jnp.transpose(weight, (2, 3, 1, 0)).reshape(kh * kw, c_in, c_out)
    w_taps = w_taps.astype(jnp.bfloat16)
    shifts = tuple(di * wp + dj for di in range(kh) for dj in range(kw))

    # Validity: grid position (n, i, j) is a real conv output iff i < h_out, j < w_out.
    mask = jnp.pad(jnp.ones((n, h_out, w_out, 1), jnp.float32),
                   ((0, 0), (0, hp - h_out), (0, wp - w_out), (0, 0)))
    mask = jnp.pad(mask.reshape(m_grid, 1), ((0, m_pad - m_grid), (0, 0)))

    kernel = functools.partial(_shift_conv_stats_kernel, shifts=shifts, tm=tm)
    conv, sums, sqs = pl.pallas_call(
        kernel,
        out_shape=(jax.ShapeDtypeStruct((m_pad, c_out), jnp.bfloat16),
                   jax.ShapeDtypeStruct((num_tiles, 1, c_out), jnp.float32),
                   jax.ShapeDtypeStruct((num_tiles, 1, c_out), jnp.float32)),
        grid_spec=pltpu.PrefetchScalarGridSpec(
            num_scalar_prefetch=0,
            grid=(num_tiles,),
            # Same array twice: block i and block i+1 (halo).  A Buffered(3) pipeline on
            # these is a possible further sweep; default double buffering kept for safety.
            in_specs=[pl.BlockSpec((tm, c_in), lambda i: (i, 0)),
                      pl.BlockSpec((tm, c_in), lambda i: (i + 1, 0)),
                      pl.BlockSpec((kh * kw, c_in, c_out), lambda i: (0, 0, 0)),
                      pl.BlockSpec((tm, 1), lambda i: (i, 0))],
            out_specs=(pl.BlockSpec((tm, c_out), lambda i: (i, 0)),
                       pl.BlockSpec((1, 1, c_out), lambda i: (i, 0, 0)),
                       pl.BlockSpec((1, 1, c_out), lambda i: (i, 0, 0))),
            scratch_shapes=[pltpu.VMEM((2 * tm, c_in), jnp.float32)]),
        compiler_params=pltpu.CompilerParams(
            dimension_semantics=("parallel",),
            vmem_limit_bytes=_vmem_limit()),
    )(flat, flat, w_taps, mask)
    dims = (n, hp, wp, h_out, w_out)
    return conv, sums, sqs, dims, n * h_out * w_out, tm, num_tiles


def _bn_relu_pass2(conv, scale, shift, tm, num_tiles):
    """BN affine + ReLU, bf16 in/out; output aliased onto the conv buffer."""
    m_pad, c = conv.shape
    return pl.pallas_call(
        _bn_relu_kernel,
        out_shape=jax.ShapeDtypeStruct((m_pad, c), jnp.bfloat16),
        grid_spec=pltpu.PrefetchScalarGridSpec(
            num_scalar_prefetch=0,
            grid=(num_tiles,),
            in_specs=[pl.BlockSpec((tm, c), lambda i: (i, 0)),
                      pl.BlockSpec((1, c), lambda i: (0, 0)),
                      pl.BlockSpec((1, c), lambda i: (0, 0))],
            out_specs=pl.BlockSpec((tm, c), lambda i: (i, 0))),
        compiler_params=pltpu.CompilerParams(
            dimension_semantics=("parallel",),
            vmem_limit_bytes=_vmem_limit()),
        input_output_aliases={0: 0},
    )(conv, scale, shift)


def _bn_relu_maxpool(conv_full, dims, scale, shift, *, k, stride, padding):
    """Fused block-3 BN+ReLU + MaxPool2d(k, stride, padding, dilation=1)."""
    n, hp, wp, h_in, w_in = dims
    c = conv_full.shape[-1]
    m_grid = n * hp * wp
    h_pool = (h_in + 2 * padding - k) // stride + 1
    w_pool = (w_in + 2 * padding - k) // stride + 1
    m_pool = n * h_pool * w_pool
    tm = _choose_row_tile(m_pool)
    num_tiles = -(-m_pool // tm)
    m_pool_pad = num_tiles * tm

    # Valid conv-3 outputs (pre-BN, bf16), spatially padded for the pool window.
    # Padding value is arbitrary: padded taps are masked to 0 after ReLU in-kernel.
    c3 = conv_full[:m_grid].reshape(n, hp, wp, c)[:, :h_in, :w_in, :]
    c3p = jnp.pad(c3, ((0, 0), (padding, padding), (padding, padding), (0, 0)))
    ones = jnp.pad(jnp.ones((n, h_in, w_in, 1), jnp.float32),
                   ((0, 0), (padding, padding), (padding, padding), (0, 0)))
    taps, masks = [], []
    for a in range(k):
        for b in range(k):
            taps.append(c3p[:, a:a + (h_pool - 1) * stride + 1:stride,
                               b:b + (w_pool - 1) * stride + 1:stride, :].reshape(m_pool, c))
            masks.append(ones[:, a:a + (h_pool - 1) * stride + 1:stride,
                                 b:b + (w_pool - 1) * stride + 1:stride, :].reshape(m_pool, 1))
    t = jnp.pad(jnp.stack(taps, axis=0), ((0, 0), (0, m_pool_pad - m_pool), (0, 0)))
    msk = jnp.pad(jnp.stack(masks, axis=0), ((0, 0), (0, m_pool_pad - m_pool), (0, 0)))

    kernel = functools.partial(_bn_relu_maxpool_kernel, num_taps=k * k)
    y = pl.pallas_call(
        kernel,
        out_shape=jax.ShapeDtypeStruct((m_pool_pad, c), jnp.float32),
        grid_spec=pltpu.PrefetchScalarGridSpec(
            num_scalar_prefetch=0,
            grid=(num_tiles,),
            in_specs=[pl.BlockSpec((k * k, tm, c), lambda i: (0, i, 0)),
                      pl.BlockSpec((k * k, tm, 1), lambda i: (0, i, 0)),
                      pl.BlockSpec((1, c), lambda i: (0, 0)),
                      pl.BlockSpec((1, c), lambda i: (0, 0))],
            out_specs=pl.BlockSpec((tm, c), lambda i: (i, 0))),
        compiler_params=pltpu.CompilerParams(
            dimension_semantics=("parallel",),
            vmem_limit_bytes=_vmem_limit()),
    )(t, msk, scale, shift)
    return y[:m_pool].reshape(n, h_pool, w_pool, c)


def stem_conv_forward(x_nchw, params, *, kernel_size, eps=1e-5):
    """StemConv forward. x_nchw: (N,Cin,H,W). Returns NCHW f32.
    Conv biases (params['b*']) are dropped: training-mode BatchNorm subtracts the batch
    mean, so a per-channel conv bias cancels exactly."""
    x = jnp.transpose(x_nchw, (0, 2, 3, 1)).astype(jnp.float32)      # NCHW -> NHWC

    # --- block 1: strided conv (im2col GEMM, tiny K) + BN + ReLU -----------------
    conv1, s1, q1, (n, h1, w1), cnt1, tm1, nt1 = _im2col_conv_pass1(
        x, params["w1"], stride=2, padding=1)
    scale1, shift1 = _bn_scale_shift(s1, q1, cnt1, params["g1"], params["be1"], eps)
    a1 = _bn_relu_pass2(conv1, scale1, shift1, tm1, nt1)[:cnt1]
    a1 = a1.reshape(n, h1, w1, -1)                                    # bf16 NHWC

    # --- block 2: shift-conv (no HBM im2col) + BN + ReLU -------------------------
    conv2, s2, q2, dims2, cnt2, tm2, nt2 = _shift_conv_pass1(a1, params["w2"], padding=1)
    scale2, shift2 = _bn_scale_shift(s2, q2, cnt2, params["g2"], params["be2"], eps)
    y2 = _bn_relu_pass2(conv2, scale2, shift2, tm2, nt2)
    n2, hp2, wp2, h2, w2 = dims2
    a2 = y2[:n2 * hp2 * wp2].reshape(n2, hp2, wp2, -1)[:, :h2, :w2, :]

    # --- block 3: shift-conv; its BN + ReLU is fused into the maxpool kernel -----
    conv3, s3, q3, dims3, cnt3, _tm3, _nt3 = _shift_conv_pass1(a2, params["w3"], padding=1)
    scale3, shift3 = _bn_scale_shift(s3, q3, cnt3, params["g3"], params["be3"], eps)
    pooled = _bn_relu_maxpool(conv3, dims3, scale3, shift3,
                              k=kernel_size, stride=2, padding=1)
    return jnp.transpose(pooled, (0, 3, 1, 2)).astype(jnp.float32)    # NHWC -> NCHW


# ---------------------------------------------------------------------------
# Pure-JAX f32 reference (matches PyTorch semantics).
# ---------------------------------------------------------------------------
def _conv_block_ref(x, w, b, g, be, *, stride, padding, eps=1e-5):
    y = lax.conv_general_dilated(
        x.astype(jnp.float32), w.astype(jnp.float32),
        window_strides=(stride, stride),
        padding=[(padding, padding), (padding, padding)],
        dimension_numbers=("NCHW", "OIHW", "NCHW"))
    y = y + b.reshape(1, -1, 1, 1)
    mean = jnp.mean(y, axis=(0, 2, 3), keepdims=True)
    var = jnp.mean((y - mean) ** 2, axis=(0, 2, 3), keepdims=True)
    y = (y - mean) * lax.rsqrt(var + eps)
    y = y * g.reshape(1, -1, 1, 1) + be.reshape(1, -1, 1, 1)
    return jnp.maximum(y, 0.0)


def _stem_reference(x, params, *, kernel_size):
    x = _conv_block_ref(x, params["w1"], params["b1"], params["g1"], params["be1"],
                        stride=2, padding=1)
    x = _conv_block_ref(x, params["w2"], params["b2"], params["g2"], params["be2"],
                        stride=1, padding=1)
    x = _conv_block_ref(x, params["w3"], params["b3"], params["g3"], params["be3"],
                        stride=1, padding=1)
    return lax.reduce_window(
        x, -jnp.inf, lax.max,
        window_dimensions=(1, 1, kernel_size, kernel_size),
        window_strides=(1, 1, 2, 2),
        padding=((0, 0), (0, 0), (1, 1), (1, 1)))


if __name__ == "__main__":
    # StemConv(in_channels=4, hidden=32, out_channels=32, kernel_size=3)
    N, C_IN, H, W = 2, 4, 16, 16
    HIDDEN, C_OUT, K = 32, 32, 3

    key = jax.random.PRNGKey(0)
    ks = jax.random.split(key, 10)

    def conv_init(kk, c_out, c_in, ksz):
        fan_in = c_in * ksz * ksz
        bound = 1.0 / (fan_in ** 0.5)
        k1, k2 = jax.random.split(kk)
        wgt = jax.random.uniform(k1, (c_out, c_in, ksz, ksz), jnp.float32, -bound, bound)
        bia = jax.random.uniform(k2, (c_out,), jnp.float32, -bound, bound)
        return wgt, bia

    w1, b1 = conv_init(ks[0], HIDDEN, C_IN, K)
    w2, b2 = conv_init(ks[1], HIDDEN, HIDDEN, K)
    w3, b3 = conv_init(ks[2], C_OUT, HIDDEN, K)
    g1 = 1.0 + 0.1 * jax.random.normal(ks[3], (HIDDEN,), jnp.float32)
    be1 = 0.1 * jax.random.normal(ks[4], (HIDDEN,), jnp.float32)
    g2 = 1.0 + 0.1 * jax.random.normal(ks[5], (HIDDEN,), jnp.float32)
    be2 = 0.1 * jax.random.normal(ks[6], (HIDDEN,), jnp.float32)
    g3 = 1.0 + 0.1 * jax.random.normal(ks[7], (C_OUT,), jnp.float32)
    be3 = 0.1 * jax.random.normal(ks[8], (C_OUT,), jnp.float32)

    x = jax.random.normal(ks[9], (N, C_IN, H, W), jnp.float32)

    params = dict(w1=w1, b1=b1, g1=g1, be1=be1,
                  w2=w2, b2=b2, g2=g2, be2=be2,
                  w3=w3, b3=b3, g3=g3, be3=be3)

    fwd = jax.jit(functools.partial(stem_conv_forward, kernel_size=K))
    out = jax.block_until_ready(fwd(x, params))

    ref = _stem_reference(x, params, kernel_size=K)
    assert out.shape == ref.shape == (N, C_OUT, 4, 4), out.shape
    # bf16 MXU operands + bf16-stored intermediates through 3 blocks vs f32 reference:
    # mixed absolute/relative tolerance.
    excess = float(jnp.max(jnp.abs(out - ref) - 3e-2 * jnp.abs(ref)))
    assert excess < 5e-2, f"tolerance exceeded by {excess}"

    print("KERNEL_OK")
</pallas_src>

<mosaic_0001>
module attributes {stable_mosaic.version = 11 : i64} {
  func.func @_matmul_stats_kernel(%arg0: i32, %arg1: memref<64x48xbf16, #tpu.memory_space<vmem>>, %arg2: memref<48x32xbf16, #tpu.memory_space<vmem>>, %arg3: memref<64x1xf32, #tpu.memory_space<vmem>>, %arg4: memref<64x32xbf16, #tpu.memory_space<vmem>>, %arg5: memref<1x1x32xf32, #tpu.memory_space<vmem>>, %arg6: memref<1x1x32xf32, #tpu.memory_space<vmem>>) attributes {dimension_semantics = [#tpu.dimension_semantics<parallel>], iteration_bounds = array<i64: 2>, scalar_prefetch = 0 : i64, scratch_operands = 0 : i64, tpu.core_type = #tpu.core_type<tc>, window_params = [{transform_indices = @transform_0, window_bounds = array<i64: 64, 48>}, {pipeline_mode = #tpu.pipeline_mode<synchronous>, transform_indices = @transform_1, window_bounds = array<i64: 48, 32>}, {transform_indices = @transform_2, window_bounds = array<i64: 64, 1>}, {transform_indices = @transform_3, window_bounds = array<i64: 64, 32>}, {transform_indices = @transform_4, window_bounds = array<i64: 1, 1, 32>}, {transform_indices = @transform_5, window_bounds = array<i64: 1, 1, 32>}]} {
    %c0 = arith.constant 0 : index
    %c0_0 = arith.constant 0 : index
    %0 = vector.load %arg1[%c0, %c0_0] : memref<64x48xbf16, #tpu.memory_space<vmem>>, vector<64x48xbf16>
    %c0_1 = arith.constant 0 : index
    %c0_2 = arith.constant 0 : index
    %1 = vector.load %arg2[%c0_1, %c0_2] : memref<48x32xbf16, #tpu.memory_space<vmem>>, vector<48x32xbf16>
    %cst = arith.constant dense<0.000000e+00> : vector<64x32xf32>
    %2 = tpu.matmul %0, %1, %cst {dimension_numbers = #tpu.dot_dimension_numbers<[1], [0], [0], [1], [0, 0, 1, 1], [], []>} : vector<64x48xbf16>, vector<48x32xbf16>, vector<64x32xf32> -> vector<64x32xf32>
    %3 = arith.truncf %2 : vector<64x32xf32> to vector<64x32xbf16>
    %c0_3 = arith.constant 0 : index
    %c0_4 = arith.constant 0 : index
    %4 = vector.load %arg4[%c0_3, %c0_4] : memref<64x32xbf16, #tpu.memory_space<vmem>>, vector<64x32xbf16>
    tpu.vector_store %arg4[%c0_3, %c0_4], %3 {strides = array<i32>} : memref<64x32xbf16, #tpu.memory_space<vmem>>, vector<64x32xbf16>,
    %c0_5 = arith.constant 0 : index
    %c0_6 = arith.constant 0 : index
    %5 = vector.load %arg3[%c0_5, %c0_6] : memref<64x1xf32, #tpu.memory_space<vmem>>, vector<64x1xf32>
    %6 = vector.broadcast %5 : vector<64x1xf32> to vector<64x32xf32>
    %7 = arith.mulf %2, %6 : vector<64x32xf32>
    %cst_7 = arith.constant dense<0.000000e+00> : vector<32xf32>
    %8 = vector.multi_reduction <add>, %7, %cst_7 [0] : vector<64x32xf32> to vector<32xf32>
    %9 = vector.shape_cast %8 : vector<32xf32> to vector<1x32xf32>
    %10 = vector.shape_cast %9 : vector<1x32xf32> to vector<1x1x32xf32>
    %c0_8 = arith.constant 0 : index
    %c0_9 = arith.constant 0 : index
    %c0_10 = arith.constant 0 : index
    %11 = vector.load %arg5[%c0_8, %c0_9, %c0_10] : memref<1x1x32xf32, #tpu.memory_space<vmem>>, vector<1x1x32xf32>
    tpu.vector_store %arg5[%c0_8, %c0_9, %c0_10], %10 {strides = array<i32>} : memref<1x1x32xf32, #tpu.memory_space<vmem>>, vector<1x1x32xf32>,
    %12 = arith.mulf %2, %7 : vector<64x32xf32>
    %cst_11 = arith.constant dense<0.000000e+00> : vector<32xf32>
    %13 = vector.multi_reduction <add>, %12, %cst_11 [0] : vector<64x32xf32> to vector<32xf32>
    %14 = vector.shape_cast %13 : vector<32xf32> to vector<1x32xf32>
    %15 = vector.shape_cast %14 : vector<1x32xf32> to vector<1x1x32xf32>
    %c0_12 = arith.constant 0 : index
    %c0_13 = arith.constant 0 : index
    %c0_14 = arith.constant 0 : index
    %16 = vector.load %arg6[%c0_12, %c0_13, %c0_14] : memref<1x1x32xf32, #tpu.memory_space<vmem>>, vector<1x1x32xf32>
    tpu.vector_store %arg6[%c0_12, %c0_13, %c0_14], %15 {strides = array<i32>} : memref<1x1x32xf32, #tpu.memory_space<vmem>>, vector<1x1x32xf32>,
    return
  }
  func.func @transform_0(%arg0: i32) -> (i32, i32) {
    %c0_i32 = arith.constant 0 : i32
    %c0_i32_0 = arith.constant 0 : i32
    return %arg0, %c0_i32 : i32, i32
  }
  func.func @transform_1(%arg0: i32) -> (i32, i32) {
    %c0_i32 = arith.constant 0 : i32
    %c0_i32_0 = arith.constant 0 : i32
    %c0_i32_1 = arith.constant 0 : i32
    return %c0_i32, %c0_i32_0 : i32, i32
  }
  func.func @transform_2(%arg0: i32) -> (i32, i32) {
    %c0_i32 = arith.constant 0 : i32
    %c0_i32_0 = arith.constant 0 : i32
    return %arg0, %c0_i32 : i32, i32
  }
  func.func @transform_3(%arg0: i32) -> (i32, i32) {
    %c0_i32 = arith.constant 0 : i32
    %c0_i32_0 = arith.constant 0 : i32
    return %arg0, %c0_i32 : i32, i32
  }
  func.func @transform_4(%arg0: i32) -> (i32, i32, i32) {
    %c0_i32 = arith.constant 0 : i32
    %c0_i32_0 = arith.constant 0 : i32
    %c0_i32_1 = arith.constant 0 : i32
    return %arg0, %c0_i32, %c0_i32_0 : i32, i32, i32
  }
  func.func @transform_5(%arg0: i32) -> (i32, i32, i32) {
    %c0_i32 = arith.constant 0 : i32
    %c0_i32_0 = arith.constant 0 : i32
    %c0_i32_1 = arith.constant 0 : i32
    return %arg0, %c0_i32, %c0_i32_0 : i32, i32, i32
  }
}

module attributes {stable_mosaic.version = 11 : i64} {
  func.func @_bn_relu_kernel(%arg0: i32, %arg1: memref<64x32xbf16, #tpu.memory_space<vmem>>, %arg2: memref<1x32xf32, #tpu.memory_space<vmem>>, %arg3: memref<1x32xf32, #tpu.memory_space<vmem>>, %arg4: memref<64x32xbf16, #tpu.memory_space<vmem>>) attributes {dimension_semantics = [#tpu.dimension_semantics<parallel>], iteration_bounds = array<i64: 2>, scalar_prefetch = 0 : i64, scratch_operands = 0 : i64, tpu.core_type = #tpu.core_type<tc>, window_params = [{transform_indices = @transform_0, window_bounds = array<i64: 64, 32>}, {pipeline_mode = #tpu.pipeline_mode<synchronous>, transform_indices = @transform_1, window_bounds = array<i64: 1, 32>}, {pipeline_mode = #tpu.pipeline_mode<synchronous>, transform_indices = @transform_2, window_bounds = array<i64: 1, 32>}, {transform_indices = @transform_3, window_bounds = array<i64: 64, 32>}]} {
    %c0 = arith.constant 0 : index
    %c0_0 = arith.constant 0 : index
    %0 = vector.load %arg1[%c0, %c0_0] : memref<64x32xbf16, #tpu.memory_space<vmem>>, vector<64x32xbf16>
    %1 = arith.extf %0 : vector<64x32xbf16> to vector<64x32xf32>
    %c0_1 = arith.constant 0 : index
    %c0_2 = arith.constant 0 : index
    %2 = vector.load %arg2[%c0_1, %c0_2] : memref<1x32xf32, #tpu.memory_space<vmem>>, vector<1x32xf32>
    %3 = vector.broadcast %2 : vector<1x32xf32> to vector<64x32xf32>
    %4 = arith.mulf %1, %3 : vector<64x32xf32>
    %c0_3 = arith.constant 0 : index
    %c0_4 = arith.constant 0 : index
    %5 = vector.load %arg3[%c0_3, %c0_4] : memref<1x32xf32, #tpu.memory_space<vmem>>, vector<1x32xf32>
    %6 = vector.broadcast %5 : vector<1x32xf32> to vector<64x32xf32>
    %7 = arith.addf %4, %6 : vector<64x32xf32>
    %cst = arith.constant 0.000000e+00 : f32
    %8 = vector.broadcast %cst : f32 to vector<64x32xf32>
    %9 = arith.maximumf %7, %8 : vector<64x32xf32>
    %10 = arith.truncf %9 : vector<64x32xf32> to vector<64x32xbf16>
    %c0_5 = arith.constant 0 : index
    %c0_6 = arith.constant 0 : index
    %11 = vector.load %arg4[%c0_5, %c0_6] : memref<64x32xbf16, #tpu.memory_space<vmem>>, vector<64x32xbf16>
    tpu.vector_store %arg4[%c0_5, %c0_6], %10 {strides = array<i32>} : memref<64x32xbf16, #tpu.memory_space<vmem>>, vector<64x32xbf16>,
    return
  }
  func.func @transform_0(%arg0: i32) -> (i32, i32) {
    %c0_i32 = arith.constant 0 : i32
    %c0_i32_0 = arith.constant 0 : i32
    return %arg0, %c0_i32 : i32, i32
  }
  func.func @transform_1(%arg0: i32) -> (i32, i32) {
    %c0_i32 = arith.constant 0 : i32
    %c0_i32_0 = arith.constant 0 : i32
    %c0_i32_1 = arith.constant 0 : i32
    return %c0_i32, %c0_i32_0 : i32, i32
  }
  func.func @transform_2(%arg0: i32) -> (i32, i32) {
    %c0_i32 = arith.constant 0 : i32
    %c0_i32_0 = arith.constant 0 : i32
    %c0_i32_1 = arith.constant 0 : i32
    return %c0_i32, %c0_i32_0 : i32, i32
  }
  func.func @transform_3(%arg0: i32) -> (i32, i32) {
    %c0_i32 = arith.constant 0 : i32
    %c0_i32_0 = arith.constant 0 : i32
    return %arg0, %c0_i32 : i32, i32
  }
}

module attributes {stable_mosaic.version = 11 : i64} {
  func.func @_bn_relu_kernel(%arg0: i32, %arg1: memref<112x32xbf16, #tpu.memory_space<vmem>>, %arg2: memref<1x32xf32, #tpu.memory_space<vmem>>, %arg3: memref<1x32xf32, #tpu.memory_space<vmem>>, %arg4: memref<112x32xbf16, #tpu.memory_space<vmem>>) attributes {dimension_semantics = [#tpu.dimension_semantics<parallel>], iteration_bounds = array<i64: 2>, scalar_prefetch = 0 : i64, scratch_operands = 0 : i64, tpu.core_type = #tpu.core_type<tc>, window_params = [{transform_indices = @transform_0, window_bounds = array<i64: 112, 32>}, {pipeline_mode = #tpu.pipeline_mode<synchronous>, transform_indices = @transform_1, window_bounds = array<i64: 1, 32>}, {pipeline_mode = #tpu.pipeline_mode<synchronous>, transform_indices = @transform_2, window_bounds = array<i64: 1, 32>}, {transform_indices = @transform_3, window_bounds = array<i64: 112, 32>}]} {
    %c0 = arith.constant 0 : index
    %c0_0 = arith.constant 0 : index
    %0 = vector.load %arg1[%c0, %c0_0] : memref<112x32xbf16, #tpu.memory_space<vmem>>, vector<112x32xbf16>
    %1 = arith.extf %0 : vector<112x32xbf16> to vector<112x32xf32>
    %c0_1 = arith.constant 0 : index
    %c0_2 = arith.constant 0 : index
    %2 = vector.load %arg2[%c0_1, %c0_2] : memref<1x32xf32, #tpu.memory_space<vmem>>, vector<1x32xf32>
    %3 = vector.broadcast %2 : vector<1x32xf32> to vector<112x32xf32>
    %4 = arith.mulf %1, %3 : vector<112x32xf32>
    %c0_3 = arith.constant 0 : index
    %c0_4 = arith.constant 0 : index
    %5 = vector.load %arg3[%c0_3, %c0_4] : memref<1x32xf32, #tpu.memory_space<vmem>>, vector<1x32xf32>
    %6 = vector.broadcast %5 : vector<1x32xf32> to vector<112x32xf32>
    %7 = arith.addf %4, %6 : vector<112x32xf32>
    %cst = arith.constant 0.000000e+00 : f32
    %8 = vector.broadcast %cst : f32 to vector<112x32xf32>
    %9 = arith.maximumf %7, %8 : vector<112x32xf32>
    %10 = arith.truncf %9 : vector<112x32xf32> to vector<112x32xbf16>
    %c0_5 = arith.constant 0 : index
    %c0_6 = arith.constant 0 : index
    %11 = vector.load %arg4[%c0_5, %c0_6] : memref<112x32xbf16, #tpu.memory_space<vmem>>, vector<112x32xbf16>
    tpu.vector_store %arg4[%c0_5, %c0_6], %10 {strides = array<i32>} : memref<112x32xbf16, #tpu.memory_space<vmem>>, vector<112x32xbf16>,
    return
  }
  func.func @transform_0(%arg0: i32) -> (i32, i32) {
    %c0_i32 = arith.constant 0 : i32
    %c0_i32_0 = arith.constant 0 : i32
    return %arg0, %c0_i32 : i32, i32
  }
  func.func @transform_1(%arg0: i32) -> (i32, i32) {
    %c0_i32 = arith.constant 0 : i32
    %c0_i32_0 = arith.constant 0 : i32
    %c0_i32_1 = arith.constant 0 : i32
    return %c0_i32, %c0_i32_0 : i32, i32
  }
  func.func @transform_2(%arg0: i32) -> (i32, i32) {
    %c0_i32 = arith.constant 0 : i32
    %c0_i32_0 = arith.constant 0 : i32
    %c0_i32_1 = arith.constant 0 : i32
    return %c0_i32, %c0_i32_0 : i32, i32
  }
  func.func @transform_3(%arg0: i32) -> (i32, i32) {
    %c0_i32 = arith.constant 0 : i32
    %c0_i32_0 = arith.constant 0 : i32
    return %arg0, %c0_i32 : i32, i32
  }
}

module attributes {stable_mosaic.version = 11 : i64} {
  func.func @_shift_conv_stats_kernel(%arg0: i32, %arg1: memref<112x32xbf16, #tpu.memory_space<vmem>>, %arg2: memref<112x32xbf16, #tpu.memory_space<vmem>>, %arg3: memref<9x32x32xbf16, #tpu.memory_space<vmem>>, %arg4: memref<112x1xf32, #tpu.memory_space<vmem>>, %arg5: memref<112x32xbf16, #tpu.memory_space<vmem>>, %arg6: memref<1x1x32xf32, #tpu.memory_space<vmem>>, %arg7: memref<1x1x32xf32, #tpu.memory_space<vmem>>, %arg8: memref<224x32xf32, #tpu.memory_space<vmem>>) attributes {dimension_semantics = [#tpu.dimension_semantics<parallel>], iteration_bounds = array<i64: 2>, scalar_prefetch = 0 : i64, scratch_operands = 1 : i64, tpu.core_type = #tpu.core_type<tc>, window_params = [{transform_indices = @transform_0, window_bounds = array<i64: 112, 32>}, {transform_indices = @transform_1, window_bounds = array<i64: 112, 32>}, {pipeline_mode = #tpu.pipeline_mode<synchronous>, transform_indices = @transform_2, window_bounds = array<i64: 9, 32, 32>}, {transform_indices = @transform_3, window_bounds = array<i64: 112, 1>}, {transform_indices = @transform_4, window_bounds = array<i64: 112, 32>}, {transform_indices = @transform_5, window_bounds = array<i64: 1, 1, 32>}, {transform_indices = @transform_6, window_bounds = array<i64: 1, 1, 32>}]} {
    %c0 = arith.constant 0 : index
    %c0_0 = arith.constant 0 : index
    %0 = vector.load %arg1[%c0, %c0_0] : memref<112x32xbf16, #tpu.memory_space<vmem>>, vector<112x32xbf16>
    %1 = arith.extf %0 : vector<112x32xbf16> to vector<112x32xf32>
    %c0_1 = arith.constant 0 : index
    %c0_2 = arith.constant 0 : index
    %2 = vector.load %arg8[%c0_1, %c0_2] : memref<224x32xf32, #tpu.memory_space<vmem>>, vector<112x32xf32>
    tpu.vector_store %arg8[%c0_1, %c0_2], %1 {strides = array<i32>} : memref<224x32xf32, #tpu.memory_space<vmem>>, vector<112x32xf32>,
    %c0_3 = arith.constant 0 : index
    %c0_4 = arith.constant 0 : index
    %3 = vector.load %arg2[%c0_3, %c0_4] : memref<112x32xbf16, #tpu.memory_space<vmem>>, vector<112x32xbf16>
    %4 = arith.extf %3 : vector<112x32xbf16> to vector<112x32xf32>
    %c112 = arith.constant 112 : index
    %c0_5 = arith.constant 0 : index
    %5 = vector.load %arg8[%c112, %c0_5] : memref<224x32xf32, #tpu.memory_space<vmem>>, vector<112x32xf32>
    tpu.vector_store %arg8[%c112, %c0_5], %4 {strides = array<i32>} : memref<224x32xf32, #tpu.memory_space<vmem>>, vector<112x32xf32>,
    %cst = arith.constant 0.000000e+00 : f32
    %6 = vector.broadcast %cst : f32 to vector<112x32xf32>
    %c0_6 = arith.constant 0 : index
    %c0_7 = arith.constant 0 : index
    %7 = vector.load %arg8[%c0_6, %c0_7] : memref<224x32xf32, #tpu.memory_space<vmem>>, vector<112x32xf32>
    %8 = arith.truncf %7 : vector<112x32xf32> to vector<112x32xbf16>
    %c0_8 = arith.constant 0 : index
    %c0_9 = arith.constant 0 : index
    %c0_10 = arith.constant 0 : index
    %9 = vector.load %arg3[%c0_8, %c0_9, %c0_10] : memref<9x32x32xbf16, #tpu.memory_space<vmem>>, vector<1x32x32xbf16>
    %10 = vector.shape_cast %9 : vector<1x32x32xbf16> to vector<32x32xbf16>
    %cst_11 = arith.constant dense<0.000000e+00> : vector<112x32xf32>
    %11 = tpu.matmul %8, %10, %cst_11 {dimension_numbers = #tpu.dot_dimension_numbers<[1], [0], [0], [1], [0, 0, 1, 1], [], []>} : vector<112x32xbf16>, vector<32x32xbf16>, vector<112x32xf32> -> vector<112x32xf32>
    %12 = arith.addf %6, %11 : vector<112x32xf32>
    %c1 = arith.constant 1 : index
    %c0_12 = arith.constant 0 : index
    %13 = vector.load %arg8[%c1, %c0_12] : memref<224x32xf32, #tpu.memory_space<vmem>>, vector<112x32xf32>
    %14 = arith.truncf %13 : vector<112x32xf32> to vector<112x32xbf16>
    %c1_13 = arith.constant 1 : index
    %c0_14 = arith.constant 0 : index
    %c0_15 = arith.constant 0 : index
    %15 = vector.load %arg3[%c1_13, %c0_14, %c0_15] : memref<9x32x32xbf16, #tpu.memory_space<vmem>>, vector<1x32x32xbf16>
    %16 = vector.shape_cast %15 : vector<1x32x32xbf16> to vector<32x32xbf16>
    %cst_16 = arith.constant dense<0.000000e+00> : vector<112x32xf32>
    %17 = tpu.matmul %14, %16, %cst_16 {dimension_numbers = #tpu.dot_dimension_numbers<[1], [0], [0], [1], [0, 0, 1, 1], [], []>} : vector<112x32xbf16>, vector<32x32xbf16>, vector<112x32xf32> -> vector<112x32xf32>
    %18 = arith.addf %12, %17 : vector<112x32xf32>
    %c2 = arith.constant 2 : index
    %c0_17 = arith.constant 0 : index
    %19 = vector.load %arg8[%c2, %c0_17] : memref<224x32xf32, #tpu.memory_space<vmem>>, vector<112x32xf32>
    %20 = arith.truncf %19 : vector<112x32xf32> to vector<112x32xbf16>
    %c2_18 = arith.constant 2 : index
    %c0_19 = arith.constant 0 : index
    %c0_20 = arith.constant 0 : index
    %21 = vector.load %arg3[%c2_18, %c0_19, %c0_20] : memref<9x32x32xbf16, #tpu.memory_space<vmem>>, vector<1x32x32xbf16>
    %22 = vector.shape_cast %21 : vector<1x32x32xbf16> to vector<32x32xbf16>
    %cst_21 = arith.constant dense<0.000000e+00> : vector<112x32xf32>
    %23 = tpu.matmul %20, %22, %cst_21 {dimension_numbers = #tpu.dot_dimension_numbers<[1], [0], [0], [1], [0, 0, 1, 1], [], []>} : vector<112x32xbf16>, vector<32x32xbf16>, vector<112x32xf32> -> vector<112x32xf32>
    %24 = arith.addf %18, %23 : vector<112x32xf32>
    %c10 = arith.constant 10 : index
    %c0_22 = arith.constant 0 : index
    %25 = vector.load %arg8[%c10, %c0_22] : memref<224x32xf32, #tpu.memory_space<vmem>>, vector<112x32xf32>
    %26 = arith.truncf %25 : vector<112x32xf32> to vector<112x32xbf16>
    %c3 = arith.constant 3 : index
    %c0_23 = arith.constant 0 : index
    %c0_24 = arith.constant 0 : index
    %27 = vector.load %arg3[%c3, %c0_23, %c0_24] : memref<9x32x32xbf16, #tpu.memory_space<vmem>>, vector<1x32x32xbf16>
    %28 = vector.shape_cast %27 : vector<1x32x32xbf16> to vector<32x32xbf16>
    %cst_25 = arith.constant dense<0.000000e+00> : vector<112x32xf32>
    %29 = tpu.matmul %26, %28, %cst_25 {dimension_numbers = #tpu.dot_dimension_numbers<[1], [0], [0], [1], [0, 0, 1, 1], [], []>} : vector<112x32xbf16>, vector<32x32xbf16>, vector<112x32xf32> -> vector<112x32xf32>
    %30 = arith.addf %24, %29 : vector<112x32xf32>
    %c11 = arith.constant 11 : index
    %c0_26 = arith.constant 0 : index
    %31 = vector.load %arg8[%c11, %c0_26] : memref<224x32xf32, #tpu.memory_space<vmem>>, vector<112x32xf32>
    %32 = arith.truncf %31 : vector<112x32xf32> to vector<112x32xbf16>
    %c4 = arith.constant 4 : index
    %c0_27 = arith.constant 0 : index
    %c0_28 = arith.constant 0 : index
    %33 = vector.load %arg3[%c4, %c0_27, %c0_28] : memref<9x32x32xbf16, #tpu.memory_space<vmem>>, vector<1x32x32xbf16>
    %34 = vector.shape_cast %33 : vector<1x32x32xbf16> to vector<32x32xbf16>
    %cst_29 = arith.constant dense<0.000000e+00> : vector<112x32xf32>
    %35 = tpu.matmul %32, %34, %cst_29 {dimension_numbers = #tpu.dot_dimension_numbers<[1], [0], [0], [1], [0, 0, 1, 1], [], []>} : vector<112x32xbf16>, vector<32x32xbf16>, vector<112x32xf32> -> vector<112x32xf32>
    %36 = arith.addf %30, %35 : vector<112x32xf32>
    %c12 = arith.constant 12 : index
    %c0_30 = arith.constant 0 : index
    %37 = vector.load %arg8[%c12, %c0_30] : memref<224x32xf32, #tpu.memory_space<vmem>>, vector<112x32xf32>
    %38 = arith.truncf %37 : vector<112x32xf32> to vector<112x32xbf16>
    %c5 = arith.constant 5 : index
    %c0_31 = arith.constant 0 : index
    %c0_32 = arith.constant 0 : index
    %39 = vector.load %arg3[%c5, %c0_31, %c0_32] : memref<9x32x32xbf16, #tpu.memory_space<vmem>>, vector<1x32x32xbf16>
    %40 = vector.shape_cast %39 : vector<1x32x32xbf16> to vector<32x32xbf16>
    %cst_33 = arith.constant dense<0.000000e+00> : vector<112x32xf32>
    %41 = tpu.matmul %38, %40, %cst_33 {dimension_numbers = #tpu.dot_dimension_numbers<[1], [0], [0], [1], [0, 0, 1, 1], [], []>} : vector<112x32xbf16>, vector<32x32xbf16>, vector<112x32xf32> -> vector<112x32xf32>
    %42 = arith.addf %36, %41 : vector<112x32xf32>
    %c20 = arith.constant 20 : index
    %c0_34 = arith.constant 0 : index
    %43 = vector.load %arg8[%c20, %c0_34] : memref<224x32xf32, #tpu.memory_space<vmem>>, vector<112x32xf32>
    %44 = arith.truncf %43 : vector<112x32xf32> to vector<112x32xbf16>
    %c6 = arith.constant 6 : index
    %c0_35 = arith.constant 0 : index
    %c0_36 = arith.constant 0 : index
    %45 = vector.load %arg3[%c6, %c0_35, %c0_36] : memref<9x32x32xbf16, #tpu.memory_space<vmem>>, vector<1x32x32xbf16>
    %46 = vector.shape_cast %45 : vector<1x32x32xbf16> to vector<32x32xbf16>
    %cst_37 = arith.constant dense<0.000000e+00> : vector<112x32xf32>
    %47 = tpu.matmul %44, %46, %cst_37 {dimension_numbers = #tpu.dot_dimension_numbers<[1], [0], [0], [1], [0, 0, 1, 1], [], []>} : vector<112x32xbf16>, vector<32x32xbf16>, vector<112x32xf32> -> vector<112x32xf32>
    %48 = arith.addf %42, %47 : vector<112x32xf32>
    %c21 = arith.constant 21 : index
    %c0_38 = arith.constant 0 : index
    %49 = vector.load %arg8[%c21, %c0_38] : memref<224x32xf32, #tpu.memory_space<vmem>>, vector<112x32xf32>
    %50 = arith.truncf %49 : vector<112x32xf32> to vector<112x32xbf16>
    %c7 = arith.constant 7 : index
    %c0_39 = arith.constant 0 : index
    %c0_40 = arith.constant 0 : index
    %51 = vector.load %arg3[%c7, %c0_39, %c0_40] : memref<9x32x32xbf16, #tpu.memory_space<vmem>>, vector<1x32x32xbf16>
    %52 = vector.shape_cast %51 : vector<1x32x32xbf16> to vector<32x32xbf16>
    %cst_41 = arith.constant dense<0.000000e+00> : vector<112x32xf32>
    %53 = tpu.matmul %50, %52, %cst_41 {dimension_numbers = #tpu.dot_dimension_numbers<[1], [0], [0], [1], [0, 0, 1, 1], [], []>} : vector<112x32xbf16>, vector<32x32xbf16>, vector<112x32xf32> -> vector<112x32xf32>
    %54 = arith.addf %48, %53 : vector<112x32xf32>
    %c22 = arith.constant 22 : index
    %c0_42 = arith.constant 0 : index
    %55 = vector.load %arg8[%c22, %c0_42] : memref<224x32xf32, #tpu.memory_space<vmem>>, vector<112x32xf32>
    %56 = arith.truncf %55 : vector<112x32xf32> to vector<112x32xbf16>
    %c8 = arith.constant 8 : index
    %c0_43 = arith.constant 0 : index
    %c0_44 = arith.constant 0 : index
    %57 = vector.load %arg3[%c8, %c0_43, %c0_44] : memref<9x32x32xbf16, #tpu.memory_space<vmem>>, vector<1x32x32xbf16>
    %58 = vector.shape_cast %57 : vector<1x32x32xbf16> to vector<32x32xbf16>
    %cst_45 = arith.constant dense<0.000000e+00> : vector<112x32xf32>
    %59 = tpu.matmul %56, %58, %cst_45 {dimension_numbers = #tpu.dot_dimension_numbers<[1], [0], [0], [1], [0, 0, 1, 1], [], []>} : vector<112x32xbf16>, vector<32x32xbf16>, vector<112x32xf32> -> vector<112x32xf32>
    %60 = arith.addf %54, %59 : vector<112x32xf32>
    %61 = arith.truncf %60 : vector<112x32xf32> to vector<112x32xbf16>
    %c0_46 = arith.constant 0 : index
    %c0_47 = arith.constant 0 : index
    %62 = vector.load %arg5[%c0_46, %c0_47] : memref<112x32xbf16, #tpu.memory_space<vmem>>, vector<112x32xbf16>
    tpu.vector_store %arg5[%c0_46, %c0_47], %61 {strides = array<i32>} : memref<112x32xbf16, #tpu.memory_space<vmem>>, vector<112x32xbf16>,
    %c0_48 = arith.constant 0 : index
    %c0_49 = arith.constant 0 : index
    %63 = vector.load %arg4[%c0_48, %c0_49] : memref<112x1xf32, #tpu.memory_space<vmem>>, vector<112x1xf32>
    %64 = vector.broadcast %63 : vector<112x1xf32> to vector<112x32xf32>
    %65 = arith.mulf %60, %64 : vector<112x32xf32>
    %cst_50 = arith.constant dense<0.000000e+00> : vector<32xf32>
    %66 = vector.multi_reduction <add>, %65, %cst_50 [0] : vector<112x32xf32> to vector<32xf32>
    %67 = vector.shape_cast %66 : vector<32xf32> to vector<1x32xf32>
    %68 = vector.shape_cast %67 : vector<1x32xf32> to vector<1x1x32xf32>
    %c0_51 = arith.constant 0 : index
    %c0_52 = arith.constant 0 : index
    %c0_53 = arith.constant 0 : index
    %69 = vector.load %arg6[%c0_51, %c0_52, %c0_53] : memref<1x1x32xf32, #tpu.memory_space<vmem>>, vector<1x1x32xf32>
    tpu.vector_store %arg6[%c0_51, %c0_52, %c0_53], %68 {strides = array<i32>} : memref<1x1x32xf32, #tpu.memory_space<vmem>>, vector<1x1x32xf32>,
    %70 = arith.mulf %60, %65 : vector<112x32xf32>
    %cst_54 = arith.constant dense<0.000000e+00> : vector<32xf32>
    %71 = vector.multi_reduction <add>, %70, %cst_54 [0] : vector<112x32xf32> to vector<32xf32>
    %72 = vector.shape_cast %71 : vector<32xf32> to vector<1x32xf32>
    %73 = vector.shape_cast %72 : vector<1x32xf32> to vector<1x1x32xf32>
    %c0_55 = arith.constant 0 : index
    %c0_56 = arith.constant 0 : index
    %c0_57 = arith.constant 0 : index
    %74 = vector.load %arg7[%c0_55, %c0_56, %c0_57] : memref<1x1x32xf32, #tpu.memory_space<vmem>>, vector<1x1x32xf32>
    tpu.vector_store %arg7[%c0_55, %c0_56, %c0_57], %73 {strides = array<i32>} : memref<1x1x32xf32, #tpu.memory_space<vmem>>, vector<1x1x32xf32>,
    return
  }
  func.func @transform_0(%arg0: i32) -> (i32, i32) {
    %c0_i32 = arith.constant 0 : i32
    %c0_i32_0 = arith.constant 0 : i32
    return %arg0, %c0_i32 : i32, i32
  }
  func.func @transform_1(%arg0: i32) -> (i32, i32) {
    %c1_i32 = arith.constant 1 : i32
    %0 = arith.addi %arg0, %c1_i32 : i32
    %c0_i32 = arith.constant 0 : i32
    %c0_i32_0 = arith.constant 0 : i32
    return %0, %c0_i32 : i32, i32
  }
  func.func @transform_2(%arg0: i32) -> (i32, i32, i32) {
    %c0_i32 = arith.constant 0 : i32
    %c0_i32_0 = arith.constant 0 : i32
    %c0_i32_1 = arith.constant 0 : i32
    %c0_i32_2 = arith.constant 0 : i32
    return %c0_i32, %c0_i32_0, %c0_i32_1 : i32, i32, i32
  }
  func.func @transform_3(%arg0: i32) -> (i32, i32) {
    %c0_i32 = arith.constant 0 : i32
    %c0_i32_0 = arith.constant 0 : i32
    return %arg0, %c0_i32 : i32, i32
  }
  func.func @transform_4(%arg0: i32) -> (i32, i32) {
    %c0_i32 = arith.constant 0 : i32
    %c0_i32_0 = arith.constant 0 : i32
    return %arg0, %c0_i32 : i32, i32
  }
  func.func @transform_5(%arg0: i32) -> (i32, i32, i32) {
    %c0_i32 = arith.constant 0 : i32
    %c0_i32_0 = arith.constant 0 : i32
    %c0_i32_1 = arith.constant 0 : i32
    return %arg0, %c0_i32, %c0_i32_0 : i32, i32, i32
  }
  func.func @transform_6(%arg0: i32) -> (i32, i32, i32) {
    %c0_i32 = arith.constant 0 : i32
    %c0_i32_0 = arith.constant 0 : i32
    %c0_i32_1 = arith.constant 0 : i32
    return %arg0, %c0_i32, %c0_i32_0 : i32, i32, i32
  }
}

module attributes {stable_mosaic.version = 11 : i64} {
  func.func @_bn_relu_maxpool_kernel(%arg0: i32, %arg1: memref<9x16x32xbf16, #tpu.memory_space<vmem>>, %arg2: memref<9x16x1xf32, #tpu.memory_space<vmem>>, %arg3: memref<1x32xf32, #tpu.memory_space<vmem>>, %arg4: memref<1x32xf32, #tpu.memory_space<vmem>>, %arg5: memref<16x32xf32, #tpu.memory_space<vmem>>) attributes {dimension_semantics = [#tpu.dimension_semantics<parallel>], iteration_bounds = array<i64: 2>, scalar_prefetch = 0 : i64, scratch_operands = 0 : i64, tpu.core_type = #tpu.core_type<tc>, window_params = [{transform_indices = @transform_0, window_bounds = array<i64: 9, 16, 32>}, {transform_indices = @transform_1, window_bounds = array<i64: 9, 16, 1>}, {pipeline_mode = #tpu.pipeline_mode<synchronous>, transform_indices = @transform_2, window_bounds = array<i64: 1, 32>}, {pipeline_mode = #tpu.pipeline_mode<synchronous>, transform_indices = @transform_3, window_bounds = array<i64: 1, 32>}, {transform_indices = @transform_4, window_bounds = array<i64: 16, 32>}]} {
    %c0 = arith.constant 0 : index
    %c0_0 = arith.constant 0 : index
    %0 = vector.load %arg3[%c0, %c0_0] : memref<1x32xf32, #tpu.memory_space<vmem>>, vector<1x32xf32>
    %c0_1 = arith.constant 0 : index
    %c0_2 = arith.constant 0 : index
    %1 = vector.load %arg4[%c0_1, %c0_2] : memref<1x32xf32, #tpu.memory_space<vmem>>, vector<1x32xf32>
    %c0_3 = arith.constant 0 : index
    %c0_4 = arith.constant 0 : index
    %c0_5 = arith.constant 0 : index
    %2 = vector.load %arg1[%c0_3, %c0_4, %c0_5] : memref<9x16x32xbf16, #tpu.memory_space<vmem>>, vector<1x16x32xbf16>
    %3 = vector.shape_cast %2 : vector<1x16x32xbf16> to vector<16x32xbf16>
    %4 = arith.extf %3 : vector<16x32xbf16> to vector<16x32xf32>
    %5 = vector.broadcast %0 : vector<1x32xf32> to vector<16x32xf32>
    %6 = arith.mulf %4, %5 : vector<16x32xf32>
    %7 = vector.broadcast %1 : vector<1x32xf32> to vector<16x32xf32>
    %8 = arith.addf %6, %7 : vector<16x32xf32>
    %cst = arith.constant 0.000000e+00 : f32
    %9 = vector.broadcast %cst : f32 to vector<16x32xf32>
    %10 = arith.maximumf %8, %9 : vector<16x32xf32>
    %c0_6 = arith.constant 0 : index
    %c0_7 = arith.constant 0 : index
    %c0_8 = arith.constant 0 : index
    %11 = vector.load %arg2[%c0_6, %c0_7, %c0_8] : memref<9x16x1xf32, #tpu.memory_space<vmem>>, vector<1x16x1xf32>
    %12 = vector.shape_cast %11 : vector<1x16x1xf32> to vector<16x1xf32>
    %13 = vector.broadcast %12 : vector<16x1xf32> to vector<16x32xf32>
    %14 = arith.mulf %10, %13 : vector<16x32xf32>
    %c1 = arith.constant 1 : index
    %c0_9 = arith.constant 0 : index
    %c0_10 = arith.constant 0 : index
    %15 = vector.load %arg1[%c1, %c0_9, %c0_10] : memref<9x16x32xbf16, #tpu.memory_space<vmem>>, vector<1x16x32xbf16>
    %16 = vector.shape_cast %15 : vector<1x16x32xbf16> to vector<16x32xbf16>
    %17 = arith.extf %16 : vector<16x32xbf16> to vector<16x32xf32>
    %18 = vector.broadcast %0 : vector<1x32xf32> to vector<16x32xf32>
    %19 = arith.mulf %17, %18 : vector<16x32xf32>
    %20 = vector.broadcast %1 : vector<1x32xf32> to vector<16x32xf32>
    %21 = arith.addf %19, %20 : vector<16x32xf32>
    %cst_11 = arith.constant 0.000000e+00 : f32
    %22 = vector.broadcast %cst_11 : f32 to vector<16x32xf32>
    %23 = arith.maximumf %21, %22 : vector<16x32xf32>
    %c1_12 = arith.constant 1 : index
    %c0_13 = arith.constant 0 : index
    %c0_14 = arith.constant 0 : index
    %24 = vector.load %arg2[%c1_12, %c0_13, %c0_14] : memref<9x16x1xf32, #tpu.memory_space<vmem>>, vector<1x16x1xf32>
    %25 = vector.shape_cast %24 : vector<1x16x1xf32> to vector<16x1xf32>
    %26 = vector.broadcast %25 : vector<16x1xf32> to vector<16x32xf32>
    %27 = arith.mulf %23, %26 : vector<16x32xf32>
    %28 = arith.maximumf %14, %27 : vector<16x32xf32>
    %c2 = arith.constant 2 : index
    %c0_15 = arith.constant 0 : index
    %c0_16 = arith.constant 0 : index
    %29 = vector.load %arg1[%c2, %c0_15, %c0_16] : memref<9x16x32xbf16, #tpu.memory_space<vmem>>, vector<1x16x32xbf16>
    %30 = vector.shape_cast %29 : vector<1x16x32xbf16> to vector<16x32xbf16>
    %31 = arith.extf %30 : vector<16x32xbf16> to vector<16x32xf32>
    %32 = vector.broadcast %0 : vector<1x32xf32> to vector<16x32xf32>
    %33 = arith.mulf %31, %32 : vector<16x32xf32>
    %34 = vector.broadcast %1 : vector<1x32xf32> to vector<16x32xf32>
    %35 = arith.addf %33, %34 : vector<16x32xf32>
    %cst_17 = arith.constant 0.000000e+00 : f32
    %36 = vector.broadcast %cst_17 : f32 to vector<16x32xf32>
    %37 = arith.maximumf %35, %36 : vector<16x32xf32>
    %c2_18 = arith.constant 2 : index
    %c0_19 = arith.constant 0 : index
    %c0_20 = arith.constant 0 : index
    %38 = vector.load %arg2[%c2_18, %c0_19, %c0_20] : memref<9x16x1xf32, #tpu.memory_space<vmem>>, vector<1x16x1xf32>
    %39 = vector.shape_cast %38 : vector<1x16x1xf32> to vector<16x1xf32>
    %40 = vector.broadcast %39 : vector<16x1xf32> to vector<16x32xf32>
    %41 = arith.mulf %37, %40 : vector<16x32xf32>
    %42 = arith.maximumf %28, %41 : vector<16x32xf32>
    %c3 = arith.constant 3 : index
    %c0_21 = arith.constant 0 : index
    %c0_22 = arith.constant 0 : index
    %43 = vector.load %arg1[%c3, %c0_21, %c0_22] : memref<9x16x32xbf16, #tpu.memory_space<vmem>>, vector<1x16x32xbf16>
    %44 = vector.shape_cast %43 : vector<1x16x32xbf16> to vector<16x32xbf16>
    %45 = arith.extf %44 : vector<16x32xbf16> to vector<16x32xf32>
    %46 = vector.broadcast %0 : vector<1x32xf32> to vector<16x32xf32>
    %47 = arith.mulf %45, %46 : vector<16x32xf32>
    %48 = vector.broadcast %1 : vector<1x32xf32> to vector<16x32xf32>
    %49 = arith.addf %47, %48 : vector<16x32xf32>
    %cst_23 = arith.constant 0.000000e+00 : f32
    %50 = vector.broadcast %cst_23 : f32 to vector<16x32xf32>
    %51 = arith.maximumf %49, %50 : vector<16x32xf32>
    %c3_24 = arith.constant 3 : index
    %c0_25 = arith.constant 0 : index
    %c0_26 = arith.constant 0 : index
    %52 = vector.load %arg2[%c3_24, %c0_25, %c0_26] : memref<9x16x1xf32, #tpu.memory_space<vmem>>, vector<1x16x1xf32>
    %53 = vector.shape_cast %52 : vector<1x16x1xf32> to vector<16x1xf32>
    %54 = vector.broadcast %53 : vector<16x1xf32> to vector<16x32xf32>
    %55 = arith.mulf %51, %54 : vector<16x32xf32>
    %56 = arith.maximumf %42, %55 : vector<16x32xf32>
    %c4 = arith.constant 4 : index
    %c0_27 = arith.constant 0 : index
    %c0_28 = arith.constant 0 : index
    %57 = vector.load %arg1[%c4, %c0_27, %c0_28] : memref<9x16x32xbf16, #tpu.memory_space<vmem>>, vector<1x16x32xbf16>
    %58 = vector.shape_cast %57 : vector<1x16x32xbf16> to vector<16x32xbf16>
    %59 = arith.extf %58 : vector<16x32xbf16> to vector<16x32xf32>
    %60 = vector.broadcast %0 : vector<1x32xf32> to vector<16x32xf32>
    %61 = arith.mulf %59, %60 : vector<16x32xf32>
    %62 = vector.broadcast %1 : vector<1x32xf32> to vector<16x32xf32>
    %63 = arith.addf %61, %62 : vector<16x32xf32>
    %cst_29 = arith.constant 0.000000e+00 : f32
    %64 = vector.broadcast %cst_29 : f32 to vector<16x32xf32>
    %65 = arith.maximumf %63, %64 : vector<16x32xf32>
    %c4_30 = arith.constant 4 : index
    %c0_31 = arith.constant 0 : index
    %c0_32 = arith.constant 0 : index
    %66 = vector.load %arg2[%c4_30, %c0_31, %c0_32] : memref<9x16x1xf32, #tpu.memory_space<vmem>>, vector<1x16x1xf32>
    %67 = vector.shape_cast %66 : vector<1x16x1xf32> to vector<16x1xf32>
    %68 = vector.broadcast %67 : vector<16x1xf32> to vector<16x32xf32>
    %69 = arith.mulf %65, %68 : vector<16x32xf32>
    %70 = arith.maximumf %56, %69 : vector<16x32xf32>
    %c5 = arith.constant 5 : index
    %c0_33 = arith.constant 0 : index
    %c0_34 = arith.constant 0 : index
    %71 = vector.load %arg1[%c5, %c0_33, %c0_34] : memref<9x16x32xbf16, #tpu.memory_space<vmem>>, vector<1x16x32xbf16>
    %72 = vector.shape_cast %71 : vector<1x16x32xbf16> to vector<16x32xbf16>
    %73 = arith.extf %72 : vector<16x32xbf16> to vector<16x32xf32>
    %74 = vector.broadcast %0 : vector<1x32xf32> to vector<16x32xf32>
    %75 = arith.mulf %73, %74 : vector<16x32xf32>
    %76 = vector.broadcast %1 : vector<1x32xf32> to vector<16x32xf32>
    %77 = arith.addf %75, %76 : vector<16x32xf32>
    %cst_35 = arith.constant 0.000000e+00 : f32
    %78 = vector.broadcast %cst_35 : f32 to vector<16x32xf32>
    %79 = arith.maximumf %77, %78 : vector<16x32xf32>
    %c5_36 = arith.constant 5 : index
    %c0_37 = arith.constant 0 : index
    %c0_38 = arith.constant 0 : index
    %80 = vector.load %arg2[%c5_36, %c0_37, %c0_38] : memref<9x16x1xf32, #tpu.memory_space<vmem>>, vector<1x16x1xf32>
    %81 = vector.shape_cast %80 : vector<1x16x1xf32> to vector<16x1xf32>
    %82 = vector.broadcast %81 : vector<16x1xf32> to vector<16x32xf32>
    %83 = arith.mulf %79, %82 : vector<16x32xf32>
    %84 = arith.maximumf %70, %83 : vector<16x32xf32>
    %c6 = arith.constant 6 : index
    %c0_39 = arith.constant 0 : index
    %c0_40 = arith.constant 0 : index
    %85 = vector.load %arg1[%c6, %c0_39, %c0_40] : memref<9x16x32xbf16, #tpu.memory_space<vmem>>, vector<1x16x32xbf16>
    %86 = vector.shape_cast %85 : vector<1x16x32xbf16> to vector<16x32xbf16>
    %87 = arith.extf %86 : vector<16x32xbf16> to vector<16x32xf32>
    %88 = vector.broadcast %0 : vector<1x32xf32> to vector<16x32xf32>
    %89 = arith.mulf %87, %88 : vector<16x32xf32>
    %90 = vector.broadcast %1 : vector<1x32xf32> to vector<16x32xf32>
    %91 = arith.addf %89, %90 : vector<16x32xf32>
    %cst_41 = arith.constant 0.000000e+00 : f32
    %92 = vector.broadcast %cst_41 : f32 to vector<16x32xf32>
    %93 = arith.maximumf %91, %92 : vector<16x32xf32>
    %c6_42 = arith.constant 6 : index
    %c0_43 = arith.constant 0 : index
    %c0_44 = arith.constant 0 : index
    %94 = vector.load %arg2[%c6_42, %c0_43, %c0_44] : memref<9x16x1xf32, #tpu.memory_space<vmem>>, vector<1x16x1xf32>
    %95 = vector.shape_cast %94 : vector<1x16x1xf32> to vector<16x1xf32>
    %96 = vector.broadcast %95 : vector<16x1xf32> to vector<16x32xf32>
    %97 = arith.mulf %93, %96 : vector<16x32xf32>
    %98 = arith.maximumf %84, %97 : vector<16x32xf32>
    %c7 = arith.constant 7 : index
    %c0_45 = arith.constant 0 : index
    %c0_46 = arith.constant 0 : index
    %99 = vector.load %arg1[%c7, %c0_45, %c0_46] : memref<9x16x32xbf16, #tpu.memory_space<vmem>>, vector<1x16x32xbf16>
    %100 = vector.shape_cast %99 : vector<1x16x32xbf16> to vector<16x32xbf16>
    %101 = arith.extf %100 : vector<16x32xbf16> to vector<16x32xf32>
    %102 = vector.broadcast %0 : vector<1x32xf32> to vector<16x32xf32>
    %103 = arith.mulf %101, %102 : vector<16x32xf32>
    %104 = vector.broadcast %1 : vector<1x32xf32> to vector<16x32xf32>
    %105 = arith.addf %103, %104 : vector<16x32xf32>
    %cst_47 = arith.constant 0.000000e+00 : f32
    %106 = vector.broadcast %cst_47 : f32 to vector<16x32xf32>
    %107 = arith.maximumf %105, %106 : vector<16x32xf32>
    %c7_48 = arith.constant 7 : index
    %c0_49 = arith.constant 0 : index
    %c0_50 = arith.constant 0 : index
    %108 = vector.load %arg2[%c7_48, %c0_49, %c0_50] : memref<9x16x1xf32, #tpu.memory_space<vmem>>, vector<1x16x1xf32>
    %109 = vector.shape_cast %108 : vector<1x16x1xf32> to vector<16x1xf32>
    %110 = vector.broadcast %109 : vector<16x1xf32> to vector<16x32xf32>
    %111 = arith.mulf %107, %110 : vector<16x32xf32>
    %112 = arith.maximumf %98, %111 : vector<16x32xf32>
    %c8 = arith.constant 8 : index
    %c0_51 = arith.constant 0 : index
    %c0_52 = arith.constant 0 : index
    %113 = vector.load %arg1[%c8, %c0_51, %c0_52] : memref<9x16x32xbf16, #tpu.memory_space<vmem>>, vector<1x16x32xbf16>
    %114 = vector.shape_cast %113 : vector<1x16x32xbf16> to vector<16x32xbf16>
    %115 = arith.extf %114 : vector<16x32xbf16> to vector<16x32xf32>
    %116 = vector.broadcast %0 : vector<1x32xf32> to vector<16x32xf32>
    %117 = arith.mulf %115, %116 : vector<16x32xf32>
    %118 = vector.broadcast %1 : vector<1x32xf32> to vector<16x32xf32>
    %119 = arith.addf %117, %118 : vector<16x32xf32>
    %cst_53 = arith.constant 0.000000e+00 : f32
    %120 = vector.broadcast %cst_53 : f32 to vector<16x32xf32>
    %121 = arith.maximumf %119, %120 : vector<16x32xf32>
    %c8_54 = arith.constant 8 : index
    %c0_55 = arith.constant 0 : index
    %c0_56 = arith.constant 0 : index
    %122 = vector.load %arg2[%c8_54, %c0_55, %c0_56] : memref<9x16x1xf32, #tpu.memory_space<vmem>>, vector<1x16x1xf32>
    %123 = vector.shape_cast %122 : vector<1x16x1xf32> to vector<16x1xf32>
    %124 = vector.broadcast %123 : vector<16x1xf32> to vector<16x32xf32>
    %125 = arith.mulf %121, %124 : vector<16x32xf32>
    %126 = arith.maximumf %112, %125 : vector<16x32xf32>
    %c0_57 = arith.constant 0 : index
    %c0_58 = arith.constant 0 : index
    %127 = vector.load %arg5[%c0_57, %c0_58] : memref<16x32xf32, #tpu.memory_space<vmem>>, vector<16x32xf32>
    tpu.vector_store %arg5[%c0_57, %c0_58], %126 {strides = array<i32>} : memref<16x32xf32, #tpu.memory_space<vmem>>, vector<16x32xf32>,
    return
  }
  func.func @transform_0(%arg0: i32) -> (i32, i32, i32) {
    %c0_i32 = arith.constant 0 : i32
    %c0_i32_0 = arith.constant 0 : i32
    %c0_i32_1 = arith.constant 0 : i32
    return %c0_i32, %arg0, %c0_i32_0 : i32, i32, i32
  }
  func.func @transform_1(%arg0: i32) -> (i32, i32, i32) {
    %c0_i32 = arith.constant 0 : i32
    %c0_i32_0 = arith.constant 0 : i32
    %c0_i32_1 = arith.constant 0 : i32
    return %c0_i32, %arg0, %c0_i32_0 : i32, i32, i32
  }
  func.func @transform_2(%arg0: i32) -> (i32, i32) {
    %c0_i32 = arith.constant 0 : i32
    %c0_i32_0 = arith.constant 0 : i32
    %c0_i32_1 = arith.constant 0 : i32
    return %c0_i32, %c0_i32_0 : i32, i32
  }
  func.func @transform_3(%arg0: i32) -> (i32, i32) {
    %c0_i32 = arith.constant 0 : i32
    %c0_i32_0 = arith.constant 0 : i32
    %c0_i32_1 = arith.constant 0 : i32
    return %c0_i32, %c0_i32_0 : i32, i32
  }
  func.func @transform_4(%arg0: i32) -> (i32, i32) {
    %c0_i32 = arith.constant 0 : i32
    %c0_i32_0 = arith.constant 0 : i32
    return %arg0, %c0_i32 : i32, i32
  }
}

</mosaic_0001>

<llo_original>
// kernel: stem_conv_forward.6
$region0: #{stem_conv_forward.6}
  #allocation0 [shape = 'u32[]', space=smem, size = 0x4, offset = 0x4, fixed_abs, tag = 'smem constant byte address 0x4 - core index']
  #allocation1 [shape = 'u32[144,128]{1,0:T(1,128)}', space=vmem, size = 0x12000, scoped, tag = 'internal scratch']
  %s0 = inlined_call_operand.vmem [shape: bf16[128,48], index: 0, kind: input, shape index: {}]
  %s1 = inlined_call_operand.vmem [shape: bf16[48,32], index: 1, kind: input, shape index: {}]
  %s2 = inlined_call_operand.vmem [shape: f32[128,1], index: 2, kind: input, shape index: {}]
  %s3 = inlined_call_operand.vmem [shape: bf16[128,32], index: 3, kind: output, shape index: {0}]
  %s4 = inlined_call_operand.vmem [shape: f32[2,1,32], index: 4, kind: output, shape index: {1}]
  %s5 = inlined_call_operand.vmem [shape: f32[2,1,32], index: 5, kind: output, shape index: {2}]
  %6 = xla_tuple %s3, %s4, %s5
  %s7 = sld [smem:[#allocation0]]
  $region61: #{stem_conv_forward.6} parent=0
    _
  %s9 = ssub.s32 1, %s7
  %s10 = scalar_select 0, %s9, %s7
  loop: start=0, step=1, limit=4
  $region2: #{stem_conv_forward.6} parent=0 // loop_pre_header
    _
  $region3: #{stem_conv_forward.6} parent=0 // loop_header
    %s12 = sphi 0, %s16
    %p13 = scmp.ge.s32.totalorder %s12, 4
    %s22 = sphi 0, %s24
    %s25 = sphi 0, %s22
    %s26 = sphi 0, %s25
    %s42 = sphi 0, %s26
    %s46 = sphi 0, %s46
    %s48 = sphi 0, %s46
    %s49 = sphi 0, %s48
    %s63 = sphi 0, %s49
    %s69 = sphi 0, %s71
    %s72 = sphi 0, %s69
    %s73 = sphi 0, %s72
    %s89 = sphi 0, %s73
    %s95 = sphi 0, %s97
    %s98 = sphi 0, %s95
    %s99 = sphi 0, %s98
    %s115 = sphi 0, %s99
    %s121 = sphi 0, %s123
    %s124 = sphi 0, %s121
    %s125 = sphi 0, %s124
    %s141 = sphi 0, %s125
    %s147 = sphi 0, %s149
    %s150 = sphi 0, %s147
    %s151 = sphi 0, %s150
    %s167 = sphi 0, %s151
  $region4: #{stem_conv_forward.6} parent=0 // loop_header_branch
    %15 = sbr.rel (%p13) target = $region8
  $region5: #{stem_conv_forward.6} parent=0 // loop_body
    %s17 = ssub.s32 %s12, 1
    %s18 = ssub.s32 %s12, 2
    %s19 = sadd.s32 %s12, 1
    %s20 = ssub.s32 %s12, %s19
    %p21 = scmp.eq.s32.totalorder %s20, 0
    %s23 = sadd.s32 %s22, 1
    %s24 = scalar_select %p21, %s22, %s23
    %p27 = pneg %p21
    %p28 = scmp.eq.s32.totalorder %s12, 1
    %p29 = por %p27, %p28
    %p30 = scmp.ne.s32.totalorder %s22, %s25
    %p31 = scmp.eq.s32.totalorder %s12, 0
    %p32 = por %p30, %p31
    %p33 = scmp.ne.s32.totalorder %s22, %s25
    %p34 = scmp.eq.s32.totalorder %s17, 1
    %p35 = por %p33, %p34
    %p36 = scmp.ne.s32.totalorder %s25, %s26
    %p37 = scmp.eq.s32.totalorder %s17, 0
    %p38 = por %p36, %p37
    %p39 = scmp.ne.s32.totalorder %s25, %s26
    %p40 = scmp.eq.s32.totalorder %s18, 1
    %p41 = por %p39, %p40
    %p43 = scmp.ne.s32.totalorder %s26, %s42
    %p44 = scmp.eq.s32.totalorder %s18, 0
    %p45 = por %p43, %p44
    %s47 = sadd.s32 %s46, 1
    %p50 = scmp.eq.s32.totalorder %s12, 1
    %p51 = scmp.ne.s32.totalorder %s46, %s48
    %p52 = scmp.eq.s32.totalorder %s12, 0
    %p53 = por %p51, %p52
    %p54 = scmp.ne.s32.totalorder %s46, %s48
    %p55 = scmp.eq.s32.totalorder %s17, 1
    %p56 = por %p54, %p55
    %p57 = scmp.ne.s32.totalorder %s48, %s49
    %p58 = scmp.eq.s32.totalorder %s17, 0
    %p59 = por %p57, %p58
    %p60 = scmp.ne.s32.totalorder %s48, %s49
    %p61 = scmp.eq.s32.totalorder %s18, 1
    %p62 = por %p60, %p61
    %p64 = scmp.ne.s32.totalorder %s49, %s63
    %p65 = scmp.eq.s32.totalorder %s18, 0
    %p66 = por %p64, %p65
    %s67 = ssub.s32 %s12, %s19
    %p68 = scmp.eq.s32.totalorder %s67, 0
    %s70 = sadd.s32 %s69, 1
    %s71 = scalar_select %p68, %s69, %s70
    %p74 = pneg %p68
    %p75 = scmp.eq.s32.totalorder %s12, 1
    %p76 = por %p74, %p75
    %p77 = scmp.ne.s32.totalorder %s69, %s72
    %p78 = scmp.eq.s32.totalorder %s12, 0
    %p79 = por %p77, %p78
    %p80 = scmp.ne.s32.totalorder %s69, %s72
    %p81 = scmp.eq.s32.totalorder %s17, 1
    %p82 = por %p80, %p81
    %p83 = scmp.ne.s32.totalorder %s72, %s73
    %p84 = scmp.eq.s32.totalorder %s17, 0
    %p85 = por %p83, %p84
    %p86 = scmp.ne.s32.totalorder %s72, %s73
    %p87 = scmp.eq.s32.totalorder %s18, 1
    %p88 = por %p86, %p87
    %p90 = scmp.ne.s32.totalorder %s73, %s89
    %p91 = scmp.eq.s32.totalorder %s18, 0
    %p92 = por %p90, %p91
    %s93 = ssub.s32 %s12, %s19
    %p94 = scmp.eq.s32.totalorder %s93, 0
    %s96 = sadd.s32 %s95, 1
    %s97 = scalar_select %p94, %s95, %s96
    %p100 = pneg %p94
    %p101 = scmp.eq.s32.totalorder %s12, 1
    %p102 = por %p100, %p101
    %p103 = scmp.ne.s32.totalorder %s95, %s98
    %p104 = scmp.eq.s32.totalorder %s12, 0
    %p105 = por %p103, %p104
    %p106 = scmp.ne.s32.totalorder %s95, %s98
    %p107 = scmp.eq.s32.totalorder %s17, 1
    %p108 = por %p106, %p107
    %p109 = scmp.ne.s32.totalorder %s98, %s99
    %p110 = scmp.eq.s32.totalorder %s17, 0
    %p111 = por %p109, %p110
    %p112 = scmp.ne.s32.totalorder %s98, %s99
    %p113 = scmp.eq.s32.totalorder %s18, 1
    %p114 = por %p112, %p113
    %p116 = scmp.ne.s32.totalorder %s99, %s115
    %p117 = scmp.eq.s32.totalorder %s18, 0
    %p118 = por %p116, %p117
    %s119 = ssub.s32 %s12, %s19
    %p120 = scmp.eq.s32.totalorder %s119, 0
    %s122 = sadd.s32 %s121, 1
    %s123 = scalar_select %p120, %s121, %s122
    %p126 = pneg %p120
    %p127 = scmp.eq.s32.totalorder %s12, 1
    %p128 = por %p126, %p127
    %p129 = scmp.ne.s32.totalorder %s121, %s124
    %p130 = scmp.eq.s32.totalorder %s12, 0
    %p131 = por %p129, %p130
    %p132 = scmp.ne.s32.totalorder %s121, %s124
    %p133 = scmp.eq.s32.totalorder %s17, 1
    %p134 = por %p132, %p133
    %p135 = scmp.ne.s32.totalorder %s124, %s125
    %p136 = scmp.eq.s32.totalorder %s17, 0
    %p137 = por %p135, %p136
    %p138 = scmp.ne.s32.totalorder %s124, %s125
    %p139 = scmp.eq.s32.totalorder %s18, 1
    %p140 = por %p138, %p139
    %p142 = scmp.ne.s32.totalorder %s125, %s141
    %p143 = scmp.eq.s32.totalorder %s18, 0
    %p144 = por %p142, %p143
    %s145 = ssub.s32 %s12, %s19
    %p146 = scmp.eq.s32.totalorder %s145, 0
    %s148 = sadd.s32 %s147, 1
    %s149 = scalar_select %p146, %s147, %s148
    %p152 = pneg %p146
    %p153 = scmp.eq.s32.totalorder %s12, 1
    %p154 = por %p152, %p153
    %p155 = scmp.ne.s32.totalorder %s147, %s150
    %p156 = scmp.eq.s32.totalorder %s12, 0
    %p157 = por %p155, %p156
    %p158 = scmp.ne.s32.totalorder %s147, %s150
    %p159 = scmp.eq.s32.totalorder %s17, 1
    %p160 = por %p158, %p159
    %p161 = scmp.ne.s32.totalorder %s150, %s151
    %p162 = scmp.eq.s32.totalorder %s17, 0
    %p163 = por %p161, %p162
    %p164 = scmp.ne.s32.totalorder %s150, %s151
    %p165 = scmp.eq.s32.totalorder %s18, 1
    %p166 = por %p164, %p165
    %p168 = scmp.ne.s32.totalorder %s151, %s167
    %p169 = scmp.eq.s32.totalorder %s18, 0
    %p170 = por %p168, %p169
    %p171 = scmp.le.s32.totalorder 1, %s12
    %p172 = scmp.lt.s32.totalorder %s12, 3
    %p173 = pnand %p171, %p172
    %p174 = pneg %p173
    // Predicated region
    $region9: #{stem_conv_forward.6} parent=5 // pred_check
      _
    $region10: #{stem_conv_forward.6} parent=5 // pred_check_branch
      %176 = sbr.rel (%p173) target = $region12
    $region11: #{stem_conv_forward.6} parent=5 // pred_region
      %s177 = ssub.s32 %s12, 1
      // Predicated region
      $region13: #{stem_conv_forward.6} parent=11 // pred_check
        %p178 = pneg %p59
      $region14: #{stem_conv_forward.6} parent=11 // pred_check_branch
        %180 = sbr.rel (%p178) target = $region16
      $region15: #{stem_conv_forward.6} parent=11 // pred_region
        _
      $region16: #{stem_conv_forward.6} parent=11 // pred_fallthru
        _
    $region12: #{stem_conv_forward.6} parent=5 // pred_fallthru
      _
    %p181 = scmp.lt.s32.totalorder %s12, 2
    // Predicated region
    $region17: #{stem_conv_forward.6} parent=5 // pred_check
      %p182 = pneg %p181
    $region18: #{stem_conv_forward.6} parent=5 // pred_check_branch
      %184 = sbr.rel (%p182) target = $region20
    $region19: #{stem_conv_forward.6} parent=5 // pred_region
      // Predicated region
      $region21: #{stem_conv_forward.6} parent=19 // pred_check
        %p185 = pneg %p32
      $region22: #{stem_conv_forward.6} parent=19 // pred_check_branch
        %187 = sbr.rel (%p185) target = $region24
      $region23: #{stem_conv_forward.6} parent=19 // pred_region
        %s188 = smul.u32 8, %s12
        %p189 = scmp.lt.s32.totalorder %s188, 15
        %s190 = scalar_select %p189, %s188, 15
        %s191 = smul.addr %s190, 4
        %s192 = scalar_lea.vmem %s0, %s191
        %s193 = smul.u32 8, %s12
      $region24: #{stem_conv_forward.6} parent=19 // pred_fallthru
        _
      // Predicated region
      $region25: #{stem_conv_forward.6} parent=19 // pred_check
        %p194 = pneg %p79
      $region26: #{stem_conv_forward.6} parent=19 // pred_check_branch
        %196 = sbr.rel (%p194) target = $region28
      $region27: #{stem_conv_forward.6} parent=19 // pred_region
        %s197 = smul.u32 8, %s12
        %p198 = scmp.lt.s32.totalorder %s197, 15
        %s199 = scalar_select %p198, %s197, 15
        %s200 = smul.addr %s199, 8
        %s201 = scalar_lea.vmem %s2, %s200
        %s202 = smul.u32 8, %s12
      $region28: #{stem_conv_forward.6} parent=19 // pred_fallthru
        _
    $region20: #{stem_conv_forward.6} parent=5 // pred_fallthru
      _
    %p203 = scmp.le.s32.totalorder 1, %s12
    %p204 = scmp.lt.s32.totalorder %s12, 3
    %p205 = pnand %p203, %p204
    %p206 = pneg %p205
    // Predicated region
    $region29: #{stem_conv_forward.6} parent=5 // pred_check
      _
    $region30: #{stem_conv_forward.6} parent=5 // pred_check_branch
      %208 = sbr.rel (%p205) target = $region32
    $region31: #{stem_conv_forward.6} parent=5 // pred_region
      %s209 = ssub.s32 %s12, 1
      %s210 = smul.u32 8, %s17
      %p211 = scmp.lt.s32.totalorder %s210, 15
      %s212 = scalar_select %p211, %s210, 15
      %s213 = smul.addr %s212, 4
      %s214 = scalar_lea.vmem %s0, %s213
      %p215 = pneg %p38
      %p216 = pneg %p35
      %p217 = pneg %p59
      %p218 = pneg %p56
      %s219 = smul.u32 8, %s17
      %p220 = scmp.lt.s32.totalorder %s219, 15
      %s221 = scalar_select %p220, %s219, 15
      %s222 = smul.addr %s221, 8
      %s223 = scalar_lea.vmem %s2, %s222
      %p224 = pneg %p85
      %p225 = pneg %p82
      %p226 = pneg %p111
      %p227 = pneg %p108
      %s228 = smul.u32 8, %s17
      %p229 = scmp.lt.s32.totalorder %s228, 15
      %s230 = scalar_select %p229, %s228, 15
      %s231 = smul.addr %s230, 4
      %s232 = scalar_lea.vmem %s3, %s231
      %p233 = pneg %p137
      %p234 = pneg %p134
      %p235 = scmp.lt.s32.totalorder %s17, 1
      %s236 = scalar_select %p235, %s17, 1
      %s237 = scalar_lea.vmem %s4, %s236
      %p238 = pneg %p163
      %p239 = pneg %p160
      %p240 = scmp.lt.s32.totalorder %s17, 1
      %s241 = scalar_select %p240, %s17, 1
      %s242 = scalar_lea.vmem %s5, %s241
      %s243 = smul.u32 8, %s17
      %p244 = scmp.lt.s32.totalorder %s243, 15
      %s245 = scalar_select %p244, %s243, 15
      %s246 = smul.addr %s245, 4
      %s247 = scalar_lea.vmem %s0, %s246
      %s248 = smul.u32 8, %s17
      %s249 = smul.u32 8, %s17
      %p250 = scmp.lt.s32.totalorder %s249, 15
      %s251 = scalar_select %p250, %s249, 15
      %s252 = smul.addr %s251, 8
      %s253 = scalar_lea.vmem %s2, %s252
      %s254 = smul.u32 8, %s17
      %s255 = smul.u32 8, %s17
      %p256 = scmp.lt.s32.totalorder %s255, 15
      %s257 = scalar_select %p256, %s255, 15
      %s258 = smul.addr %s257, 4
      %s259 = scalar_lea.vmem %s3, %s258
      %s260 = smul.u32 8, %s17
      %p261 = scmp.lt.s32.totalorder %s17, 1
      %s262 = scalar_select %p261, %s17, 1
      %s263 = scalar_lea.vmem %s4, %s262
      %p264 = scmp.lt.s32.totalorder %s17, 1
      %s265 = scalar_select %p264, %s17, 1
      %s266 = scalar_lea.vmem %s5, %s265
      %v268 = vld [vmem:[%s247] sm:$0xf]
      %v269 = vld [vmem:[%s247 + $0x4] sm:$0xf]
      %v270 = vld [vmem:[%s247 + $0x8] sm:$0xf]
      %v271 = vld [vmem:[%s247 + $0xc] sm:$0xf]
      %v272 = vld [vmem:[%s247 + $0x10] sm:$0xf]
      %v273 = vld [vmem:[%s247 + $0x14] sm:$0xf]
      %v274 = vld [vmem:[%s247 + $0x18] sm:$0xf]
      %v275 = vld [vmem:[%s247 + $0x1c] sm:$0xf]
      %v276 = vld [vmem:[%s1] sm:$0xf]
      %v277 = vld [vmem:[%s1 + $0x4] sm:$0xf]
      %v278 = vld [vmem:[%s1 + $0x8] sm:$0xf]
      %v279 = vld [vmem:[%s1 + $0xc] sm:$0xf]
      %v280 = vld [vmem:[%s1 + $0x10] sm:$0xf]
      %v281 = vld [vmem:[%s1 + $0x14] sm:$0xf]
      %v290 = vunpack.c.l.b16 %v268
      %v291 = vunpack.c.l.b16 %v269
      %v292 = vunpack.c.l.b16 %v270
      %v293 = vunpack.c.l.b16 %v271
      %v294 = vunpack.c.l.b16 %v272
      %v295 = vunpack.c.l.b16 %v273
      %v296 = vunpack.c.l.b16 %v274
      %v297 = vunpack.c.l.b16 %v275
      %v298 = vpack.c.b16 %v291, %v290
      %v299 = vpack.c.b16 %v293, %v292
      %v300 = vpack.c.b16 %v295, %v294
      %v301 = vpack.c.b16 %v297, %v296
      %v308 = vunpack.c.l.b16 %v276
      %v309 = vunpack.c.l.b16 %v277
      %v310 = vunpack.c.l.b16 %v278
      %v311 = vunpack.c.l.b16 %v279
      %v312 = vunpack.c.l.b16 %v280
      %v313 = vunpack.c.l.b16 %v281
      %v314 = vpack.c.b16 %v309, %v308
      %v315 = vpack.c.b16 %v311, %v310
      %v316 = vpack.c.b16 %v313, %v312
      %vm320 = vcmask 392192
      %v322 = vsel %vm320, %v298, 0
      %v325 = vsel %vm320, %v299, 0
      %v328 = vsel %vm320, %v300, 0
      %v331 = vsel %vm320, %v301, 0
      %333 = vmatprep.subr.bf16.mxu0 0
      %334 = vmatpush1.bf16.msra.mxu0 %v314
      %335 = vmatprep.subr.bf16.mxu0 0
      %336 = vmatpush1.bf16.msra.mxu0 %v315
      %337 = vmatprep.subr.bf16.mxu0 0
      %338 = vmatpush1.bf16.msra.mxu0 %v316
      %339 = vmatprep.subr.bf16.mxu0 0
      %340 = vmatpush1.bf16.msra.mxu0 0
      %341 = vmatprep.subr.bf16.mxu0 0
      %342 = vmatpush1.bf16.msra.mxu0 0
      %343 = vmatprep.subr.bf16.mxu0 0
      %344 = vmatpush1.bf16.msra.mxu0 0
      %345 = vmatprep.subr.bf16.mxu0 0
      %346 = vmatpush1.bf16.msra.mxu0 0
      %347 = vmatprep.subr.bf16.mxu0 0
      %348 = vmatpush1.bf16.msra.mxu0 0
      %349 = vmatprep.subr.bf16.mxu0 0
      %350 = vmatpush1.bf16.msra.mxu0 0
      %351 = vmatprep.subr.bf16.mxu0 0
      %352 = vmatpush1.bf16.msra.mxu0 0
      %353 = vmatprep.subr.bf16.mxu0 0
      %354 = vmatpush1.bf16.msra.mxu0 0
      %355 = vmatprep.subr.bf16.mxu0 0
      %356 = vmatpush1.bf16.msra.mxu0 0
      %357 = vmatprep.subr.bf16.mxu0 0
      %358 = vmatpush1.bf16.msra.mxu0 0
      %359 = vmatprep.subr.bf16.mxu0 0
      %360 = vmatpush1.bf16.msra.mxu0 0
      %361 = vmatprep.subr.bf16.mxu0 0
      %362 = vmatpush1.bf16.msra.mxu0 0
      %363 = vmatprep.subr.bf16.mxu0 0
      %364 = vmatpush1.bf16.msra.mxu0 0
      %365 = vmatprep.mubr.bf16.mxu0 0
      %366 = vmatmul.mubr.bf16.gmra.mrb[0].mxu0 %v322
      %v367 = vpop.f32.mrb[0].mxu0
      %v368 = vadd.f32 0.0, %v367
      %v369 = vpop.f32.mrb[0].mxu0
      %v370 = vpop.f32.mrb[0].mxu0
      %v371 = vadd.f32 0.0, %v370
      %v372 = vpop.f32.mrb[0].mxu0
      %373 = vmatprep.mubr.bf16.mxu0 0
      %374 = vmatmul.mubr.bf16.gmra.mrb[0].mxu0 %v325
      %v375 = vpop.f32.mrb[0].mxu0
      %v376 = vadd.f32 0.0, %v375
      %v377 = vpop.f32.mrb[0].mxu0
      %v378 = vpop.f32.mrb[0].mxu0
      %v379 = vadd.f32 0.0, %v378
      %v380 = vpop.f32.mrb[0].mxu0
      %381 = vmatprep.mubr.bf16.mxu0 0
      %382 = vmatmul.mubr.bf16.gmra.mrb[0].mxu0 %v328
      %v383 = vpop.f32.mrb[0].mxu0
      %v384 = vadd.f32 0.0, %v383
      %v385 = vpop.f32.mrb[0].mxu0
      %v386 = vpop.f32.mrb[0].mxu0
      %v387 = vadd.f32 0.0, %v386
      %v388 = vpop.f32.mrb[0].mxu0
      %389 = vmatprep.mubr.bf16.mxu0 0
      %390 = vmatmul.mubr.bf16.gmra.mrb[0].mxu0 %v331
      %v391 = vpop.f32.mrb[0].mxu0
      %v392 = vadd.f32 0.0, %v391
      %v393 = vpop.f32.mrb[0].mxu0
      %v394 = vpop.f32.mrb[0].mxu0
      %v395 = vadd.f32 0.0, %v394
      %v396 = vpop.f32.mrb[0].mxu0
      %397 = vdwg.mxu0
      %v398 = vpack.c.bf16 %v371, %v368
      %v399 = vpack.c.bf16 %v379, %v376
      %v400 = vpack.c.bf16 %v387, %v384
      %v401 = vpack.c.bf16 %v395, %v392
      %v406 = vunpack.c.l.b16 %v398
      %v407 = vunpack.c.h.b16 %v398
      %v408 = vunpack.c.l.b16 %v399
      %v409 = vunpack.c.h.b16 %v399
      %v410 = vunpack.c.l.b16 %v400
      %v411 = vunpack.c.h.b16 %v400
      %v412 = vunpack.c.l.b16 %v401
      %v413 = vunpack.c.h.b16 %v401
      %v414 = vpack.c.b16 %v406, %v406
      %v415 = vpack.c.b16 %v407, %v407
      %v416 = vpack.c.b16 %v408, %v408
      %v417 = vpack.c.b16 %v409, %v409
      %v418 = vpack.c.b16 %v410, %v410
      %v419 = vpack.c.b16 %v411, %v411
      %v420 = vpack.c.b16 %v412, %v412
      %v421 = vpack.c.b16 %v413, %v413
      %vm430 = vcmask 257024
      %431 = vst.msk [vmem:[%s259] sm:$0xf] %vm430, %v414
      %432 = vst.msk [vmem:[%s259 + $0x4] sm:$0xf] %vm430, %v415
      %433 = vst.msk [vmem:[%s259 + $0x8] sm:$0xf] %vm430, %v416
      %434 = vst.msk [vmem:[%s259 + $0xc] sm:$0xf] %vm430, %v417
      %435 = vst.msk [vmem:[%s259 + $0x10] sm:$0xf] %vm430, %v418
      %436 = vst.msk [vmem:[%s259 + $0x14] sm:$0xf] %vm430, %v419
      %437 = vst.msk [vmem:[%s259 + $0x18] sm:$0xf] %vm430, %v420
      %438 = vst.msk [vmem:[%s259 + $0x1c] sm:$0xf] %vm430, %v421
      %v439 = vld [vmem:[%s253] sm:$0xff]
      %v440 = vld [vmem:[%s253 + $0x8] sm:$0xff]
      %v441 = vld [vmem:[%s253 + $0x10] sm:$0xff]
      %v442 = vld [vmem:[%s253 + $0x18] sm:$0xff]
      %v443 = vld [vmem:[%s253 + $0x20] sm:$0xff]
      %v444 = vld [vmem:[%s253 + $0x28] sm:$0xff]
      %v445 = vld [vmem:[%s253 + $0x30] sm:$0xff]
      %v446 = vld [vmem:[%s253 + $0x38] sm:$0xff]
      %448 = vset.pattern.permute.xlu0 0
      %449 = vperm.xlu0 %448, %v439
      %v450 = vpop.permute.xlu0 %449
      %453 = vset.pattern.permute.xlu0 0
      %454 = vperm.xlu0 %453, %v440
      %v455 = vpop.permute.xlu0 %454
      %458 = vset.pattern.permute.xlu0 0
      %459 = vperm.xlu0 %458, %v441
      %v460 = vpop.permute.xlu0 %459
      %463 = vset.pattern.permute.xlu0 0
      %464 = vperm.xlu0 %463, %v442
      %v465 = vpop.permute.xlu0 %464
      %468 = vset.pattern.permute.xlu0 0
      %469 = vperm.xlu0 %468, %v443
      %v470 = vpop.permute.xlu0 %469
      %473 = vset.pattern.permute.xlu0 0
      %474 = vperm.xlu0 %473, %v444
      %v475 = vpop.permute.xlu0 %474
      %478 = vset.pattern.permute.xlu0 0
      %479 = vperm.xlu0 %478, %v445
      %v480 = vpop.permute.xlu0 %479
      %483 = vset.pattern.permute.xlu0 0
      %484 = vperm.xlu0 %483, %v446
      %v485 = vpop.permute.xlu0 %484
      %v487 = vmul.f32 %v368, %v450
      %v488 = vmul.f32 %v371, %v455
      %v489 = vmul.f32 %v376, %v460
      %v490 = vmul.f32 %v379, %v465
      %v491 = vmul.f32 %v384, %v470
      %v492 = vmul.f32 %v387, %v475
      %v493 = vmul.f32 %v392, %v480
      %v494 = vmul.f32 %v395, %v485
      %vm495 = vcmask 261120
      %v496 = vsel %vm495, %v487, 0.0
      %v497 = vsel %vm495, %v488, 0.0
      %v498 = vadd.f32 %v496, %v497
      %v499 = vsel %vm495, %v489, 0.0
      %v500 = vadd.f32 %v498, %v499
      %v501 = vsel %vm495, %v490, 0.0
      %v502 = vadd.f32 %v500, %v501
      %v503 = vsel %vm495, %v491, 0.0
      %v504 = vadd.f32 %v502, %v503
      %v505 = vsel %vm495, %v492, 0.0
      %v506 = vadd.f32 %v504, %v505
      %v507 = vsel %vm495, %v493, 0.0
      %v508 = vadd.f32 %v506, %v507
      %v509 = vsel %vm495, %v494, 0.0
      %v510 = vadd.f32 %v508, %v509
      %v511 = vrot.slane %v510, 4
      %v512 = vadd.f32 %v510, %v511
      %v513 = vrot.slane %v512, 2
      %v514 = vadd.f32 %v512, %v513
      %v515 = vrot.slane %v514, 1
      %v516 = vadd.f32 %v514, %v515
      %vm517 = vcmask 253952
      %518 = vst.msk [vmem:[%s263] sm:$0x1] %vm517, %v516
      %v519 = vmul.f32 %v368, %v487
      %v520 = vmul.f32 %v371, %v488
      %v521 = vmul.f32 %v376, %v489
      %v522 = vmul.f32 %v379, %v490
      %v523 = vmul.f32 %v384, %v491
      %v524 = vmul.f32 %v387, %v492
      %v525 = vmul.f32 %v392, %v493
      %v526 = vmul.f32 %v395, %v494
      %v527 = vsel %vm495, %v519, 0.0
      %v528 = vsel %vm495, %v520, 0.0
      %v529 = vadd.f32 %v527, %v528
      %v530 = vsel %vm495, %v521, 0.0
      %v531 = vadd.f32 %v529, %v530
      %v532 = vsel %vm495, %v522, 0.0
      %v533 = vadd.f32 %v531, %v532
      %v534 = vsel %vm495, %v523, 0.0
      %v535 = vadd.f32 %v533, %v534
      %v536 = vsel %vm495, %v524, 0.0
      %v537 = vadd.f32 %v535, %v536
      %v538 = vsel %vm495, %v525, 0.0
      %v539 = vadd.f32 %v537, %v538
      %v540 = vsel %vm495, %v526, 0.0
      %v541 = vadd.f32 %v539, %v540
      %v542 = vrot.slane %v541, 4
      %v543 = vadd.f32 %v541, %v542
      %v544 = vrot.slane %v543, 2
      %v545 = vadd.f32 %v543, %v544
      %v546 = vrot.slane %v545, 1
      %v547 = vadd.f32 %v545, %v546
      %548 = vst.msk [vmem:[%s266] sm:$0x1] %vm517, %v547
      %s549 = smul.u32 8, %s17
      %p550 = scmp.lt.s32.totalorder %s549, 15
      %s551 = scalar_select %p550, %s549, 15
      %s552 = smul.addr %s551, 4
      %s553 = scalar_lea.vmem %s3, %s552
      %p554 = scmp.lt.s32.totalorder %s17, 1
      %s555 = scalar_select %p554, %s17, 1
      %s556 = scalar_lea.vmem %s4, %s555
      %p557 = scmp.lt.s32.totalorder %s17, 1
      %s558 = scalar_select %p557, %s17, 1
      %s559 = scalar_lea.vmem %s5, %s558
      // Predicated region
      $region33: #{stem_conv_forward.6} parent=31 // pred_check
        %p560 = pneg %p108
      $region34: #{stem_conv_forward.6} parent=31 // pred_check_branch
        %562 = sbr.rel (%p560) target = $region36
      $region35: #{stem_conv_forward.6} parent=31 // pred_region
        %s563 = smul.u32 8, %s17
      $region36: #{stem_conv_forward.6} parent=31 // pred_fallthru
        _
      // Predicated region
      $region37: #{stem_conv_forward.6} parent=31 // pred_check
        %p564 = pneg %p134
      $region38: #{stem_conv_forward.6} parent=31 // pred_check_branch
        %566 = sbr.rel (%p564) target = $region40
      $region39: #{stem_conv_forward.6} parent=31 // pred_region
        _
      $region40: #{stem_conv_forward.6} parent=31 // pred_fallthru
        _
      // Predicated region
      $region41: #{stem_conv_forward.6} parent=31 // pred_check
        %p567 = pneg %p160
      $region42: #{stem_conv_forward.6} parent=31 // pred_check_branch
        %569 = sbr.rel (%p567) target = $region44
      $region43: #{stem_conv_forward.6} parent=31 // pred_region
        _
      $region44: #{stem_conv_forward.6} parent=31 // pred_fallthru
        _
    $region32: #{stem_conv_forward.6} parent=5 // pred_fallthru
      _
    %p570 = scmp.le.s32.totalorder 2, %s12
    // Predicated region
    $region45: #{stem_conv_forward.6} parent=5 // pred_check
      %p571 = pneg %p570
    $region46: #{stem_conv_forward.6} parent=5 // pred_check_branch
      %573 = sbr.rel (%p571) target = $region48
    $region47: #{stem_conv_forward.6} parent=5 // pred_region
      %s574 = ssub.s32 %s12, 2
      // Predicated region
      $region49: #{stem_conv_forward.6} parent=47 // pred_check
        %p575 = pneg %p114
      $region50: #{stem_conv_forward.6} parent=47 // pred_check_branch
        %577 = sbr.rel (%p575) target = $region52
      $region51: #{stem_conv_forward.6} parent=47 // pred_region
        %s578 = smul.u32 8, %s18
        %p579 = scmp.lt.s32.totalorder %s578, 15
        %s580 = scalar_select %p579, %s578, 15
        %s581 = smul.addr %s580, 4
        %s582 = scalar_lea.vmem %s3, %s581
      $region52: #{stem_conv_forward.6} parent=47 // pred_fallthru
        _
      // Predicated region
      $region53: #{stem_conv_forward.6} parent=47 // pred_check
        %p583 = pneg %p140
      $region54: #{stem_conv_forward.6} parent=47 // pred_check_branch
        %585 = sbr.rel (%p583) target = $region56
      $region55: #{stem_conv_forward.6} parent=47 // pred_region
        %p586 = scmp.lt.s32.totalorder %s18, 1
        %s587 = scalar_select %p586, %s18, 1
        %s588 = scalar_lea.vmem %s4, %s587
      $region56: #{stem_conv_forward.6} parent=47 // pred_fallthru
        _
      // Predicated region
      $region57: #{stem_conv_forward.6} parent=47 // pred_check
        %p589 = pneg %p166
      $region58: #{stem_conv_forward.6} parent=47 // pred_check_branch
        %591 = sbr.rel (%p589) target = $region60
      $region59: #{stem_conv_forward.6} parent=47 // pred_region
        %p592 = scmp.lt.s32.totalorder %s18, 1
        %s593 = scalar_select %p592, %s18, 1
        %s594 = scalar_lea.vmem %s5, %s593
      $region60: #{stem_conv_forward.6} parent=47 // pred_fallthru
        _
    $region48: #{stem_conv_forward.6} parent=5 // pred_fallthru
      _
  $region6: #{stem_conv_forward.6} parent=0 // loop_footer
    %s16 = sadd.s32 1, %s12
  $region7: #{stem_conv_forward.6} parent=0 // loop_footer_branch
    %11 = sbr.rel target = $region3
  $region8: #{stem_conv_forward.6} parent=0 // loop_exit
    _

// kernel: stem_conv_forward.7
$region0: #{stem_conv_forward.7}
  #allocation0 [shape = 'u32[]', space=smem, size = 0x4, offset = 0x4, fixed_abs, tag = 'smem constant byte address 0x4 - core index']
  #allocation1 [shape = 'u32[144,128]{1,0:T(1,128)}', space=vmem, size = 0x12000, scoped, tag = 'internal scratch']
  %s0 = inlined_call_operand.vmem [shape: bf16[128,32], index: 0, kind: input, shape index: {}, may-alias: {0,3}]
  %s1 = inlined_call_operand.vmem [shape: f32[1,32], index: 1, kind: input, shape index: {}]
  %s2 = inlined_call_operand.vmem [shape: f32[1,32], index: 2, kind: input, shape index: {}]
  %s3 = inlined_call_operand.vmem [shape: bf16[128,32], index: 3, kind: output, shape index: {}, may-alias: {0,3}]
  %s4 = sld [smem:[#allocation0]]
  $region45: #{stem_conv_forward.7} parent=0
    _
  %s6 = ssub.s32 1, %s4
  %s7 = scalar_select 0, %s6, %s4
  loop: start=0, step=1, limit=4
  $region2: #{stem_conv_forward.7} parent=0 // loop_pre_header
    _
  $region3: #{stem_conv_forward.7} parent=0 // loop_header
    %s9 = sphi 0, %s13
    %p10 = scmp.ge.s32.totalorder %s9, 4
    %s19 = sphi 0, %s21
    %s22 = sphi 0, %s19
    %s23 = sphi 0, %s22
    %s39 = sphi 0, %s23
    %s43 = sphi 0, %s43
    %s45 = sphi 0, %s43
    %s46 = sphi 0, %s45
    %s60 = sphi 0, %s46
    %s64 = sphi 0, %s64
    %s66 = sphi 0, %s64
    %s67 = sphi 0, %s66
    %s81 = sphi 0, %s67
    %s87 = sphi 0, %s89
    %s90 = sphi 0, %s87
    %s91 = sphi 0, %s90
    %s107 = sphi 0, %s91
  $region4: #{stem_conv_forward.7} parent=0 // loop_header_branch
    %12 = sbr.rel (%p10) target = $region8
  $region5: #{stem_conv_forward.7} parent=0 // loop_body
    %s14 = ssub.s32 %s9, 1
    %s15 = ssub.s32 %s9, 2
    %s16 = sadd.s32 %s9, 1
    %s17 = ssub.s32 %s9, %s16
    %p18 = scmp.eq.s32.totalorder %s17, 0
    %s20 = sadd.s32 %s19, 1
    %s21 = scalar_select %p18, %s19, %s20
    %p24 = pneg %p18
    %p25 = scmp.eq.s32.totalorder %s9, 1
    %p26 = por %p24, %p25
    %p27 = scmp.ne.s32.totalorder %s19, %s22
    %p28 = scmp.eq.s32.totalorder %s9, 0
    %p29 = por %p27, %p28
    %p30 = scmp.ne.s32.totalorder %s19, %s22
    %p31 = scmp.eq.s32.totalorder %s14, 1
    %p32 = por %p30, %p31
    %p33 = scmp.ne.s32.totalorder %s22, %s23
    %p34 = scmp.eq.s32.totalorder %s14, 0
    %p35 = por %p33, %p34
    %p36 = scmp.ne.s32.totalorder %s22, %s23
    %p37 = scmp.eq.s32.totalorder %s15, 1
    %p38 = por %p36, %p37
    %p40 = scmp.ne.s32.totalorder %s23, %s39
    %p41 = scmp.eq.s32.totalorder %s15, 0
    %p42 = por %p40, %p41
    %s44 = sadd.s32 %s43, 1
    %p47 = scmp.eq.s32.totalorder %s9, 1
    %p48 = scmp.ne.s32.totalorder %s43, %s45
    %p49 = scmp.eq.s32.totalorder %s9, 0
    %p50 = por %p48, %p49
    %p51 = scmp.ne.s32.totalorder %s43, %s45
    %p52 = scmp.eq.s32.totalorder %s14, 1
    %p53 = por %p51, %p52
    %p54 = scmp.ne.s32.totalorder %s45, %s46
    %p55 = scmp.eq.s32.totalorder %s14, 0
    %p56 = por %p54, %p55
    %p57 = scmp.ne.s32.totalorder %s45, %s46
    %p58 = scmp.eq.s32.totalorder %s15, 1
    %p59 = por %p57, %p58
    %p61 = scmp.ne.s32.totalorder %s46, %s60
    %p62 = scmp.eq.s32.totalorder %s15, 0
    %p63 = por %p61, %p62
    %s65 = sadd.s32 %s64, 1
    %p68 = scmp.eq.s32.totalorder %s9, 1
    %p69 = scmp.ne.s32.totalorder %s64, %s66
    %p70 = scmp.eq.s32.totalorder %s9, 0
    %p71 = por %p69, %p70
    %p72 = scmp.ne.s32.totalorder %s64, %s66
    %p73 = scmp.eq.s32.totalorder %s14, 1
    %p74 = por %p72, %p73
    %p75 = scmp.ne.s32.totalorder %s66, %s67
    %p76 = scmp.eq.s32.totalorder %s14, 0
    %p77 = por %p75, %p76
    %p78 = scmp.ne.s32.totalorder %s66, %s67
    %p79 = scmp.eq.s32.totalorder %s15, 1
    %p80 = por %p78, %p79
    %p82 = scmp.ne.s32.totalorder %s67, %s81
    %p83 = scmp.eq.s32.totalorder %s15, 0
    %p84 = por %p82, %p83
    %s85 = ssub.s32 %s9, %s16
    %p86 = scmp.eq.s32.totalorder %s85, 0
    %s88 = sadd.s32 %s87, 1
    %s89 = scalar_select %p86, %s87, %s88
    %p92 = pneg %p86
    %p93 = scmp.eq.s32.totalorder %s9, 1
    %p94 = por %p92, %p93
    %p95 = scmp.ne.s32.totalorder %s87, %s90
    %p96 = scmp.eq.s32.totalorder %s9, 0
    %p97 = por %p95, %p96
    %p98 = scmp.ne.s32.totalorder %s87, %s90
    %p99 = scmp.eq.s32.totalorder %s14, 1
    %p100 = por %p98, %p99
    %p101 = scmp.ne.s32.totalorder %s90, %s91
    %p102 = scmp.eq.s32.totalorder %s14, 0
    %p103 = por %p101, %p102
    %p104 = scmp.ne.s32.totalorder %s90, %s91
    %p105 = scmp.eq.s32.totalorder %s15, 1
    %p106 = por %p104, %p105
    %p108 = scmp.ne.s32.totalorder %s91, %s107
    %p109 = scmp.eq.s32.totalorder %s15, 0
    %p110 = por %p108, %p109
    %p111 = scmp.le.s32.totalorder 1, %s9
    %p112 = scmp.lt.s32.totalorder %s9, 3
    %p113 = pnand %p111, %p112
    %p114 = pneg %p113
    // Predicated region
    $region9: #{stem_conv_forward.7} parent=5 // pred_check
      _
    $region10: #{stem_conv_forward.7} parent=5 // pred_check_branch
      %116 = sbr.rel (%p113) target = $region12
    $region11: #{stem_conv_forward.7} parent=5 // pred_region
      %s117 = ssub.s32 %s9, 1
      // Predicated region
      $region13: #{stem_conv_forward.7} parent=11 // pred_check
        %p118 = pneg %p56
      $region14: #{stem_conv_forward.7} parent=11 // pred_check_branch
        %120 = sbr.rel (%p118) target = $region16
      $region15: #{stem_conv_forward.7} parent=11 // pred_region
        _
      $region16: #{stem_conv_forward.7} parent=11 // pred_fallthru
        _
      // Predicated region
      $region17: #{stem_conv_forward.7} parent=11 // pred_check
        %p121 = pneg %p77
      $region18: #{stem_conv_forward.7} parent=11 // pred_check_branch
        %123 = sbr.rel (%p121) target = $region20
      $region19: #{stem_conv_forward.7} parent=11 // pred_region
        _
      $region20: #{stem_conv_forward.7} parent=11 // pred_fallthru
        _
    $region12: #{stem_conv_forward.7} parent=5 // pred_fallthru
      _
    %p124 = scmp.lt.s32.totalorder %s9, 2
    // Predicated region
    $region21: #{stem_conv_forward.7} parent=5 // pred_check
      %p125 = pneg %p124
    $region22: #{stem_conv_forward.7} parent=5 // pred_check_branch
      %127 = sbr.rel (%p125) target = $region24
    $region23: #{stem_conv_forward.7} parent=5 // pred_region
      // Predicated region
      $region25: #{stem_conv_forward.7} parent=23 // pred_check
        %p128 = pneg %p29
      $region26: #{stem_conv_forward.7} parent=23 // pred_check_branch
        %130 = sbr.rel (%p128) target = $region28
      $region27: #{stem_conv_forward.7} parent=23 // pred_region
        %s131 = smul.u32 8, %s9
        %p132 = scmp.lt.s32.totalorder %s131, 15
        %s133 = scalar_select %p132, %s131, 15
        %s134 = smul.addr %s133, 4
        %s135 = scalar_lea.vmem %s0, %s134
        %s136 = smul.u32 8, %s9
      $region28: #{stem_conv_forward.7} parent=23 // pred_fallthru
        _
    $region24: #{stem_conv_forward.7} parent=5 // pred_fallthru
      _
    %p137 = scmp.le.s32.totalorder 1, %s9
    %p138 = scmp.lt.s32.totalorder %s9, 3
    %p139 = pnand %p137, %p138
    %p140 = pneg %p139
    // Predicated region
    $region29: #{stem_conv_forward.7} parent=5 // pred_check
      _
    $region30: #{stem_conv_forward.7} parent=5 // pred_check_branch
      %142 = sbr.rel (%p139) target = $region32
    $region31: #{stem_conv_forward.7} parent=5 // pred_region
      %s143 = ssub.s32 %s9, 1
      %s144 = smul.u32 8, %s14
      %p145 = scmp.lt.s32.totalorder %s144, 15
      %s146 = scalar_select %p145, %s144, 15
      %s147 = smul.addr %s146, 4
      %s148 = scalar_lea.vmem %s0, %s147
      %p149 = pneg %p35
      %p150 = pneg %p32
      %p151 = pneg %p56
      %p152 = pneg %p53
      %p153 = pneg %p77
      %p154 = pneg %p74
      %p155 = pneg %p103
      %p156 = pneg %p100
      %s157 = smul.u32 8, %s14
      %p158 = scmp.lt.s32.totalorder %s157, 15
      %s159 = scalar_select %p158, %s157, 15
      %s160 = smul.addr %s159, 4
      %s161 = scalar_lea.vmem %s3, %s160
      %s162 = smul.u32 8, %s14
      %p163 = scmp.lt.s32.totalorder %s162, 15
      %s164 = scalar_select %p163, %s162, 15
      %s165 = smul.addr %s164, 4
      %s166 = scalar_lea.vmem %s0, %s165
      %s167 = smul.u32 8, %s14
      %s168 = smul.u32 8, %s14
      %p169 = scmp.lt.s32.totalorder %s168, 15
      %s170 = scalar_select %p169, %s168, 15
      %s171 = smul.addr %s170, 4
      %s172 = scalar_lea.vmem %s3, %s171
      %s173 = smul.u32 8, %s14
      %v174 = vld [vmem:[%s166] sm:$0xf]
      %v175 = vld [vmem:[%s166 + $0x4] sm:$0xf]
      %v176 = vld [vmem:[%s166 + $0x8] sm:$0xf]
      %v177 = vld [vmem:[%s166 + $0xc] sm:$0xf]
      %v178 = vld [vmem:[%s166 + $0x10] sm:$0xf]
      %v179 = vld [vmem:[%s166 + $0x14] sm:$0xf]
      %v180 = vld [vmem:[%s166 + $0x18] sm:$0xf]
      %v181 = vld [vmem:[%s166 + $0x1c] sm:$0xf]
      %v182 = vunpack.c.l.bf16 %v174
      %v183 = vunpack.c.l.bf16 %v175
      %v184 = vunpack.c.l.bf16 %v176
      %v185 = vunpack.c.l.bf16 %v177
      %v186 = vunpack.c.l.bf16 %v178
      %v187 = vunpack.c.l.bf16 %v179
      %v188 = vunpack.c.l.bf16 %v180
      %v189 = vunpack.c.l.bf16 %v181
      %v190 = vld [vmem:[%s1] sm:$0x1]
      %v192 = vlaneseq
      %v193 = vshrl.u32 %v192, 7
      %v194 = vsub.s32 0, %v193
      %v195 = vrot.slane %v190, %v194
      %v197 = vmul.f32 %v182, %v195
      %v198 = vmul.f32 %v183, %v195
      %v199 = vmul.f32 %v184, %v195
      %v200 = vmul.f32 %v185, %v195
      %v201 = vmul.f32 %v186, %v195
      %v202 = vmul.f32 %v187, %v195
      %v203 = vmul.f32 %v188, %v195
      %v204 = vmul.f32 %v189, %v195
      %v205 = vld [vmem:[%s2] sm:$0x1]
      %v207 = vlaneseq
      %v208 = vshrl.u32 %v207, 7
      %v209 = vsub.s32 0, %v208
      %v210 = vrot.slane %v205, %v209
      %v212 = vadd.f32 %v197, %v210
      %v213 = vadd.f32 %v198, %v210
      %v214 = vadd.f32 %v199, %v210
      %v215 = vadd.f32 %v200, %v210
      %v216 = vadd.f32 %v201, %v210
      %v217 = vadd.f32 %v202, %v210
      %v218 = vadd.f32 %v203, %v210
      %v219 = vadd.f32 %v204, %v210
      %v220 = vmax.f32 %v212, 0.0
      %v221 = vmax.f32 %v213, 0.0
      %v222 = vmax.f32 %v214, 0.0
      %v223 = vmax.f32 %v215, 0.0
      %v224 = vmax.f32 %v216, 0.0
      %v225 = vmax.f32 %v217, 0.0
      %v226 = vmax.f32 %v218, 0.0
      %v227 = vmax.f32 %v219, 0.0
      %v228 = vpack.c.bf16 %v221, %v220
      %v229 = vpack.c.bf16 %v223, %v222
      %v230 = vpack.c.bf16 %v225, %v224
      %v231 = vpack.c.bf16 %v227, %v226
      %v236 = vunpack.c.l.b16 %v228
      %v237 = vunpack.c.h.b16 %v228
      %v238 = vunpack.c.l.b16 %v229
      %v239 = vunpack.c.h.b16 %v229
      %v240 = vunpack.c.l.b16 %v230
      %v241 = vunpack.c.h.b16 %v230
      %v242 = vunpack.c.l.b16 %v231
      %v243 = vunpack.c.h.b16 %v231
      %v244 = vpack.c.b16 %v236, %v236
      %v245 = vpack.c.b16 %v237, %v237
      %v246 = vpack.c.b16 %v238, %v238
      %v247 = vpack.c.b16 %v239, %v239
      %v248 = vpack.c.b16 %v240, %v240
      %v249 = vpack.c.b16 %v241, %v241
      %v250 = vpack.c.b16 %v242, %v242
      %v251 = vpack.c.b16 %v243, %v243
      %vm260 = vcmask 257024
      %261 = vst.msk [vmem:[%s172] sm:$0xf] %vm260, %v244
      %262 = vst.msk [vmem:[%s172 + $0x4] sm:$0xf] %vm260, %v245
      %263 = vst.msk [vmem:[%s172 + $0x8] sm:$0xf] %vm260, %v246
      %264 = vst.msk [vmem:[%s172 + $0xc] sm:$0xf] %vm260, %v247
      %265 = vst.msk [vmem:[%s172 + $0x10] sm:$0xf] %vm260, %v248
      %266 = vst.msk [vmem:[%s172 + $0x14] sm:$0xf] %vm260, %v249
      %267 = vst.msk [vmem:[%s172 + $0x18] sm:$0xf] %vm260, %v250
      %268 = vst.msk [vmem:[%s172 + $0x1c] sm:$0xf] %vm260, %v251
      %s269 = smul.u32 8, %s14
      %p270 = scmp.lt.s32.totalorder %s269, 15
      %s271 = scalar_select %p270, %s269, 15
      %s272 = smul.addr %s271, 4
      %s273 = scalar_lea.vmem %s3, %s272
      // Predicated region
      $region33: #{stem_conv_forward.7} parent=31 // pred_check
        %p274 = pneg %p100
      $region34: #{stem_conv_forward.7} parent=31 // pred_check_branch
        %276 = sbr.rel (%p274) target = $region36
      $region35: #{stem_conv_forward.7} parent=31 // pred_region
        %s277 = smul.u32 8, %s14
      $region36: #{stem_conv_forward.7} parent=31 // pred_fallthru
        _
    $region32: #{stem_conv_forward.7} parent=5 // pred_fallthru
      _
    %p278 = scmp.le.s32.totalorder 2, %s9
    // Predicated region
    $region37: #{stem_conv_forward.7} parent=5 // pred_check
      %p279 = pneg %p278
    $region38: #{stem_conv_forward.7} parent=5 // pred_check_branch
      %281 = sbr.rel (%p279) target = $region40
    $region39: #{stem_conv_forward.7} parent=5 // pred_region
      %s282 = ssub.s32 %s9, 2
      // Predicated region
      $region41: #{stem_conv_forward.7} parent=39 // pred_check
        %p283 = pneg %p106
      $region42: #{stem_conv_forward.7} parent=39 // pred_check_branch
        %285 = sbr.rel (%p283) target = $region44
      $region43: #{stem_conv_forward.7} parent=39 // pred_region
        %s286 = smul.u32 8, %s15
        %p287 = scmp.lt.s32.totalorder %s286, 15
        %s288 = scalar_select %p287, %s286, 15
        %s289 = smul.addr %s288, 4
        %s290 = scalar_lea.vmem %s3, %s289
      $region44: #{stem_conv_forward.7} parent=39 // pred_fallthru
        _
    $region40: #{stem_conv_forward.7} parent=5 // pred_fallthru
      _
  $region6: #{stem_conv_forward.7} parent=0 // loop_footer
    %s13 = sadd.s32 1, %s9
  $region7: #{stem_conv_forward.7} parent=0 // loop_footer_branch
    %8 = sbr.rel target = $region3
  $region8: #{stem_conv_forward.7} parent=0 // loop_exit
    _

// kernel: stem_conv_forward.9
$region0: #{stem_conv_forward.9}
  #allocation0 [shape = 'u32[]', space=smem, size = 0x4, offset = 0x4, fixed_abs, tag = 'smem constant byte address 0x4 - core index']
  #allocation1 [shape = 'u32[144,128]{1,0:T(1,128)}', space=vmem, size = 0x12000, scoped, tag = 'internal scratch']
  %s0 = inlined_call_operand.vmem [shape: bf16[224,32], index: 0, kind: input, shape index: {}, may-alias: {0,3}]
  %s1 = inlined_call_operand.vmem [shape: f32[1,32], index: 1, kind: input, shape index: {}]
  %s2 = inlined_call_operand.vmem [shape: f32[1,32], index: 2, kind: input, shape index: {}]
  %s3 = inlined_call_operand.vmem [shape: bf16[224,32], index: 3, kind: output, shape index: {}, may-alias: {0,3}]
  %s4 = sld [smem:[#allocation0]]
  $region45: #{stem_conv_forward.9} parent=0
    _
  %s6 = ssub.s32 1, %s4
  %s7 = scalar_select 0, %s6, %s4
  loop: start=0, step=1, limit=4
  $region2: #{stem_conv_forward.9} parent=0 // loop_pre_header
    _
  $region3: #{stem_conv_forward.9} parent=0 // loop_header
    %s9 = sphi 0, %s13
    %p10 = scmp.ge.s32.totalorder %s9, 4
    %s19 = sphi 0, %s21
    %s22 = sphi 0, %s19
    %s23 = sphi 0, %s22
    %s39 = sphi 0, %s23
    %s43 = sphi 0, %s43
    %s45 = sphi 0, %s43
    %s46 = sphi 0, %s45
    %s60 = sphi 0, %s46
    %s64 = sphi 0, %s64
    %s66 = sphi 0, %s64
    %s67 = sphi 0, %s66
    %s81 = sphi 0, %s67
    %s87 = sphi 0, %s89
    %s90 = sphi 0, %s87
    %s91 = sphi 0, %s90
    %s107 = sphi 0, %s91
  $region4: #{stem_conv_forward.9} parent=0 // loop_header_branch
    %12 = sbr.rel (%p10) target = $region8
  $region5: #{stem_conv_forward.9} parent=0 // loop_body
    %s14 = ssub.s32 %s9, 1
    %s15 = ssub.s32 %s9, 2
    %s16 = sadd.s32 %s9, 1
    %s17 = ssub.s32 %s9, %s16
    %p18 = scmp.eq.s32.totalorder %s17, 0
    %s20 = sadd.s32 %s19, 1
    %s21 = scalar_select %p18, %s19, %s20
    %p24 = pneg %p18
    %p25 = scmp.eq.s32.totalorder %s9, 1
    %p26 = por %p24, %p25
    %p27 = scmp.ne.s32.totalorder %s19, %s22
    %p28 = scmp.eq.s32.totalorder %s9, 0
    %p29 = por %p27, %p28
    %p30 = scmp.ne.s32.totalorder %s19, %s22
    %p31 = scmp.eq.s32.totalorder %s14, 1
    %p32 = por %p30, %p31
    %p33 = scmp.ne.s32.totalorder %s22, %s23
    %p34 = scmp.eq.s32.totalorder %s14, 0
    %p35 = por %p33, %p34
    %p36 = scmp.ne.s32.totalorder %s22, %s23
    %p37 = scmp.eq.s32.totalorder %s15, 1
    %p38 = por %p36, %p37
    %p40 = scmp.ne.s32.totalorder %s23, %s39
    %p41 = scmp.eq.s32.totalorder %s15, 0
    %p42 = por %p40, %p41
    %s44 = sadd.s32 %s43, 1
    %p47 = scmp.eq.s32.totalorder %s9, 1
    %p48 = scmp.ne.s32.totalorder %s43, %s45
    %p49 = scmp.eq.s32.totalorder %s9, 0
    %p50 = por %p48, %p49
    %p51 = scmp.ne.s32.totalorder %s43, %s45
    %p52 = scmp.eq.s32.totalorder %s14, 1
    %p53 = por %p51, %p52
    %p54 = scmp.ne.s32.totalorder %s45, %s46
    %p55 = scmp.eq.s32.totalorder %s14, 0
    %p56 = por %p54, %p55
    %p57 = scmp.ne.s32.totalorder %s45, %s46
    %p58 = scmp.eq.s32.totalorder %s15, 1
    %p59 = por %p57, %p58
    %p61 = scmp.ne.s32.totalorder %s46, %s60
    %p62 = scmp.eq.s32.totalorder %s15, 0
    %p63 = por %p61, %p62
    %s65 = sadd.s32 %s64, 1
    %p68 = scmp.eq.s32.totalorder %s9, 1
    %p69 = scmp.ne.s32.totalorder %s64, %s66
    %p70 = scmp.eq.s32.totalorder %s9, 0
    %p71 = por %p69, %p70
    %p72 = scmp.ne.s32.totalorder %s64, %s66
    %p73 = scmp.eq.s32.totalorder %s14, 1
    %p74 = por %p72, %p73
    %p75 = scmp.ne.s32.totalorder %s66, %s67
    %p76 = scmp.eq.s32.totalorder %s14, 0
    %p77 = por %p75, %p76
    %p78 = scmp.ne.s32.totalorder %s66, %s67
    %p79 = scmp.eq.s32.totalorder %s15, 1
    %p80 = por %p78, %p79
    %p82 = scmp.ne.s32.totalorder %s67, %s81
    %p83 = scmp.eq.s32.totalorder %s15, 0
    %p84 = por %p82, %p83
    %s85 = ssub.s32 %s9, %s16
    %p86 = scmp.eq.s32.totalorder %s85, 0
    %s88 = sadd.s32 %s87, 1
    %s89 = scalar_select %p86, %s87, %s88
    %p92 = pneg %p86
    %p93 = scmp.eq.s32.totalorder %s9, 1
    %p94 = por %p92, %p93
    %p95 = scmp.ne.s32.totalorder %s87, %s90
    %p96 = scmp.eq.s32.totalorder %s9, 0
    %p97 = por %p95, %p96
    %p98 = scmp.ne.s32.totalorder %s87, %s90
    %p99 = scmp.eq.s32.totalorder %s14, 1
    %p100 = por %p98, %p99
    %p101 = scmp.ne.s32.totalorder %s90, %s91
    %p102 = scmp.eq.s32.totalorder %s14, 0
    %p103 = por %p101, %p102
    %p104 = scmp.ne.s32.totalorder %s90, %s91
    %p105 = scmp.eq.s32.totalorder %s15, 1
    %p106 = por %p104, %p105
    %p108 = scmp.ne.s32.totalorder %s91, %s107
    %p109 = scmp.eq.s32.totalorder %s15, 0
    %p110 = por %p108, %p109
    %p111 = scmp.le.s32.totalorder 1, %s9
    %p112 = scmp.lt.s32.totalorder %s9, 3
    %p113 = pnand %p111, %p112
    %p114 = pneg %p113
    // Predicated region
    $region9: #{stem_conv_forward.9} parent=5 // pred_check
      _
    $region10: #{stem_conv_forward.9} parent=5 // pred_check_branch
      %116 = sbr.rel (%p113) target = $region12
    $region11: #{stem_conv_forward.9} parent=5 // pred_region
      %s117 = ssub.s32 %s9, 1
      // Predicated region
      $region13: #{stem_conv_forward.9} parent=11 // pred_check
        %p118 = pneg %p56
      $region14: #{stem_conv_forward.9} parent=11 // pred_check_branch
        %120 = sbr.rel (%p118) target = $region16
      $region15: #{stem_conv_forward.9} parent=11 // pred_region
        _
      $region16: #{stem_conv_forward.9} parent=11 // pred_fallthru
        _
      // Predicated region
      $region17: #{stem_conv_forward.9} parent=11 // pred_check
        %p121 = pneg %p77
      $region18: #{stem_conv_forward.9} parent=11 // pred_check_branch
        %123 = sbr.rel (%p121) target = $region20
      $region19: #{stem_conv_forward.9} parent=11 // pred_region
        _
      $region20: #{stem_conv_forward.9} parent=11 // pred_fallthru
        _
    $region12: #{stem_conv_forward.9} parent=5 // pred_fallthru
      _
    %p124 = scmp.lt.s32.totalorder %s9, 2
    // Predicated region
    $region21: #{stem_conv_forward.9} parent=5 // pred_check
      %p125 = pneg %p124
    $region22: #{stem_conv_forward.9} parent=5 // pred_check_branch
      %127 = sbr.rel (%p125) target = $region24
    $region23: #{stem_conv_forward.9} parent=5 // pred_region
      // Predicated region
      $region25: #{stem_conv_forward.9} parent=23 // pred_check
        %p128 = pneg %p29
      $region26: #{stem_conv_forward.9} parent=23 // pred_check_branch
        %130 = sbr.rel (%p128) target = $region28
      $region27: #{stem_conv_forward.9} parent=23 // pred_region
        %s131 = smul.u32 14, %s9
        %p132 = scmp.lt.s32.totalorder %s131, 27
        %s133 = scalar_select %p132, %s131, 27
        %s134 = smul.addr %s133, 4
        %s135 = scalar_lea.vmem %s0, %s134
        %s136 = smul.u32 14, %s9
      $region28: #{stem_conv_forward.9} parent=23 // pred_fallthru
        _
    $region24: #{stem_conv_forward.9} parent=5 // pred_fallthru
      _
    %p137 = scmp.le.s32.totalorder 1, %s9
    %p138 = scmp.lt.s32.totalorder %s9, 3
    %p139 = pnand %p137, %p138
    %p140 = pneg %p139
    // Predicated region
    $region29: #{stem_conv_forward.9} parent=5 // pred_check
      _
    $region30: #{stem_conv_forward.9} parent=5 // pred_check_branch
      %142 = sbr.rel (%p139) target = $region32
    $region31: #{stem_conv_forward.9} parent=5 // pred_region
      %s143 = ssub.s32 %s9, 1
      %s144 = smul.u32 14, %s14
      %p145 = scmp.lt.s32.totalorder %s144, 27
      %s146 = scalar_select %p145, %s144, 27
      %s147 = smul.addr %s146, 4
      %s148 = scalar_lea.vmem %s0, %s147
      %p149 = pneg %p35
      %p150 = pneg %p32
      %p151 = pneg %p56
      %p152 = pneg %p53
      %p153 = pneg %p77
      %p154 = pneg %p74
      %p155 = pneg %p103
      %p156 = pneg %p100
      %s157 = smul.u32 14, %s14
      %p158 = scmp.lt.s32.totalorder %s157, 27
      %s159 = scalar_select %p158, %s157, 27
      %s160 = smul.addr %s159, 4
      %s161 = scalar_lea.vmem %s3, %s160
      %s162 = smul.u32 14, %s14
      %p163 = scmp.lt.s32.totalorder %s162, 27
      %s164 = scalar_select %p163, %s162, 27
      %s165 = smul.addr %s164, 4
      %s166 = scalar_lea.vmem %s0, %s165
      %s167 = smul.u32 14, %s14
      %s168 = smul.u32 14, %s14
      %p169 = scmp.lt.s32.totalorder %s168, 27
      %s170 = scalar_select %p169, %s168, 27
      %s171 = smul.addr %s170, 4
      %s172 = scalar_lea.vmem %s3, %s171
      %s173 = smul.u32 14, %s14
      %v174 = vld [vmem:[%s166] sm:$0xf]
      %v175 = vld [vmem:[%s166 + $0x4] sm:$0xf]
      %v176 = vld [vmem:[%s166 + $0x8] sm:$0xf]
      %v177 = vld [vmem:[%s166 + $0xc] sm:$0xf]
      %v178 = vld [vmem:[%s166 + $0x10] sm:$0xf]
      %v179 = vld [vmem:[%s166 + $0x14] sm:$0xf]
      %v180 = vld [vmem:[%s166 + $0x18] sm:$0xf]
      %v181 = vld [vmem:[%s166 + $0x1c] sm:$0xf]
      %v182 = vld [vmem:[%s166 + $0x20] sm:$0xf]
      %v183 = vld [vmem:[%s166 + $0x24] sm:$0xf]
      %v184 = vld [vmem:[%s166 + $0x28] sm:$0xf]
      %v185 = vld [vmem:[%s166 + $0x2c] sm:$0xf]
      %v186 = vld [vmem:[%s166 + $0x30] sm:$0xf]
      %v187 = vld [vmem:[%s166 + $0x34] sm:$0xf]
      %v188 = vunpack.c.l.bf16 %v174
      %v189 = vunpack.c.l.bf16 %v175
      %v190 = vunpack.c.l.bf16 %v176
      %v191 = vunpack.c.l.bf16 %v177
      %v192 = vunpack.c.l.bf16 %v178
      %v193 = vunpack.c.l.bf16 %v179
      %v194 = vunpack.c.l.bf16 %v180
      %v195 = vunpack.c.l.bf16 %v181
      %v196 = vunpack.c.l.bf16 %v182
      %v197 = vunpack.c.l.bf16 %v183
      %v198 = vunpack.c.l.bf16 %v184
      %v199 = vunpack.c.l.bf16 %v185
      %v200 = vunpack.c.l.bf16 %v186
      %v201 = vunpack.c.l.bf16 %v187
      %v202 = vld [vmem:[%s1] sm:$0x1]
      %v204 = vlaneseq
      %v205 = vshrl.u32 %v204, 7
      %v206 = vsub.s32 0, %v205
      %v207 = vrot.slane %v202, %v206
      %v209 = vmul.f32 %v188, %v207
      %v210 = vmul.f32 %v189, %v207
      %v211 = vmul.f32 %v190, %v207
      %v212 = vmul.f32 %v191, %v207
      %v213 = vmul.f32 %v192, %v207
      %v214 = vmul.f32 %v193, %v207
      %v215 = vmul.f32 %v194, %v207
      %v216 = vmul.f32 %v195, %v207
      %v217 = vmul.f32 %v196, %v207
      %v218 = vmul.f32 %v197, %v207
      %v219 = vmul.f32 %v198, %v207
      %v220 = vmul.f32 %v199, %v207
      %v221 = vmul.f32 %v200, %v207
      %v222 = vmul.f32 %v201, %v207
      %v223 = vld [vmem:[%s2] sm:$0x1]
      %v225 = vlaneseq
      %v226 = vshrl.u32 %v225, 7
      %v227 = vsub.s32 0, %v226
      %v228 = vrot.slane %v223, %v227
      %v230 = vadd.f32 %v209, %v228
      %v231 = vadd.f32 %v210, %v228
      %v232 = vadd.f32 %v211, %v228
      %v233 = vadd.f32 %v212, %v228
      %v234 = vadd.f32 %v213, %v228
      %v235 = vadd.f32 %v214, %v228
      %v236 = vadd.f32 %v215, %v228
      %v237 = vadd.f32 %v216, %v228
      %v238 = vadd.f32 %v217, %v228
      %v239 = vadd.f32 %v218, %v228
      %v240 = vadd.f32 %v219, %v228
      %v241 = vadd.f32 %v220, %v228
      %v242 = vadd.f32 %v221, %v228
      %v243 = vadd.f32 %v222, %v228
      %v244 = vmax.f32 %v230, 0.0
      %v245 = vmax.f32 %v231, 0.0
      %v246 = vmax.f32 %v232, 0.0
      %v247 = vmax.f32 %v233, 0.0
      %v248 = vmax.f32 %v234, 0.0
      %v249 = vmax.f32 %v235, 0.0
      %v250 = vmax.f32 %v236, 0.0
      %v251 = vmax.f32 %v237, 0.0
      %v252 = vmax.f32 %v238, 0.0
      %v253 = vmax.f32 %v239, 0.0
      %v254 = vmax.f32 %v240, 0.0
      %v255 = vmax.f32 %v241, 0.0
      %v256 = vmax.f32 %v242, 0.0
      %v257 = vmax.f32 %v243, 0.0
      %v258 = vpack.c.bf16 %v245, %v244
      %v259 = vpack.c.bf16 %v247, %v246
      %v260 = vpack.c.bf16 %v249, %v248
      %v261 = vpack.c.bf16 %v251, %v250
      %v262 = vpack.c.bf16 %v253, %v252
      %v263 = vpack.c.bf16 %v255, %v254
      %v264 = vpack.c.bf16 %v257, %v256
      %v272 = vunpack.c.l.b16 %v258
      %v273 = vunpack.c.h.b16 %v258
      %v274 = vunpack.c.l.b16 %v259
      %v275 = vunpack.c.h.b16 %v259
      %v276 = vunpack.c.l.b16 %v260
      %v277 = vunpack.c.h.b16 %v260
      %v278 = vunpack.c.l.b16 %v261
      %v279 = vunpack.c.h.b16 %v261
      %v280 = vunpack.c.l.b16 %v262
      %v281 = vunpack.c.h.b16 %v262
      %v282 = vunpack.c.l.b16 %v263
      %v283 = vunpack.c.h.b16 %v263
      %v284 = vunpack.c.l.b16 %v264
      %v285 = vunpack.c.h.b16 %v264
      %v286 = vpack.c.b16 %v272, %v272
      %v287 = vpack.c.b16 %v273, %v273
      %v288 = vpack.c.b16 %v274, %v274
      %v289 = vpack.c.b16 %v275, %v275
      %v290 = vpack.c.b16 %v276, %v276
      %v291 = vpack.c.b16 %v277, %v277
      %v292 = vpack.c.b16 %v278, %v278
      %v293 = vpack.c.b16 %v279, %v279
      %v294 = vpack.c.b16 %v280, %v280
      %v295 = vpack.c.b16 %v281, %v281
      %v296 = vpack.c.b16 %v282, %v282
      %v297 = vpack.c.b16 %v283, %v283
      %v298 = vpack.c.b16 %v284, %v284
      %v299 = vpack.c.b16 %v285, %v285
      %vm314 = vcmask 257024
      %315 = vst.msk [vmem:[%s172] sm:$0xf] %vm314, %v286
      %316 = vst.msk [vmem:[%s172 + $0x4] sm:$0xf] %vm314, %v287
      %317 = vst.msk [vmem:[%s172 + $0x8] sm:$0xf] %vm314, %v288
      %318 = vst.msk [vmem:[%s172 + $0xc] sm:$0xf] %vm314, %v289
      %319 = vst.msk [vmem:[%s172 + $0x10] sm:$0xf] %vm314, %v290
      %320 = vst.msk [vmem:[%s172 + $0x14] sm:$0xf] %vm314, %v291
      %321 = vst.msk [vmem:[%s172 + $0x18] sm:$0xf] %vm314, %v292
      %322 = vst.msk [vmem:[%s172 + $0x1c] sm:$0xf] %vm314, %v293
      %323 = vst.msk [vmem:[%s172 + $0x20] sm:$0xf] %vm314, %v294
      %324 = vst.msk [vmem:[%s172 + $0x24] sm:$0xf] %vm314, %v295
      %325 = vst.msk [vmem:[%s172 + $0x28] sm:$0xf] %vm314, %v296
      %326 = vst.msk [vmem:[%s172 + $0x2c] sm:$0xf] %vm314, %v297
      %327 = vst.msk [vmem:[%s172 + $0x30] sm:$0xf] %vm314, %v298
      %328 = vst.msk [vmem:[%s172 + $0x34] sm:$0xf] %vm314, %v299
      %s329 = smul.u32 14, %s14
      %p330 = scmp.lt.s32.totalorder %s329, 27
      %s331 = scalar_select %p330, %s329, 27
      %s332 = smul.addr %s331, 4
      %s333 = scalar_lea.vmem %s3, %s332
      // Predicated region
      $region33: #{stem_conv_forward.9} parent=31 // pred_check
        %p334 = pneg %p100
      $region34: #{stem_conv_forward.9} parent=31 // pred_check_branch
        %336 = sbr.rel (%p334) target = $region36
      $region35: #{stem_conv_forward.9} parent=31 // pred_region
        %s337 = smul.u32 14, %s14
      $region36: #{stem_conv_forward.9} parent=31 // pred_fallthru
        _
    $region32: #{stem_conv_forward.9} parent=5 // pred_fallthru
      _
    %p338 = scmp.le.s32.totalorder 2, %s9
    // Predicated region
    $region37: #{stem_conv_forward.9} parent=5 // pred_check
      %p339 = pneg %p338
    $region38: #{stem_conv_forward.9} parent=5 // pred_check_branch
      %341 = sbr.rel (%p339) target = $region40
    $region39: #{stem_conv_forward.9} parent=5 // pred_region
      %s342 = ssub.s32 %s9, 2
      // Predicated region
      $region41: #{stem_conv_forward.9} parent=39 // pred_check
        %p343 = pneg %p106
      $region42: #{stem_conv_forward.9} parent=39 // pred_check_branch
        %345 = sbr.rel (%p343) target = $region44
      $region43: #{stem_conv_forward.9} parent=39 // pred_region
        %s346 = smul.u32 14, %s15
        %p347 = scmp.lt.s32.totalorder %s346, 27
        %s348 = scalar_select %p347, %s346, 27
        %s349 = smul.addr %s348, 4
        %s350 = scalar_lea.vmem %s3, %s349
      $region44: #{stem_conv_forward.9} parent=39 // pred_fallthru
        _
    $region40: #{stem_conv_forward.9} parent=5 // pred_fallthru
      _
  $region6: #{stem_conv_forward.9} parent=0 // loop_footer
    %s13 = sadd.s32 1, %s9
  $region7: #{stem_conv_forward.9} parent=0 // loop_footer_branch
    %8 = sbr.rel target = $region3
  $region8: #{stem_conv_forward.9} parent=0 // loop_exit
    _

// kernel: stem_conv_forward.8
$region0: #{stem_conv_forward.8}
  #allocation0 [shape = 'u32[]', space=smem, size = 0x4, offset = 0x4, fixed_abs, tag = 'smem constant byte address 0x4 - core index']
  #allocation1 [shape = 'u32[144,128]{1,0:T(1,128)}', space=vmem, size = 0x12000, scoped, tag = 'internal scratch']
  #allocation2 [shape = 'f32[224,32]{1,0:T(8,128)}', space=vmem, size = 0x1c000, scoped, tag = 'scratch operand']
  %s0 = inlined_call_operand.vmem [shape: bf16[336,32], index: 0, kind: input, shape index: {}, may-alias: {0,1}]
  %s1 = inlined_call_operand.vmem [shape: bf16[336,32], index: 1, kind: input, shape index: {}, may-alias: {0,1}]
  %s2 = inlined_call_operand.vmem [shape: bf16[9,32,32], index: 2, kind: input, shape index: {}]
  %s3 = inlined_call_operand.vmem [shape: f32[224,1], index: 3, kind: input, shape index: {}]
  %s4 = inlined_call_operand.vmem [shape: bf16[224,32], index: 4, kind: output, shape index: {0}]
  %s5 = inlined_call_operand.vmem [shape: f32[2,1,32], index: 5, kind: output, shape index: {1}]
  %s6 = inlined_call_operand.vmem [shape: f32[2,1,32], index: 6, kind: output, shape index: {2}]
  %7 = xla_tuple %s4, %s5, %s6
  %s8 = sld [smem:[#allocation0]]
  $region65: #{stem_conv_forward.8} parent=0
    _
  %s10 = ssub.s32 1, %s8
  %s11 = scalar_select 0, %s10, %s8
  loop: start=0, step=1, limit=4
  $region2: #{stem_conv_forward.8} parent=0 // loop_pre_header
    _
  $region3: #{stem_conv_forward.8} parent=0 // loop_header
    %s13 = sphi 0, %s17
    %p14 = scmp.ge.s32.totalorder %s13, 4
    %s23 = sphi 0, %s25
    %s26 = sphi 0, %s23
    %s27 = sphi 0, %s26
    %s43 = sphi 0, %s27
    %s51 = sphi 0, %s53
    %s54 = sphi 0, %s51
    %s55 = sphi 0, %s54
    %s71 = sphi 0, %s55
    %s75 = sphi 0, %s75
    %s77 = sphi 0, %s75
    %s78 = sphi 0, %s77
    %s92 = sphi 0, %s78
    %s98 = sphi 0, %s100
    %s101 = sphi 0, %s98
    %s102 = sphi 0, %s101
    %s118 = sphi 0, %s102
    %s124 = sphi 0, %s126
    %s127 = sphi 0, %s124
    %s128 = sphi 0, %s127
    %s144 = sphi 0, %s128
    %s150 = sphi 0, %s152
    %s153 = sphi 0, %s150
    %s154 = sphi 0, %s153
    %s170 = sphi 0, %s154
    %s176 = sphi 0, %s178
    %s179 = sphi 0, %s176
    %s180 = sphi 0, %s179
    %s196 = sphi 0, %s180
  $region4: #{stem_conv_forward.8} parent=0 // loop_header_branch
    %16 = sbr.rel (%p14) target = $region8
  $region5: #{stem_conv_forward.8} parent=0 // loop_body
    %s18 = ssub.s32 %s13, 1
    %s19 = ssub.s32 %s13, 2
    %s20 = sadd.s32 %s13, 1
    %s21 = ssub.s32 %s13, %s20
    %p22 = scmp.eq.s32.totalorder %s21, 0
    %s24 = sadd.s32 %s23, 1
    %s25 = scalar_select %p22, %s23, %s24
    %p28 = pneg %p22
    %p29 = scmp.eq.s32.totalorder %s13, 1
    %p30 = por %p28, %p29
    %p31 = scmp.ne.s32.totalorder %s23, %s26
    %p32 = scmp.eq.s32.totalorder %s13, 0
    %p33 = por %p31, %p32
    %p34 = scmp.ne.s32.totalorder %s23, %s26
    %p35 = scmp.eq.s32.totalorder %s18, 1
    %p36 = por %p34, %p35
    %p37 = scmp.ne.s32.totalorder %s26, %s27
    %p38 = scmp.eq.s32.totalorder %s18, 0
    %p39 = por %p37, %p38
    %p40 = scmp.ne.s32.totalorder %s26, %s27
    %p41 = scmp.eq.s32.totalorder %s19, 1
    %p42 = por %p40, %p41
    %p44 = scmp.ne.s32.totalorder %s27, %s43
    %p45 = scmp.eq.s32.totalorder %s19, 0
    %p46 = por %p44, %p45
    %s47 = sadd.s32 %s13, 1
    %s48 = sadd.s32 %s20, 1
    %s49 = ssub.s32 %s47, %s48
    %p50 = scmp.eq.s32.totalorder %s49, 0
    %s52 = sadd.s32 %s51, 1
    %s53 = scalar_select %p50, %s51, %s52
    %p56 = pneg %p50
    %p57 = scmp.eq.s32.totalorder %s13, 1
    %p58 = por %p56, %p57
    %p59 = scmp.ne.s32.totalorder %s51, %s54
    %p60 = scmp.eq.s32.totalorder %s13, 0
    %p61 = por %p59, %p60
    %p62 = scmp.ne.s32.totalorder %s51, %s54
    %p63 = scmp.eq.s32.totalorder %s18, 1
    %p64 = por %p62, %p63
    %p65 = scmp.ne.s32.totalorder %s54, %s55
    %p66 = scmp.eq.s32.totalorder %s18, 0
    %p67 = por %p65, %p66
    %p68 = scmp.ne.s32.totalorder %s54, %s55
    %p69 = scmp.eq.s32.totalorder %s19, 1
    %p70 = por %p68, %p69
    %p72 = scmp.ne.s32.totalorder %s55, %s71
    %p73 = scmp.eq.s32.totalorder %s19, 0
    %p74 = por %p72, %p73
    %s76 = sadd.s32 %s75, 1
    %p79 = scmp.eq.s32.totalorder %s13, 1
    %p80 = scmp.ne.s32.totalorder %s75, %s77
    %p81 = scmp.eq.s32.totalorder %s13, 0
    %p82 = por %p80, %p81
    %p83 = scmp.ne.s32.totalorder %s75, %s77
    %p84 = scmp.eq.s32.totalorder %s18, 1
    %p85 = por %p83, %p84
    %p86 = scmp.ne.s32.totalorder %s77, %s78
    %p87 = scmp.eq.s32.totalorder %s18, 0
    %p88 = por %p86, %p87
    %p89 = scmp.ne.s32.totalorder %s77, %s78
    %p90 = scmp.eq.s32.totalorder %s19, 1
    %p91 = por %p89, %p90
    %p93 = scmp.ne.s32.totalorder %s78, %s92
    %p94 = scmp.eq.s32.totalorder %s19, 0
    %p95 = por %p93, %p94
    %s96 = ssub.s32 %s13, %s20
    %p97 = scmp.eq.s32.totalorder %s96, 0
    %s99 = sadd.s32 %s98, 1
    %s100 = scalar_select %p97, %s98, %s99
    %p103 = pneg %p97
    %p104 = scmp.eq.s32.totalorder %s13, 1
    %p105 = por %p103, %p104
    %p106 = scmp.ne.s32.totalorder %s98, %s101
    %p107 = scmp.eq.s32.totalorder %s13, 0
    %p108 = por %p106, %p107
    %p109 = scmp.ne.s32.totalorder %s98, %s101
    %p110 = scmp.eq.s32.totalorder %s18, 1
    %p111 = por %p109, %p110
    %p112 = scmp.ne.s32.totalorder %s101, %s102
    %p113 = scmp.eq.s32.totalorder %s18, 0
    %p114 = por %p112, %p113
    %p115 = scmp.ne.s32.totalorder %s101, %s102
    %p116 = scmp.eq.s32.totalorder %s19, 1
    %p117 = por %p115, %p116
    %p119 = scmp.ne.s32.totalorder %s102, %s118
    %p120 = scmp.eq.s32.totalorder %s19, 0
    %p121 = por %p119, %p120
    %s122 = ssub.s32 %s13, %s20
    %p123 = scmp.eq.s32.totalorder %s122, 0
    %s125 = sadd.s32 %s124, 1
    %s126 = scalar_select %p123, %s124, %s125
    %p129 = pneg %p123
    %p130 = scmp.eq.s32.totalorder %s13, 1
    %p131 = por %p129, %p130
    %p132 = scmp.ne.s32.totalorder %s124, %s127
    %p133 = scmp.eq.s32.totalorder %s13, 0
    %p134 = por %p132, %p133
    %p135 = scmp.ne.s32.totalorder %s124, %s127
    %p136 = scmp.eq.s32.totalorder %s18, 1
    %p137 = por %p135, %p136
    %p138 = scmp.ne.s32.totalorder %s127, %s128
    %p139 = scmp.eq.s32.totalorder %s18, 0
    %p140 = por %p138, %p139
    %p141 = scmp.ne.s32.totalorder %s127, %s128
    %p142 = scmp.eq.s32.totalorder %s19, 1
    %p143 = por %p141, %p142
    %p145 = scmp.ne.s32.totalorder %s128, %s144
    %p146 = scmp.eq.s32.totalorder %s19, 0
    %p147 = por %p145, %p146
    %s148 = ssub.s32 %s13, %s20
    %p149 = scmp.eq.s32.totalorder %s148, 0
    %s151 = sadd.s32 %s150, 1
    %s152 = scalar_select %p149, %s150, %s151
    %p155 = pneg %p149
    %p156 = scmp.eq.s32.totalorder %s13, 1
    %p157 = por %p155, %p156
    %p158 = scmp.ne.s32.totalorder %s150, %s153
    %p159 = scmp.eq.s32.totalorder %s13, 0
    %p160 = por %p158, %p159
    %p161 = scmp.ne.s32.totalorder %s150, %s153
    %p162 = scmp.eq.s32.totalorder %s18, 1
    %p163 = por %p161, %p162
    %p164 = scmp.ne.s32.totalorder %s153, %s154
    %p165 = scmp.eq.s32.totalorder %s18, 0
    %p166 = por %p164, %p165
    %p167 = scmp.ne.s32.totalorder %s153, %s154
    %p168 = scmp.eq.s32.totalorder %s19, 1
    %p169 = por %p167, %p168
    %p171 = scmp.ne.s32.totalorder %s154, %s170
    %p172 = scmp.eq.s32.totalorder %s19, 0
    %p173 = por %p171, %p172
    %s174 = ssub.s32 %s13, %s20
    %p175 = scmp.eq.s32.totalorder %s174, 0
    %s177 = sadd.s32 %s176, 1
    %s178 = scalar_select %p175, %s176, %s177
    %p181 = pneg %p175
    %p182 = scmp.eq.s32.totalorder %s13, 1
    %p183 = por %p181, %p182
    %p184 = scmp.ne.s32.totalorder %s176, %s179
    %p185 = scmp.eq.s32.totalorder %s13, 0
    %p186 = por %p184, %p185
    %p187 = scmp.ne.s32.totalorder %s176, %s179
    %p188 = scmp.eq.s32.totalorder %s18, 1
    %p189 = por %p187, %p188
    %p190 = scmp.ne.s32.totalorder %s179, %s180
    %p191 = scmp.eq.s32.totalorder %s18, 0
    %p192 = por %p190, %p191
    %p193 = scmp.ne.s32.totalorder %s179, %s180
    %p194 = scmp.eq.s32.totalorder %s19, 1
    %p195 = por %p193, %p194
    %p197 = scmp.ne.s32.totalorder %s180, %s196
    %p198 = scmp.eq.s32.totalorder %s19, 0
    %p199 = por %p197, %p198
    %p200 = scmp.le.s32.totalorder 1, %s13
    %p201 = scmp.lt.s32.totalorder %s13, 3
    %p202 = pnand %p200, %p201
    %p203 = pneg %p202
    // Predicated region
    $region9: #{stem_conv_forward.8} parent=5 // pred_check
      _
    $region10: #{stem_conv_forward.8} parent=5 // pred_check_branch
      %205 = sbr.rel (%p202) target = $region12
    $region11: #{stem_conv_forward.8} parent=5 // pred_region
      %s206 = ssub.s32 %s13, 1
      // Predicated region
      $region13: #{stem_conv_forward.8} parent=11 // pred_check
        %p207 = pneg %p88
      $region14: #{stem_conv_forward.8} parent=11 // pred_check_branch
        %209 = sbr.rel (%p207) target = $region16
      $region15: #{stem_conv_forward.8} parent=11 // pred_region
        _
      $region16: #{stem_conv_forward.8} parent=11 // pred_fallthru
        _
    $region12: #{stem_conv_forward.8} parent=5 // pred_fallthru
      _
    %p210 = scmp.lt.s32.totalorder %s13, 2
    // Predicated region
    $region17: #{stem_conv_forward.8} parent=5 // pred_check
      %p211 = pneg %p210
    $region18: #{stem_conv_forward.8} parent=5 // pred_check_branch
      %213 = sbr.rel (%p211) target = $region20
    $region19: #{stem_conv_forward.8} parent=5 // pred_region
      // Predicated region
      $region21: #{stem_conv_forward.8} parent=19 // pred_check
        %p214 = pneg %p33
      $region22: #{stem_conv_forward.8} parent=19 // pred_check_branch
        %216 = sbr.rel (%p214) target = $region24
      $region23: #{stem_conv_forward.8} parent=19 // pred_region
        %s217 = smul.u32 14, %s13
        %p218 = scmp.lt.s32.totalorder %s217, 41
        %s219 = scalar_select %p218, %s217, 41
        %s220 = smul.addr %s219, 4
        %s221 = scalar_lea.vmem %s0, %s220
        %s222 = smul.u32 14, %s13
      $region24: #{stem_conv_forward.8} parent=19 // pred_fallthru
        _
      // Predicated region
      $region25: #{stem_conv_forward.8} parent=19 // pred_check
        %p223 = pneg %p61
      $region26: #{stem_conv_forward.8} parent=19 // pred_check_branch
        %225 = sbr.rel (%p223) target = $region28
      $region27: #{stem_conv_forward.8} parent=19 // pred_region
        %s226 = sadd.s32 %s13, 1
        %s227 = smul.u32 14, %s226
        %p228 = scmp.lt.s32.totalorder %s227, 41
        %s229 = scalar_select %p228, %s227, 41
        %s230 = smul.addr %s229, 4
        %s231 = scalar_lea.vmem %s1, %s230
        %s232 = sadd.s32 %s13, 1
        %s233 = smul.u32 14, %s232
      $region28: #{stem_conv_forward.8} parent=19 // pred_fallthru
        _
      // Predicated region
      $region29: #{stem_conv_forward.8} parent=19 // pred_check
        %p234 = pneg %p108
      $region30: #{stem_conv_forward.8} parent=19 // pred_check_branch
        %236 = sbr.rel (%p234) target = $region32
      $region31: #{stem_conv_forward.8} parent=19 // pred_region
        %s237 = smul.u32 14, %s13
        %p238 = scmp.lt.s32.totalorder %s237, 27
        %s239 = scalar_select %p238, %s237, 27
        %s240 = smul.addr %s239, 8
        %s241 = scalar_lea.vmem %s3, %s240
        %s242 = smul.u32 14, %s13
      $region32: #{stem_conv_forward.8} parent=19 // pred_fallthru
        _
    $region20: #{stem_conv_forward.8} parent=5 // pred_fallthru
      _
    %p243 = scmp.le.s32.totalorder 1, %s13
    %p244 = scmp.lt.s32.totalorder %s13, 3
    %p245 = pnand %p243, %p244
    %p246 = pneg %p245
    // Predicated region
    $region33: #{stem_conv_forward.8} parent=5 // pred_check
      _
    $region34: #{stem_conv_forward.8} parent=5 // pred_check_branch
      %248 = sbr.rel (%p245) target = $region36
    $region35: #{stem_conv_forward.8} parent=5 // pred_region
      %s249 = ssub.s32 %s13, 1
      %s250 = smul.u32 14, %s18
      %p251 = scmp.lt.s32.totalorder %s250, 41
      %s252 = scalar_select %p251, %s250, 41
      %s253 = smul.addr %s252, 4
      %s254 = scalar_lea.vmem %s0, %s253
      %p255 = pneg %p39
      %p256 = pneg %p36
      %s257 = sadd.s32 %s18, 1
      %s258 = smul.u32 14, %s257
      %p259 = scmp.lt.s32.totalorder %s258, 41
      %s260 = scalar_select %p259, %s258, 41
      %s261 = smul.addr %s260, 4
      %s262 = scalar_lea.vmem %s1, %s261
      %p263 = pneg %p67
      %p264 = pneg %p64
      %p265 = pneg %p88
      %p266 = pneg %p85
      %s267 = smul.u32 14, %s18
      %p268 = scmp.lt.s32.totalorder %s267, 27
      %s269 = scalar_select %p268, %s267, 27
      %s270 = smul.addr %s269, 8
      %s271 = scalar_lea.vmem %s3, %s270
      %p272 = pneg %p114
      %p273 = pneg %p111
      %p274 = pneg %p140
      %p275 = pneg %p137
      %s276 = smul.u32 14, %s18
      %p277 = scmp.lt.s32.totalorder %s276, 27
      %s278 = scalar_select %p277, %s276, 27
      %s279 = smul.addr %s278, 4
      %s280 = scalar_lea.vmem %s4, %s279
      %p281 = pneg %p166
      %p282 = pneg %p163
      %p283 = scmp.lt.s32.totalorder %s18, 1
      %s284 = scalar_select %p283, %s18, 1
      %s285 = scalar_lea.vmem %s5, %s284
      %p286 = pneg %p192
      %p287 = pneg %p189
      %p288 = scmp.lt.s32.totalorder %s18, 1
      %s289 = scalar_select %p288, %s18, 1
      %s290 = scalar_lea.vmem %s6, %s289
      %s291 = smul.u32 14, %s18
      %p292 = scmp.lt.s32.totalorder %s291, 41
      %s293 = scalar_select %p292, %s291, 41
      %s294 = smul.addr %s293, 4
      %s295 = scalar_lea.vmem %s0, %s294
      %s296 = smul.u32 14, %s18
      %s297 = sadd.s32 %s18, 1
      %s298 = smul.u32 14, %s297
      %p299 = scmp.lt.s32.totalorder %s298, 41
      %s300 = scalar_select %p299, %s298, 41
      %s301 = smul.addr %s300, 4
      %s302 = scalar_lea.vmem %s1, %s301
      %s303 = sadd.s32 %s18, 1
      %s304 = smul.u32 14, %s303
      %s305 = smul.u32 14, %s18
      %p306 = scmp.lt.s32.totalorder %s305, 27
      %s307 = scalar_select %p306, %s305, 27
      %s308 = smul.addr %s307, 8
      %s309 = scalar_lea.vmem %s3, %s308
      %s310 = smul.u32 14, %s18
      %s311 = smul.u32 14, %s18
      %p312 = scmp.lt.s32.totalorder %s311, 27
      %s313 = scalar_select %p312, %s311, 27
      %s314 = smul.addr %s313, 4
      %s315 = scalar_lea.vmem %s4, %s314
      %s316 = smul.u32 14, %s18
      %p317 = scmp.lt.s32.totalorder %s18, 1
      %s318 = scalar_select %p317, %s18, 1
      %s319 = scalar_lea.vmem %s5, %s318
      %p320 = scmp.lt.s32.totalorder %s18, 1
      %s321 = scalar_select %p320, %s18, 1
      %s322 = scalar_lea.vmem %s6, %s321
      %v324 = vld [vmem:[%s295] sm:$0xf]
      %v325 = vld [vmem:[%s295 + $0x4] sm:$0xf]
      %v326 = vld [vmem:[%s295 + $0x8] sm:$0xf]
      %v327 = vld [vmem:[%s295 + $0xc] sm:$0xf]
      %v328 = vld [vmem:[%s295 + $0x10] sm:$0xf]
      %v329 = vld [vmem:[%s295 + $0x14] sm:$0xf]
      %v330 = vld [vmem:[%s295 + $0x18] sm:$0xf]
      %v331 = vld [vmem:[%s295 + $0x1c] sm:$0xf]
      %v332 = vld [vmem:[%s295 + $0x20] sm:$0xf]
      %v333 = vld [vmem:[%s295 + $0x24] sm:$0xf]
      %v334 = vld [vmem:[%s295 + $0x28] sm:$0xf]
      %v335 = vld [vmem:[%s295 + $0x2c] sm:$0xf]
      %v336 = vld [vmem:[%s295 + $0x30] sm:$0xf]
      %v337 = vld [vmem:[%s295 + $0x34] sm:$0xf]
      %v338 = vunpack.c.l.bf16 %v324
      %v339 = vunpack.c.l.bf16 %v325
      %v340 = vunpack.c.l.bf16 %v326
      %v341 = vunpack.c.l.bf16 %v327
      %v342 = vunpack.c.l.bf16 %v328
      %v343 = vunpack.c.l.bf16 %v329
      %v344 = vunpack.c.l.bf16 %v330
      %v345 = vunpack.c.l.bf16 %v331
      %v346 = vunpack.c.l.bf16 %v332
      %v347 = vunpack.c.l.bf16 %v333
      %v348 = vunpack.c.l.bf16 %v334
      %v349 = vunpack.c.l.bf16 %v335
      %v350 = vunpack.c.l.bf16 %v336
      %v351 = vunpack.c.l.bf16 %v337
      %vm352 = vcmask 261120
      %353 = vst.msk [vmem:[#allocation2] sm:$0xff] %vm352, %v338
      %354 = vst.msk [vmem:[#allocation2 + $0x8] sm:$0xff] %vm352, %v339
      %355 = vst.msk [vmem:[#allocation2 + $0x10] sm:$0xff] %vm352, %v340
      %356 = vst.msk [vmem:[#allocation2 + $0x18] sm:$0xff] %vm352, %v341
      %357 = vst.msk [vmem:[#allocation2 + $0x20] sm:$0xff] %vm352, %v342
      %358 = vst.msk [vmem:[#allocation2 + $0x28] sm:$0xff] %vm352, %v343
      %359 = vst.msk [vmem:[#allocation2 + $0x30] sm:$0xff] %vm352, %v344
      %360 = vst.msk [vmem:[#allocation2 + $0x38] sm:$0xff] %vm352, %v345
      %361 = vst.msk [vmem:[#allocation2 + $0x40] sm:$0xff] %vm352, %v346
      %362 = vst.msk [vmem:[#allocation2 + $0x48] sm:$0xff] %vm352, %v347
      %363 = vst.msk [vmem:[#allocation2 + $0x50] sm:$0xff] %vm352, %v348
      %364 = vst.msk [vmem:[#allocation2 + $0x58] sm:$0xff] %vm352, %v349
      %365 = vst.msk [vmem:[#allocation2 + $0x60] sm:$0xff] %vm352, %v350
      %366 = vst.msk [vmem:[#allocation2 + $0x68] sm:$0xff] %vm352, %v351
      %v367 = vld [vmem:[%s302] sm:$0xf]
      %v368 = vld [vmem:[%s302 + $0x4] sm:$0xf]
      %v369 = vld [vmem:[%s302 + $0x8] sm:$0xf]
      %v370 = vld [vmem:[%s302 + $0xc] sm:$0xf]
      %v371 = vld [vmem:[%s302 + $0x10] sm:$0xf]
      %v372 = vld [vmem:[%s302 + $0x14] sm:$0xf]
      %v373 = vld [vmem:[%s302 + $0x18] sm:$0xf]
      %v374 = vld [vmem:[%s302 + $0x1c] sm:$0xf]
      %v375 = vld [vmem:[%s302 + $0x20] sm:$0xf]
      %v376 = vld [vmem:[%s302 + $0x24] sm:$0xf]
      %v377 = vld [vmem:[%s302 + $0x28] sm:$0xf]
      %v378 = vld [vmem:[%s302 + $0x2c] sm:$0xf]
      %v379 = vld [vmem:[%s302 + $0x30] sm:$0xf]
      %v380 = vld [vmem:[%s302 + $0x34] sm:$0xf]
      %v381 = vunpack.c.l.bf16 %v367
      %v382 = vunpack.c.l.bf16 %v368
      %v383 = vunpack.c.l.bf16 %v369
      %v384 = vunpack.c.l.bf16 %v370
      %v385 = vunpack.c.l.bf16 %v371
      %v386 = vunpack.c.l.bf16 %v372
      %v387 = vunpack.c.l.bf16 %v373
      %v388 = vunpack.c.l.bf16 %v374
      %v389 = vunpack.c.l.bf16 %v375
      %v390 = vunpack.c.l.bf16 %v376
      %v391 = vunpack.c.l.bf16 %v377
      %v392 = vunpack.c.l.bf16 %v378
      %v393 = vunpack.c.l.bf16 %v379
      %v394 = vunpack.c.l.bf16 %v380
      %395 = vst.msk [vmem:[#allocation2 + $0x70] sm:$0xff] %vm352, %v381
      %396 = vst.msk [vmem:[#allocation2 + $0x78] sm:$0xff] %vm352, %v382
      %397 = vst.msk [vmem:[#allocation2 + $0x80] sm:$0xff] %vm352, %v383
      %398 = vst.msk [vmem:[#allocation2 + $0x88] sm:$0xff] %vm352, %v384
      %399 = vst.msk [vmem:[#allocation2 + $0x90] sm:$0xff] %vm352, %v385
      %400 = vst.msk [vmem:[#allocation2 + $0x98] sm:$0xff] %vm352, %v386
      %401 = vst.msk [vmem:[#allocation2 + $0xa0] sm:$0xff] %vm352, %v387
      %402 = vst.msk [vmem:[#allocation2 + $0xa8] sm:$0xff] %vm352, %v388
      %403 = vst.msk [vmem:[#allocation2 + $0xb0] sm:$0xff] %vm352, %v389
      %404 = vst.msk [vmem:[#allocation2 + $0xb8] sm:$0xff] %vm352, %v390
      %405 = vst.msk [vmem:[#allocation2 + $0xc0] sm:$0xff] %vm352, %v391
      %406 = vst.msk [vmem:[#allocation2 + $0xc8] sm:$0xff] %vm352, %v392
      %407 = vst.msk [vmem:[#allocation2 + $0xd0] sm:$0xff] %vm352, %v393
      %408 = vst.msk [vmem:[#allocation2 + $0xd8] sm:$0xff] %vm352, %v394
      %v409 = vld [vmem:[#allocation2] sm:$0xff]
      %v410 = vld [vmem:[#allocation2 + $0x8] sm:$0xff]
      %v411 = vld [vmem:[#allocation2 + $0x10] sm:$0xff]
      %v412 = vld [vmem:[#allocation2 + $0x18] sm:$0xff]
      %v413 = vld [vmem:[#allocation2 + $0x20] sm:$0xff]
      %v414 = vld [vmem:[#allocation2 + $0x28] sm:$0xff]
      %v415 = vld [vmem:[#allocation2 + $0x30] sm:$0xff]
      %v416 = vld [vmem:[#allocation2 + $0x38] sm:$0xff]
      %v417 = vld [vmem:[#allocation2 + $0x40] sm:$0xff]
      %v418 = vld [vmem:[#allocation2 + $0x48] sm:$0xff]
      %v419 = vld [vmem:[#allocation2 + $0x50] sm:$0xff]
      %v420 = vld [vmem:[#allocation2 + $0x58] sm:$0xff]
      %v421 = vld [vmem:[#allocation2 + $0x60] sm:$0xff]
      %v422 = vld [vmem:[#allocation2 + $0x68] sm:$0xff]
      %v423 = vpack.c.bf16 %v410, %v409
      %v424 = vpack.c.bf16 %v412, %v411
      %v425 = vpack.c.bf16 %v414, %v413
      %v426 = vpack.c.bf16 %v416, %v415
      %v427 = vpack.c.bf16 %v418, %v417
      %v428 = vpack.c.bf16 %v420, %v419
      %v429 = vpack.c.bf16 %v422, %v421
      %v430 = vld [vmem:[%s2] sm:$0xf]
      %v431 = vld [vmem:[%s2 + $0x4] sm:$0xf]
      %v432 = vld [vmem:[%s2 + $0x8] sm:$0xf]
      %v433 = vld [vmem:[%s2 + $0xc] sm:$0xf]
      %v434 = vld [vmem:[#allocation2 + $0x1] sm:$0xff]
      %v435 = vld [vmem:[#allocation2 + $0x9] sm:$0xff]
      %v436 = vld [vmem:[#allocation2 + $0x11] sm:$0xff]
      %v437 = vld [vmem:[#allocation2 + $0x19] sm:$0xff]
      %v438 = vld [vmem:[#allocation2 + $0x21] sm:$0xff]
      %v439 = vld [vmem:[#allocation2 + $0x29] sm:$0xff]
      %v440 = vld [vmem:[#allocation2 + $0x31] sm:$0xff]
      %v441 = vld [vmem:[#allocation2 + $0x39] sm:$0xff]
      %v442 = vld [vmem:[#allocation2 + $0x41] sm:$0xff]
      %v443 = vld [vmem:[#allocation2 + $0x49] sm:$0xff]
      %v444 = vld [vmem:[#allocation2 + $0x51] sm:$0xff]
      %v445 = vld [vmem:[#allocation2 + $0x59] sm:$0xff]
      %v446 = vld [vmem:[#allocation2 + $0x61] sm:$0xff]
      %v447 = vld [vmem:[#allocation2 + $0x69] sm:$0xff]
      %v448 = vpack.c.bf16 %v435, %v434
      %v449 = vpack.c.bf16 %v437, %v436
      %v450 = vpack.c.bf16 %v439, %v438
      %v451 = vpack.c.bf16 %v441, %v440
      %v452 = vpack.c.bf16 %v443, %v442
      %v453 = vpack.c.bf16 %v445, %v444
      %v454 = vpack.c.bf16 %v447, %v446
      %s455 = scalar_lea.vmem %s2, 16
      %v456 = vld [vmem:[%s455] sm:$0xf]
      %v457 = vld [vmem:[%s455 + $0x4] sm:$0xf]
      %v458 = vld [vmem:[%s455 + $0x8] sm:$0xf]
      %v459 = vld [vmem:[%s455 + $0xc] sm:$0xf]
      %v464 = vunpack.c.l.b16 %v456
      %v465 = vunpack.c.l.b16 %v457
      %v466 = vunpack.c.l.b16 %v458
      %v467 = vunpack.c.l.b16 %v459
      %v468 = vpack.c.b16 %v465, %v464
      %v469 = vpack.c.b16 %v467, %v466
      %v473 = vsel %vm352, %v448, 0
      %v476 = vsel %vm352, %v449, 0
      %v479 = vsel %vm352, %v450, 0
      %v482 = vsel %vm352, %v451, 0
      %v485 = vsel %vm352, %v452, 0
      %v488 = vsel %vm352, %v453, 0
      %v491 = vsel %vm352, %v454, 0
      %493 = vmatprep.subr.bf16.mxu0 0
      %494 = vmatpush1.bf16.msra.mxu0 %v468
      %495 = vmatprep.subr.bf16.mxu0 0
      %496 = vmatpush1.bf16.msra.mxu0 %v469
      %497 = vmatprep.subr.bf16.mxu0 0
      %498 = vmatpush1.bf16.msra.mxu0 0
      %499 = vmatprep.subr.bf16.mxu0 0
      %500 = vmatpush1.bf16.msra.mxu0 0
      %501 = vmatprep.subr.bf16.mxu0 0
      %502 = vmatpush1.bf16.msra.mxu0 0
      %503 = vmatprep.subr.bf16.mxu0 0
      %504 = vmatpush1.bf16.msra.mxu0 0
      %505 = vmatprep.subr.bf16.mxu0 0
      %506 = vmatpush1.bf16.msra.mxu0 0
      %507 = vmatprep.subr.bf16.mxu0 0
      %508 = vmatpush1.bf16.msra.mxu0 0
      %509 = vmatprep.subr.bf16.mxu0 0
      %510 = vmatpush1.bf16.msra.mxu0 0
      %511 = vmatprep.subr.bf16.mxu0 0
      %512 = vmatpush1.bf16.msra.mxu0 0
      %513 = vmatprep.subr.bf16.mxu0 0
      %514 = vmatpush1.bf16.msra.mxu0 0
      %515 = vmatprep.subr.bf16.mxu0 0
      %516 = vmatpush1.bf16.msra.mxu0 0
      %517 = vmatprep.subr.bf16.mxu0 0
      %518 = vmatpush1.bf16.msra.mxu0 0
      %519 = vmatprep.subr.bf16.mxu0 0
      %520 = vmatpush1.bf16.msra.mxu0 0
      %521 = vmatprep.subr.bf16.mxu0 0
      %522 = vmatpush1.bf16.msra.mxu0 0
      %523 = vmatprep.subr.bf16.mxu0 0
      %524 = vmatpush1.bf16.msra.mxu0 0
      %525 = vmatprep.mubr.bf16.mxu0 0
      %526 = vmatmul.mubr.bf16.gmra.mrb[0].mxu0 %v473
      %v527 = vpop.f32.mrb[0].mxu0
      %v528 = vadd.f32 0.0, %v527
      %v529 = vpop.f32.mrb[0].mxu0
      %v530 = vpop.f32.mrb[0].mxu0
      %v531 = vadd.f32 0.0, %v530
      %v532 = vpop.f32.mrb[0].mxu0
      %533 = vmatprep.mubr.bf16.mxu0 0
      %534 = vmatmul.mubr.bf16.gmra.mrb[0].mxu0 %v476
      %v535 = vpop.f32.mrb[0].mxu0
      %v536 = vadd.f32 0.0, %v535
      %v537 = vpop.f32.mrb[0].mxu0
      %v538 = vpop.f32.mrb[0].mxu0
      %v539 = vadd.f32 0.0, %v538
      %v540 = vpop.f32.mrb[0].mxu0
      %541 = vmatprep.mubr.bf16.mxu0 0
      %542 = vmatmul.mubr.bf16.gmra.mrb[0].mxu0 %v479
      %v543 = vpop.f32.mrb[0].mxu0
      %v544 = vadd.f32 0.0, %v543
      %v545 = vpop.f32.mrb[0].mxu0
      %v546 = vpop.f32.mrb[0].mxu0
      %v547 = vadd.f32 0.0, %v546
      %v548 = vpop.f32.mrb[0].mxu0
      %549 = vmatprep.mubr.bf16.mxu0 0
      %550 = vmatmul.mubr.bf16.gmra.mrb[0].mxu0 %v482
      %v551 = vpop.f32.mrb[0].mxu0
      %v552 = vadd.f32 0.0, %v551
      %v553 = vpop.f32.mrb[0].mxu0
      %v554 = vpop.f32.mrb[0].mxu0
      %v555 = vadd.f32 0.0, %v554
      %v556 = vpop.f32.mrb[0].mxu0
      %557 = vmatprep.mubr.bf16.mxu0 0
      %558 = vmatmul.mubr.bf16.gmra.mrb[0].mxu0 %v485
      %v559 = vpop.f32.mrb[0].mxu0
      %v560 = vadd.f32 0.0, %v559
      %v561 = vpop.f32.mrb[0].mxu0
      %v562 = vpop.f32.mrb[0].mxu0
      %v563 = vadd.f32 0.0, %v562
      %v564 = vpop.f32.mrb[0].mxu0
      %565 = vmatprep.mubr.bf16.mxu0 0
      %566 = vmatmul.mubr.bf16.gmra.mrb[0].mxu0 %v488
      %v567 = vpop.f32.mrb[0].mxu0
      %v568 = vadd.f32 0.0, %v567
      %v569 = vpop.f32.mrb[0].mxu0
      %v570 = vpop.f32.mrb[0].mxu0
      %v571 = vadd.f32 0.0, %v570
      %v572 = vpop.f32.mrb[0].mxu0
      %573 = vmatprep.mubr.bf16.mxu0 0
      %574 = vmatmul.mubr.bf16.gmra.mrb[0].mxu0 %v491
      %v575 = vpop.f32.mrb[0].mxu0
      %v576 = vadd.f32 0.0, %v575
      %v577 = vpop.f32.mrb[0].mxu0
      %v578 = vpop.f32.mrb[0].mxu0
      %v579 = vadd.f32 0.0, %v578
      %v580 = vpop.f32.mrb[0].mxu0
      %581 = vdwg.mxu0
      %v586 = vunpack.c.l.b16 %v430
      %v587 = vunpack.c.l.b16 %v431
      %v588 = vunpack.c.l.b16 %v432
      %v589 = vunpack.c.l.b16 %v433
      %v590 = vpack.c.b16 %v587, %v586
      %v591 = vpack.c.b16 %v589, %v588
      %v595 = vsel %vm352, %v423, 0
      %v598 = vsel %vm352, %v424, 0
      %v601 = vsel %vm352, %v425, 0
      %v604 = vsel %vm352, %v426, 0
      %v607 = vsel %vm352, %v427, 0
      %v610 = vsel %vm352, %v428, 0
      %v613 = vsel %vm352, %v429, 0
      %615 = vmatprep.subr.bf16.mxu0 0
      %616 = vmatpush1.bf16.msra.mxu0 %v590
      %617 = vmatprep.subr.bf16.mxu0 0
      %618 = vmatpush1.bf16.msra.mxu0 %v591
      %619 = vmatprep.subr.bf16.mxu0 0
      %620 = vmatpush1.bf16.msra.mxu0 0
      %621 = vmatprep.subr.bf16.mxu0 0
      %622 = vmatpush1.bf16.msra.mxu0 0
      %623 = vmatprep.subr.bf16.mxu0 0
      %624 = vmatpush1.bf16.msra.mxu0 0
      %625 = vmatprep.subr.bf16.mxu0 0
      %626 = vmatpush1.bf16.msra.mxu0 0
      %627 = vmatprep.subr.bf16.mxu0 0
      %628 = vmatpush1.bf16.msra.mxu0 0
      %629 = vmatprep.subr.bf16.mxu0 0
      %630 = vmatpush1.bf16.msra.mxu0 0
      %631 = vmatprep.subr.bf16.mxu0 0
      %632 = vmatpush1.bf16.msra.mxu0 0
      %633 = vmatprep.subr.bf16.mxu0 0
      %634 = vmatpush1.bf16.msra.mxu0 0
      %635 = vmatprep.subr.bf16.mxu0 0
      %636 = vmatpush1.bf16.msra.mxu0 0
      %637 = vmatprep.subr.bf16.mxu0 0
      %638 = vmatpush1.bf16.msra.mxu0 0
      %639 = vmatprep.subr.bf16.mxu0 0
      %640 = vmatpush1.bf16.msra.mxu0 0
      %641 = vmatprep.subr.bf16.mxu0 0
      %642 = vmatpush1.bf16.msra.mxu0 0
      %643 = vmatprep.subr.bf16.mxu0 0
      %644 = vmatpush1.bf16.msra.mxu0 0
      %645 = vmatprep.subr.bf16.mxu0 0
      %646 = vmatpush1.bf16.msra.mxu0 0
      %647 = vmatprep.mubr.bf16.mxu0 0
      %648 = vmatmul.mubr.bf16.gmra.mrb[0].mxu0 %v595
      %v649 = vpop.f32.mrb[0].mxu0
      %v650 = vadd.f32 %v528, %v649
      %v651 = vpop.f32.mrb[0].mxu0
      %v652 = vpop.f32.mrb[0].mxu0
      %v653 = vadd.f32 %v531, %v652
      %v654 = vpop.f32.mrb[0].mxu0
      %655 = vmatprep.mubr.bf16.mxu0 0
      %656 = vmatmul.mubr.bf16.gmra.mrb[0].mxu0 %v598
      %v657 = vpop.f32.mrb[0].mxu0
      %v658 = vadd.f32 %v536, %v657
      %v659 = vpop.f32.mrb[0].mxu0
      %v660 = vpop.f32.mrb[0].mxu0
      %v661 = vadd.f32 %v539, %v660
      %v662 = vpop.f32.mrb[0].mxu0
      %663 = vmatprep.mubr.bf16.mxu0 0
      %664 = vmatmul.mubr.bf16.gmra.mrb[0].mxu0 %v601
      %v665 = vpop.f32.mrb[0].mxu0
      %v666 = vadd.f32 %v544, %v665
      %v667 = vpop.f32.mrb[0].mxu0
      %v668 = vpop.f32.mrb[0].mxu0
      %v669 = vadd.f32 %v547, %v668
      %v670 = vpop.f32.mrb[0].mxu0
      %671 = vmatprep.mubr.bf16.mxu0 0
      %672 = vmatmul.mubr.bf16.gmra.mrb[0].mxu0 %v604
      %v673 = vpop.f32.mrb[0].mxu0
      %v674 = vadd.f32 %v552, %v673
      %v675 = vpop.f32.mrb[0].mxu0
      %v676 = vpop.f32.mrb[0].mxu0
      %v677 = vadd.f32 %v555, %v676
      %v678 = vpop.f32.mrb[0].mxu0
      %679 = vmatprep.mubr.bf16.mxu0 0
      %680 = vmatmul.mubr.bf16.gmra.mrb[0].mxu0 %v607
      %v681 = vpop.f32.mrb[0].mxu0
      %v682 = vadd.f32 %v560, %v681
      %v683 = vpop.f32.mrb[0].mxu0
      %v684 = vpop.f32.mrb[0].mxu0
      %v685 = vadd.f32 %v563, %v684
      %v686 = vpop.f32.mrb[0].mxu0
      %687 = vmatprep.mubr.bf16.mxu0 0
      %688 = vmatmul.mubr.bf16.gmra.mrb[0].mxu0 %v610
      %v689 = vpop.f32.mrb[0].mxu0
      %v690 = vadd.f32 %v568, %v689
      %v691 = vpop.f32.mrb[0].mxu0
      %v692 = vpop.f32.mrb[0].mxu0
      %v693 = vadd.f32 %v571, %v692
      %v694 = vpop.f32.mrb[0].mxu0
      %695 = vmatprep.mubr.bf16.mxu0 0
      %696 = vmatmul.mubr.bf16.gmra.mrb[0].mxu0 %v613
      %v697 = vpop.f32.mrb[0].mxu0
      %v698 = vadd.f32 %v576, %v697
      %v699 = vpop.f32.mrb[0].mxu0
      %v700 = vpop.f32.mrb[0].mxu0
      %v701 = vadd.f32 %v579, %v700
      %v702 = vpop.f32.mrb[0].mxu0
      %703 = vdwg.mxu0
      %v704 = vld [vmem:[#allocation2 + $0x2] sm:$0xff]
      %v705 = vld [vmem:[#allocation2 + $0xa] sm:$0xff]
      %v706 = vld [vmem:[#allocation2 + $0x12] sm:$0xff]
      %v707 = vld [vmem:[#allocation2 + $0x1a] sm:$0xff]
      %v708 = vld [vmem:[#allocation2 + $0x22] sm:$0xff]
      %v709 = vld [vmem:[#allocation2 + $0x2a] sm:$0xff]
      %v710 = vld [vmem:[#allocation2 + $0x32] sm:$0xff]
      %v711 = vld [vmem:[#allocation2 + $0x3a] sm:$0xff]
      %v712 = vld [vmem:[#allocation2 + $0x42] sm:$0xff]
      %v713 = vld [vmem:[#allocation2 + $0x4a] sm:$0xff]
      %v714 = vld [vmem:[#allocation2 + $0x52] sm:$0xff]
      %v715 = vld [vmem:[#allocation2 + $0x5a] sm:$0xff]
      %v716 = vld [vmem:[#allocation2 + $0x62] sm:$0xff]
      %v717 = vld [vmem:[#allocation2 + $0x6a] sm:$0xff]
      %v718 = vpack.c.bf16 %v705, %v704
      %v719 = vpack.c.bf16 %v707, %v706
      %v720 = vpack.c.bf16 %v709, %v708
      %v721 = vpack.c.bf16 %v711, %v710
      %v722 = vpack.c.bf16 %v713, %v712
      %v723 = vpack.c.bf16 %v715, %v714
      %v724 = vpack.c.bf16 %v717, %v716
      %s725 = scalar_lea.vmem %s2, 32
      %v726 = vld [vmem:[%s725] sm:$0xf]
      %v727 = vld [vmem:[%s725 + $0x4] sm:$0xf]
      %v728 = vld [vmem:[%s725 + $0x8] sm:$0xf]
      %v729 = vld [vmem:[%s725 + $0xc] sm:$0xf]
      %v734 = vunpack.c.l.b16 %v726
      %v735 = vunpack.c.l.b16 %v727
      %v736 = vunpack.c.l.b16 %v728
      %v737 = vunpack.c.l.b16 %v729
      %v738 = vpack.c.b16 %v735, %v734
      %v739 = vpack.c.b16 %v737, %v736
      %v743 = vsel %vm352, %v718, 0
      %v746 = vsel %vm352, %v719, 0
      %v749 = vsel %vm352, %v720, 0
      %v752 = vsel %vm352, %v721, 0
      %v755 = vsel %vm352, %v722, 0
      %v758 = vsel %vm352, %v723, 0
      %v761 = vsel %vm352, %v724, 0
      %763 = vmatprep.subr.bf16.mxu0 0
      %764 = vmatpush1.bf16.msra.mxu0 %v738
      %765 = vmatprep.subr.bf16.mxu0 0
      %766 = vmatpush1.bf16.msra.mxu0 %v739
      %767 = vmatprep.subr.bf16.mxu0 0
      %768 = vmatpush1.bf16.msra.mxu0 0
      %769 = vmatprep.subr.bf16.mxu0 0
      %770 = vmatpush1.bf16.msra.mxu0 0
      %771 = vmatprep.subr.bf16.mxu0 0
      %772 = vmatpush1.bf16.msra.mxu0 0
      %773 = vmatprep.subr.bf16.mxu0 0
      %774 = vmatpush1.bf16.msra.mxu0 0
      %775 = vmatprep.subr.bf16.mxu0 0
      %776 = vmatpush1.bf16.msra.mxu0 0
      %777 = vmatprep.subr.bf16.mxu0 0
      %778 = vmatpush1.bf16.msra.mxu0 0
      %779 = vmatprep.subr.bf16.mxu0 0
      %780 = vmatpush1.bf16.msra.mxu0 0
      %781 = vmatprep.subr.bf16.mxu0 0
      %782 = vmatpush1.bf16.msra.mxu0 0
      %783 = vmatprep.subr.bf16.mxu0 0
      %784 = vmatpush1.bf16.msra.mxu0 0
      %785 = vmatprep.subr.bf16.mxu0 0
      %786 = vmatpush1.bf16.msra.mxu0 0
      %787 = vmatprep.subr.bf16.mxu0 0
      %788 = vmatpush1.bf16.msra.mxu0 0
      %789 = vmatprep.subr.bf16.mxu0 0
      %790 = vmatpush1.bf16.msra.mxu0 0
      %791 = vmatprep.subr.bf16.mxu0 0
      %792 = vmatpush1.bf16.msra.mxu0 0
      %793 = vmatprep.subr.bf16.mxu0 0
      %794 = vmatpush1.bf16.msra.mxu0 0
      %795 = vmatprep.mubr.bf16.mxu0 0
      %796 = vmatmul.mubr.bf16.gmra.mrb[0].mxu0 %v743
      %v797 = vpop.f32.mrb[0].mxu0
      %v798 = vadd.f32 0.0, %v797
      %v799 = vpop.f32.mrb[0].mxu0
      %v800 = vpop.f32.mrb[0].mxu0
      %v801 = vadd.f32 0.0, %v800
      %v802 = vpop.f32.mrb[0].mxu0
      %803 = vmatprep.mubr.bf16.mxu0 0
      %804 = vmatmul.mubr.bf16.gmra.mrb[0].mxu0 %v746
      %v805 = vpop.f32.mrb[0].mxu0
      %v806 = vadd.f32 0.0, %v805
      %v807 = vpop.f32.mrb[0].mxu0
      %v808 = vpop.f32.mrb[0].mxu0
      %v809 = vadd.f32 0.0, %v808
      %v810 = vpop.f32.mrb[0].mxu0
      %811 = vmatprep.mubr.bf16.mxu0 0
      %812 = vmatmul.mubr.bf16.gmra.mrb[0].mxu0 %v749
      %v813 = vpop.f32.mrb[0].mxu0
      %v814 = vadd.f32 0.0, %v813
      %v815 = vpop.f32.mrb[0].mxu0
      %v816 = vpop.f32.mrb[0].mxu0
      %v817 = vadd.f32 0.0, %v816
      %v818 = vpop.f32.mrb[0].mxu0
      %819 = vmatprep.mubr.bf16.mxu0 0
      %820 = vmatmul.mubr.bf16.gmra.mrb[0].mxu0 %v752
      %v821 = vpop.f32.mrb[0].mxu0
      %v822 = vadd.f32 0.0, %v821
      %v823 = vpop.f32.mrb[0].mxu0
      %v824 = vpop.f32.mrb[0].mxu0
      %v825 = vadd.f32 0.0, %v824
      %v826 = vpop.f32.mrb[0].mxu0
      %827 = vmatprep.mubr.bf16.mxu0 0
      %828 = vmatmul.mubr.bf16.gmra.mrb[0].mxu0 %v755
      %v829 = vpop.f32.mrb[0].mxu0
      %v830 = vadd.f32 0.0, %v829
      %v831 = vpop.f32.mrb[0].mxu0
      %v832 = vpop.f32.mrb[0].mxu0
      %v833 = vadd.f32 0.0, %v832
      %v834 = vpop.f32.mrb[0].mxu0
      %835 = vmatprep.mubr.bf16.mxu0 0
      %836 = vmatmul.mubr.bf16.gmra.mrb[0].mxu0 %v758
      %v837 = vpop.f32.mrb[0].mxu0
      %v838 = vadd.f32 0.0, %v837
      %v839 = vpop.f32.mrb[0].mxu0
      %v840 = vpop.f32.mrb[0].mxu0
      %v841 = vadd.f32 0.0, %v840
      %v842 = vpop.f32.mrb[0].mxu0
      %843 = vmatprep.mubr.bf16.mxu0 0
      %844 = vmatmul.mubr.bf16.gmra.mrb[0].mxu0 %v761
      %v845 = vpop.f32.mrb[0].mxu0
      %v846 = vadd.f32 0.0, %v845
      %v847 = vpop.f32.mrb[0].mxu0
      %v848 = vpop.f32.mrb[0].mxu0
      %v849 = vadd.f32 0.0, %v848
      %v850 = vpop.f32.mrb[0].mxu0
      %851 = vdwg.mxu0
      %v852 = vadd.f32 %v650, %v798
      %v853 = vadd.f32 %v653, %v801
      %v854 = vadd.f32 %v658, %v806
      %v855 = vadd.f32 %v661, %v809
      %v856 = vadd.f32 %v666, %v814
      %v857 = vadd.f32 %v669, %v817
      %v858 = vadd.f32 %v674, %v822
      %v859 = vadd.f32 %v677, %v825
      %v860 = vadd.f32 %v682, %v830
      %v861 = vadd.f32 %v685, %v833
      %v862 = vadd.f32 %v690, %v838
      %v863 = vadd.f32 %v693, %v841
      %v864 = vadd.f32 %v698, %v846
      %v865 = vadd.f32 %v701, %v849
      %v866 = vld [vmem:[#allocation2 + $0xa] sm:$0xff]
      %v867 = vld [vmem:[#allocation2 + $0x12] sm:$0xff]
      %v868 = vld [vmem:[#allocation2 + $0x1a] sm:$0xff]
      %v869 = vld [vmem:[#allocation2 + $0x22] sm:$0xff]
      %v870 = vld [vmem:[#allocation2 + $0x2a] sm:$0xff]
      %v871 = vld [vmem:[#allocation2 + $0x32] sm:$0xff]
      %v872 = vld [vmem:[#allocation2 + $0x3a] sm:$0xff]
      %v873 = vld [vmem:[#allocation2 + $0x42] sm:$0xff]
      %v874 = vld [vmem:[#allocation2 + $0x4a] sm:$0xff]
      %v875 = vld [vmem:[#allocation2 + $0x52] sm:$0xff]
      %v876 = vld [vmem:[#allocation2 + $0x5a] sm:$0xff]
      %v877 = vld [vmem:[#allocation2 + $0x62] sm:$0xff]
      %v878 = vld [vmem:[#allocation2 + $0x6a] sm:$0xff]
      %v879 = vld [vmem:[#allocation2 + $0x72] sm:$0xff]
      %v880 = vpack.c.bf16 %v867, %v866
      %v881 = vpack.c.bf16 %v869, %v868
      %v882 = vpack.c.bf16 %v871, %v870
      %v883 = vpack.c.bf16 %v873, %v872
      %v884 = vpack.c.bf16 %v875, %v874
      %v885 = vpack.c.bf16 %v877, %v876
      %v886 = vpack.c.bf16 %v879, %v878
      %s887 = scalar_lea.vmem %s2, 48
      %v888 = vld [vmem:[%s887] sm:$0xf]
      %v889 = vld [vmem:[%s887 + $0x4] sm:$0xf]
      %v890 = vld [vmem:[%s887 + $0x8] sm:$0xf]
      %v891 = vld [vmem:[%s887 + $0xc] sm:$0xf]
      %v896 = vunpack.c.l.b16 %v888
      %v897 = vunpack.c.l.b16 %v889
      %v898 = vunpack.c.l.b16 %v890
      %v899 = vunpack.c.l.b16 %v891
      %v900 = vpack.c.b16 %v897, %v896
      %v901 = vpack.c.b16 %v899, %v898
      %v905 = vsel %vm352, %v880, 0
      %v908 = vsel %vm352, %v881, 0
      %v911 = vsel %vm352, %v882, 0
      %v914 = vsel %vm352, %v883, 0
      %v917 = vsel %vm352, %v884, 0
      %v920 = vsel %vm352, %v885, 0
      %v923 = vsel %vm352, %v886, 0
      %925 = vmatprep.subr.bf16.mxu0 0
      %926 = vmatpush1.bf16.msra.mxu0 %v900
      %927 = vmatprep.subr.bf16.mxu0 0
      %928 = vmatpush1.bf16.msra.mxu0 %v901
      %929 = vmatprep.subr.bf16.mxu0 0
      %930 = vmatpush1.bf16.msra.mxu0 0
      %931 = vmatprep.subr.bf16.mxu0 0
      %932 = vmatpush1.bf16.msra.mxu0 0
      %933 = vmatprep.subr.bf16.mxu0 0
      %934 = vmatpush1.bf16.msra.mxu0 0
      %935 = vmatprep.subr.bf16.mxu0 0
      %936 = vmatpush1.bf16.msra.mxu0 0
      %937 = vmatprep.subr.bf16.mxu0 0
      %938 = vmatpush1.bf16.msra.mxu0 0
      %939 = vmatprep.subr.bf16.mxu0 0
      %940 = vmatpush1.bf16.msra.mxu0 0
      %941 = vmatprep.subr.bf16.mxu0 0
      %942 = vmatpush1.bf16.msra.mxu0 0
      %943 = vmatprep.subr.bf16.mxu0 0
      %944 = vmatpush1.bf16.msra.mxu0 0
      %945 = vmatprep.subr.bf16.mxu0 0
      %946 = vmatpush1.bf16.msra.mxu0 0
      %947 = vmatprep.subr.bf16.mxu0 0
      %948 = vmatpush1.bf16.msra.mxu0 0
      %949 = vmatprep.subr.bf16.mxu0 0
      %950 = vmatpush1.bf16.msra.mxu0 0
      %951 = vmatprep.subr.bf16.mxu0 0
      %952 = vmatpush1.bf16.msra.mxu0 0
      %953 = vmatprep.subr.bf16.mxu0 0
      %954 = vmatpush1.bf16.msra.mxu0 0
      %955 = vmatprep.subr.bf16.mxu0 0
      %956 = vmatpush1.bf16.msra.mxu0 0
      %957 = vmatprep.mubr.bf16.mxu0 0
      %958 = vmatmul.mubr.bf16.gmra.mrb[0].mxu0 %v905
      %v959 = vpop.f32.mrb[0].mxu0
      %v960 = vadd.f32 0.0, %v959
      %v961 = vpop.f32.mrb[0].mxu0
      %v962 = vpop.f32.mrb[0].mxu0
      %v963 = vadd.f32 0.0, %v962
      %v964 = vpop.f32.mrb[0].mxu0
      %965 = vmatprep.mubr.bf16.mxu0 0
      %966 = vmatmul.mubr.bf16.gmra.mrb[0].mxu0 %v908
      %v967 = vpop.f32.mrb[0].mxu0
      %v968 = vadd.f32 0.0, %v967
      %v969 = vpop.f32.mrb[0].mxu0
      %v970 = vpop.f32.mrb[0].mxu0
      %v971 = vadd.f32 0.0, %v970
      %v972 = vpop.f32.mrb[0].mxu0
      %973 = vmatprep.mubr.bf16.mxu0 0
      %974 = vmatmul.mubr.bf16.gmra.mrb[0].mxu0 %v911
      %v975 = vpop.f32.mrb[0].mxu0
      %v976 = vadd.f32 0.0, %v975
      %v977 = vpop.f32.mrb[0].mxu0
      %v978 = vpop.f32.mrb[0].mxu0
      %v979 = vadd.f32 0.0, %v978
      %v980 = vpop.f32.mrb[0].mxu0
      %981 = vmatprep.mubr.bf16.mxu0 0
      %982 = vmatmul.mubr.bf16.gmra.mrb[0].mxu0 %v914
      %v983 = vpop.f32.mrb[0].mxu0
      %v984 = vadd.f32 0.0, %v983
      %v985 = vpop.f32.mrb[0].mxu0
      %v986 = vpop.f32.mrb[0].mxu0
      %v987 = vadd.f32 0.0, %v986
      %v988 = vpop.f32.mrb[0].mxu0
      %989 = vmatprep.mubr.bf16.mxu0 0
      %990 = vmatmul.mubr.bf16.gmra.mrb[0].mxu0 %v917
      %v991 = vpop.f32.mrb[0].mxu0
      %v992 = vadd.f32 0.0, %v991
      %v993 = vpop.f32.mrb[0].mxu0
      %v994 = vpop.f32.mrb[0].mxu0
      %v995 = vadd.f32 0.0, %v994
      %v996 = vpop.f32.mrb[0].mxu0
      %997 = vmatprep.mubr.bf16.mxu0 0
      %998 = vmatmul.mubr.bf16.gmra.mrb[0].mxu0 %v920
      %v999 = vpop.f32.mrb[0].mxu0
      %v1000 = vadd.f32 0.0, %v999
      %v1001 = vpop.f32.mrb[0].mxu0
      %v1002 = vpop.f32.mrb[0].mxu0
      %v1003 = vadd.f32 0.0, %v1002
      %v1004 = vpop.f32.mrb[0].mxu0
      %1005 = vmatprep.mubr.bf16.mxu0 0
      %1006 = vmatmul.mubr.bf16.gmra.mrb[0].mxu0 %v923
      %v1007 = vpop.f32.mrb[0].mxu0
      %v1008 = vadd.f32 0.0, %v1007
      %v1009 = vpop.f32.mrb[0].mxu0
      %v1010 = vpop.f32.mrb[0].mxu0
      %v1011 = vadd.f32 0.0, %v1010
      %v1012 = vpop.f32.mrb[0].mxu0
      %1013 = vdwg.mxu0
      %v1014 = vadd.f32 %v852, %v960
      %v1015 = vadd.f32 %v853, %v963
      %v1016 = vadd.f32 %v854, %v968
      %v1017 = vadd.f32 %v855, %v971
      %v1018 = vadd.f32 %v856, %v976
      %v1019 = vadd.f32 %v857, %v979
      %v1020 = vadd.f32 %v858, %v984
      %v1021 = vadd.f32 %v859, %v987
      %v1022 = vadd.f32 %v860, %v992
      %v1023 = vadd.f32 %v861, %v995
      %v1024 = vadd.f32 %v862, %v1000
      %v1025 = vadd.f32 %v863, %v1003
      %v1026 = vadd.f32 %v864, %v1008
      %v1027 = vadd.f32 %v865, %v1011
      %v1028 = vld [vmem:[#allocation2 + $0xb] sm:$0xff]
      %v1029 = vld [vmem:[#allocation2 + $0x13] sm:$0xff]
      %v1030 = vld [vmem:[#allocation2 + $0x1b] sm:$0xff]
      %v1031 = vld [vmem:[#allocation2 + $0x23] sm:$0xff]
      %v1032 = vld [vmem:[#allocation2 + $0x2b] sm:$0xff]
      %v1033 = vld [vmem:[#allocation2 + $0x33] sm:$0xff]
      %v1034 = vld [vmem:[#allocation2 + $0x3b] sm:$0xff]
      %v1035 = vld [vmem:[#allocation2 + $0x43] sm:$0xff]
      %v1036 = vld [vmem:[#allocation2 + $0x4b] sm:$0xff]
      %v1037 = vld [vmem:[#allocation2 + $0x53] sm:$0xff]
      %v1038 = vld [vmem:[#allocation2 + $0x5b] sm:$0xff]
      %v1039 = vld [vmem:[#allocation2 + $0x63] sm:$0xff]
      %v1040 = vld [vmem:[#allocation2 + $0x6b] sm:$0xff]
      %v1041 = vld [vmem:[#allocation2 + $0x73] sm:$0xff]
      %v1042 = vpack.c.bf16 %v1029, %v1028
      %v1043 = vpack.c.bf16 %v1031, %v1030
      %v1044 = vpack.c.bf16 %v1033, %v1032
      %v1045 = vpack.c.bf16 %v1035, %v1034
      %v1046 = vpack.c.bf16 %v1037, %v1036
      %v1047 = vpack.c.bf16 %v1039, %v1038
      %v1048 = vpack.c.bf16 %v1041, %v1040
      %s1049 = scalar_lea.vmem %s2, 64
      %v1050 = vld [vmem:[%s1049] sm:$0xf]
      %v1051 = vld [vmem:[%s1049 + $0x4] sm:$0xf]
      %v1052 = vld [vmem:[%s1049 + $0x8] sm:$0xf]
      %v1053 = vld [vmem:[%s1049 + $0xc] sm:$0xf]
      %v1058 = vunpack.c.l.b16 %v1050
      %v1059 = vunpack.c.l.b16 %v1051
      %v1060 = vunpack.c.l.b16 %v1052
      %v1061 = vunpack.c.l.b16 %v1053
      %v1062 = vpack.c.b16 %v1059, %v1058
      %v1063 = vpack.c.b16 %v1061, %v1060
      %v1067 = vsel %vm352, %v1042, 0
      %v1070 = vsel %vm352, %v1043, 0
      %v1073 = vsel %vm352, %v1044, 0
      %v1076 = vsel %vm352, %v1045, 0
      %v1079 = vsel %vm352, %v1046, 0
      %v1082 = vsel %vm352, %v1047, 0
      %v1085 = vsel %vm352, %v1048, 0
      %1087 = vmatprep.subr.bf16.mxu0 0
      %1088 = vmatpush1.bf16.msra.mxu0 %v1062
      %1089 = vmatprep.subr.bf16.mxu0 0
      %1090 = vmatpush1.bf16.msra.mxu0 %v1063
      %1091 = vmatprep.subr.bf16.mxu0 0
      %1092 = vmatpush1.bf16.msra.mxu0 0
      %1093 = vmatprep.subr.bf16.mxu0 0
      %1094 = vmatpush1.bf16.msra.mxu0 0
      %1095 = vmatprep.subr.bf16.mxu0 0
      %1096 = vmatpush1.bf16.msra.mxu0 0
      %1097 = vmatprep.subr.bf16.mxu0 0
      %1098 = vmatpush1.bf16.msra.mxu0 0
      %1099 = vmatprep.subr.bf16.mxu0 0
      %1100 = vmatpush1.bf16.msra.mxu0 0
      %1101 = vmatprep.subr.bf16.mxu0 0
      %1102 = vmatpush1.bf16.msra.mxu0 0
      %1103 = vmatprep.subr.bf16.mxu0 0
      %1104 = vmatpush1.bf16.msra.mxu0 0
      %1105 = vmatprep.subr.bf16.mxu0 0
      %1106 = vmatpush1.bf16.msra.mxu0 0
      %1107 = vmatprep.subr.bf16.mxu0 0
      %1108 = vmatpush1.bf16.msra.mxu0 0
      %1109 = vmatprep.subr.bf16.mxu0 0
      %1110 = vmatpush1.bf16.msra.mxu0 0
      %1111 = vmatprep.subr.bf16.mxu0 0
      %1112 = vmatpush1.bf16.msra.mxu0 0
      %1113 = vmatprep.subr.bf16.mxu0 0
      %1114 = vmatpush1.bf16.msra.mxu0 0
      %1115 = vmatprep.subr.bf16.mxu0 0
      %1116 = vmatpush1.bf16.msra.mxu0 0
      %1117 = vmatprep.subr.bf16.mxu0 0
      %1118 = vmatpush1.bf16.msra.mxu0 0
      %1119 = vmatprep.mubr.bf16.mxu0 0
      %1120 = vmatmul.mubr.bf16.gmra.mrb[0].mxu0 %v1067
      %v1121 = vpop.f32.mrb[0].mxu0
      %v1122 = vadd.f32 0.0, %v1121
      %v1123 = vpop.f32.mrb[0].mxu0
      %v1124 = vpop.f32.mrb[0].mxu0
      %v1125 = vadd.f32 0.0, %v1124
      %v1126 = vpop.f32.mrb[0].mxu0
      %1127 = vmatprep.mubr.bf16.mxu0 0
      %1128 = vmatmul.mubr.bf16.gmra.mrb[0].mxu0 %v1070
      %v1129 = vpop.f32.mrb[0].mxu0
      %v1130 = vadd.f32 0.0, %v1129
      %v1131 = vpop.f32.mrb[0].mxu0
      %v1132 = vpop.f32.mrb[0].mxu0
      %v1133 = vadd.f32 0.0, %v1132
      %v1134 = vpop.f32.mrb[0].mxu0
      %1135 = vmatprep.mubr.bf16.mxu0 0
      %1136 = vmatmul.mubr.bf16.gmra.mrb[0].mxu0 %v1073
      %v1137 = vpop.f32.mrb[0].mxu0
      %v1138 = vadd.f32 0.0, %v1137
      %v1139 = vpop.f32.mrb[0].mxu0
      %v1140 = vpop.f32.mrb[0].mxu0
      %v1141 = vadd.f32 0.0, %v1140
      %v1142 = vpop.f32.mrb[0].mxu0
      %1143 = vmatprep.mubr.bf16.mxu0 0
      %1144 = vmatmul.mubr.bf16.gmra.mrb[0].mxu0 %v1076
      %v1145 = vpop.f32.mrb[0].mxu0
      %v1146 = vadd.f32 0.0, %v1145
      %v1147 = vpop.f32.mrb[0].mxu0
      %v1148 = vpop.f32.mrb[0].mxu0
      %v1149 = vadd.f32 0.0, %v1148
      %v1150 = vpop.f32.mrb[0].mxu0
      %1151 = vmatprep.mubr.bf16.mxu0 0
      %1152 = vmatmul.mubr.bf16.gmra.mrb[0].mxu0 %v1079
      %v1153 = vpop.f32.mrb[0].mxu0
      %v1154 = vadd.f32 0.0, %v1153
      %v1155 = vpop.f32.mrb[0].mxu0
      %v1156 = vpop.f32.mrb[0].mxu0
      %v1157 = vadd.f32 0.0, %v1156
      %v1158 = vpop.f32.mrb[0].mxu0
      %1159 = vmatprep.mubr.bf16.mxu0 0
      %1160 = vmatmul.mubr.bf16.gmra.mrb[0].mxu0 %v1082
      %v1161 = vpop.f32.mrb[0].mxu0
      %v1162 = vadd.f32 0.0, %v1161
      %v1163 = vpop.f32.mrb[0].mxu0
      %v1164 = vpop.f32.mrb[0].mxu0
      %v1165 = vadd.f32 0.0, %v1164
      %v1166 = vpop.f32.mrb[0].mxu0
      %1167 = vmatprep.mubr.bf16.mxu0 0
      %1168 = vmatmul.mubr.bf16.gmra.mrb[0].mxu0 %v1085
      %v1169 = vpop.f32.mrb[0].mxu0
      %v1170 = vadd.f32 0.0, %v1169
      %v1171 = vpop.f32.mrb[0].mxu0
      %v1172 = vpop.f32.mrb[0].mxu0
      %v1173 = vadd.f32 0.0, %v1172
      %v1174 = vpop.f32.mrb[0].mxu0
      %1175 = vdwg.mxu0
      %v1176 = vadd.f32 %v1014, %v1122
      %v1177 = vadd.f32 %v1015, %v1125
      %v1178 = vadd.f32 %v1016, %v1130
      %v1179 = vadd.f32 %v1017, %v1133
      %v1180 = vadd.f32 %v1018, %v1138
      %v1181 = vadd.f32 %v1019, %v1141
      %v1182 = vadd.f32 %v1020, %v1146
      %v1183 = vadd.f32 %v1021, %v1149
      %v1184 = vadd.f32 %v1022, %v1154
      %v1185 = vadd.f32 %v1023, %v1157
      %v1186 = vadd.f32 %v1024, %v1162
      %v1187 = vadd.f32 %v1025, %v1165
      %v1188 = vadd.f32 %v1026, %v1170
      %v1189 = vadd.f32 %v1027, %v1173
      %v1190 = vld [vmem:[#allocation2 + $0xc] sm:$0xff]
      %v1191 = vld [vmem:[#allocation2 + $0x14] sm:$0xff]
      %v1192 = vld [vmem:[#allocation2 + $0x1c] sm:$0xff]
      %v1193 = vld [vmem:[#allocation2 + $0x24] sm:$0xff]
      %v1194 = vld [vmem:[#allocation2 + $0x2c] sm:$0xff]
      %v1195 = vld [vmem:[#allocation2 + $0x34] sm:$0xff]
      %v1196 = vld [vmem:[#allocation2 + $0x3c] sm:$0xff]
      %v1197 = vld [vmem:[#allocation2 + $0x44] sm:$0xff]
      %v1198 = vld [vmem:[#allocation2 + $0x4c] sm:$0xff]
      %v1199 = vld [vmem:[#allocation2 + $0x54] sm:$0xff]
      %v1200 = vld [vmem:[#allocation2 + $0x5c] sm:$0xff]
      %v1201 = vld [vmem:[#allocation2 + $0x64] sm:$0xff]
      %v1202 = vld [vmem:[#allocation2 + $0x6c] sm:$0xff]
      %v1203 = vld [vmem:[#allocation2 + $0x74] sm:$0xff]
      %v1204 = vpack.c.bf16 %v1191, %v1190
      %v1205 = vpack.c.bf16 %v1193, %v1192
      %v1206 = vpack.c.bf16 %v1195, %v1194
      %v1207 = vpack.c.bf16 %v1197, %v1196
      %v1208 = vpack.c.bf16 %v1199, %v1198
      %v1209 = vpack.c.bf16 %v1201, %v1200
      %v1210 = vpack.c.bf16 %v1203, %v1202
      %s1211 = scalar_lea.vmem %s2, 80
      %v1212 = vld [vmem:[%s1211] sm:$0xf]
      %v1213 = vld [vmem:[%s1211 + $0x4] sm:$0xf]
      %v1214 = vld [vmem:[%s1211 + $0x8] sm:$0xf]
      %v1215 = vld [vmem:[%s1211 + $0xc] sm:$0xf]
      %v1220 = vunpack.c.l.b16 %v1212
      %v1221 = vunpack.c.l.b16 %v1213
      %v1222 = vunpack.c.l.b16 %v1214
      %v1223 = vunpack.c.l.b16 %v1215
      %v1224 = vpack.c.b16 %v1221, %v1220
      %v1225 = vpack.c.b16 %v1223, %v1222
      %v1229 = vsel %vm352, %v1204, 0
      %v1232 = vsel %vm352, %v1205, 0
      %v1235 = vsel %vm352, %v1206, 0
      %v1238 = vsel %vm352, %v1207, 0
      %v1241 = vsel %vm352, %v1208, 0
      %v1244 = vsel %vm352, %v1209, 0
      %v1247 = vsel %vm352, %v1210, 0
      %1249 = vmatprep.subr.bf16.mxu0 0
      %1250 = vmatpush1.bf16.msra.mxu0 %v1224
      %1251 = vmatprep.subr.bf16.mxu0 0
      %1252 = vmatpush1.bf16.msra.mxu0 %v1225
      %1253 = vmatprep.subr.bf16.mxu0 0
      %1254 = vmatpush1.bf16.msra.mxu0 0
      %1255 = vmatprep.subr.bf16.mxu0 0
      %1256 = vmatpush1.bf16.msra.mxu0 0
      %1257 = vmatprep.subr.bf16.mxu0 0
      %1258 = vmatpush1.bf16.msra.mxu0 0
      %1259 = vmatprep.subr.bf16.mxu0 0
      %1260 = vmatpush1.bf16.msra.mxu0 0
      %1261 = vmatprep.subr.bf16.mxu0 0
      %1262 = vmatpush1.bf16.msra.mxu0 0
      %1263 = vmatprep.subr.bf16.mxu0 0
      %1264 = vmatpush1.bf16.msra.mxu0 0
      %1265 = vmatprep.subr.bf16.mxu0 0
      %1266 = vmatpush1.bf16.msra.mxu0 0
      %1267 = vmatprep.subr.bf16.mxu0 0
      %1268 = vmatpush1.bf16.msra.mxu0 0
      %1269 = vmatprep.subr.bf16.mxu0 0
      %1270 = vmatpush1.bf16.msra.mxu0 0
      %1271 = vmatprep.subr.bf16.mxu0 0
      %1272 = vmatpush1.bf16.msra.mxu0 0
      %1273 = vmatprep.subr.bf16.mxu0 0
      %1274 = vmatpush1.bf16.msra.mxu0 0
      %1275 = vmatprep.subr.bf16.mxu0 0
      %1276 = vmatpush1.bf16.msra.mxu0 0
      %1277 = vmatprep.subr.bf16.mxu0 0
      %1278 = vmatpush1.bf16.msra.mxu0 0
      %1279 = vmatprep.subr.bf16.mxu0 0
      %1280 = vmatpush1.bf16.msra.mxu0 0
      %1281 = vmatprep.mubr.bf16.mxu0 0
      %1282 = vmatmul.mubr.bf16.gmra.mrb[0].mxu0 %v1229
      %v1283 = vpop.f32.mrb[0].mxu0
      %v1284 = vadd.f32 0.0, %v1283
      %v1285 = vpop.f32.mrb[0].mxu0
      %v1286 = vpop.f32.mrb[0].mxu0
      %v1287 = vadd.f32 0.0, %v1286
      %v1288 = vpop.f32.mrb[0].mxu0
      %1289 = vmatprep.mubr.bf16.mxu0 0
      %1290 = vmatmul.mubr.bf16.gmra.mrb[0].mxu0 %v1232
      %v1291 = vpop.f32.mrb[0].mxu0
      %v1292 = vadd.f32 0.0, %v1291
      %v1293 = vpop.f32.mrb[0].mxu0
      %v1294 = vpop.f32.mrb[0].mxu0
      %v1295 = vadd.f32 0.0, %v1294
      %v1296 = vpop.f32.mrb[0].mxu0
      %1297 = vmatprep.mubr.bf16.mxu0 0
      %1298 = vmatmul.mubr.bf16.gmra.mrb[0].mxu0 %v1235
      %v1299 = vpop.f32.mrb[0].mxu0
      %v1300 = vadd.f32 0.0, %v1299
      %v1301 = vpop.f32.mrb[0].mxu0
      %v1302 = vpop.f32.mrb[0].mxu0
      %v1303 = vadd.f32 0.0, %v1302
      %v1304 = vpop.f32.mrb[0].mxu0
      %1305 = vmatprep.mubr.bf16.mxu0 0
      %1306 = vmatmul.mubr.bf16.gmra.mrb[0].mxu0 %v1238
      %v1307 = vpop.f32.mrb[0].mxu0
      %v1308 = vadd.f32 0.0, %v1307
      %v1309 = vpop.f32.mrb[0].mxu0
      %v1310 = vpop.f32.mrb[0].mxu0
      %v1311 = vadd.f32 0.0, %v1310
      %v1312 = vpop.f32.mrb[0].mxu0
      %1313 = vmatprep.mubr.bf16.mxu0 0
      %1314 = vmatmul.mubr.bf16.gmra.mrb[0].mxu0 %v1241
      %v1315 = vpop.f32.mrb[0].mxu0
      %v1316 = vadd.f32 0.0, %v1315
      %v1317 = vpop.f32.mrb[0].mxu0
      %v1318 = vpop.f32.mrb[0].mxu0
      %v1319 = vadd.f32 0.0, %v1318
      %v1320 = vpop.f32.mrb[0].mxu0
      %1321 = vmatprep.mubr.bf16.mxu0 0
      %1322 = vmatmul.mubr.bf16.gmra.mrb[0].mxu0 %v1244
      %v1323 = vpop.f32.mrb[0].mxu0
      %v1324 = vadd.f32 0.0, %v1323
      %v1325 = vpop.f32.mrb[0].mxu0
      %v1326 = vpop.f32.mrb[0].mxu0
      %v1327 = vadd.f32 0.0, %v1326
      %v1328 = vpop.f32.mrb[0].mxu0
      %1329 = vmatprep.mubr.bf16.mxu0 0
      %1330 = vmatmul.mubr.bf16.gmra.mrb[0].mxu0 %v1247
      %v1331 = vpop.f32.mrb[0].mxu0
      %v1332 = vadd.f32 0.0, %v1331
      %v1333 = vpop.f32.mrb[0].mxu0
      %v1334 = vpop.f32.mrb[0].mxu0
      %v1335 = vadd.f32 0.0, %v1334
      %v1336 = vpop.f32.mrb[0].mxu0
      %1337 = vdwg.mxu0
      %v1338 = vadd.f32 %v1176, %v1284
      %v1339 = vadd.f32 %v1177, %v1287
      %v1340 = vadd.f32 %v1178, %v1292
      %v1341 = vadd.f32 %v1179, %v1295
      %v1342 = vadd.f32 %v1180, %v1300
      %v1343 = vadd.f32 %v1181, %v1303
      %v1344 = vadd.f32 %v1182, %v1308
      %v1345 = vadd.f32 %v1183, %v1311
      %v1346 = vadd.f32 %v1184, %v1316
      %v1347 = vadd.f32 %v1185, %v1319
      %v1348 = vadd.f32 %v1186, %v1324
      %v1349 = vadd.f32 %v1187, %v1327
      %v1350 = vadd.f32 %v1188, %v1332
      %v1351 = vadd.f32 %v1189, %v1335
      %v1352 = vld [vmem:[#allocation2 + $0x14] sm:$0xff]
      %v1353 = vld [vmem:[#allocation2 + $0x1c] sm:$0xff]
      %v1354 = vld [vmem:[#allocation2 + $0x24] sm:$0xff]
      %v1355 = vld [vmem:[#allocation2 + $0x2c] sm:$0xff]
      %v1356 = vld [vmem:[#allocation2 + $0x34] sm:$0xff]
      %v1357 = vld [vmem:[#allocation2 + $0x3c] sm:$0xff]
      %v1358 = vld [vmem:[#allocation2 + $0x44] sm:$0xff]
      %v1359 = vld [vmem:[#allocation2 + $0x4c] sm:$0xff]
      %v1360 = vld [vmem:[#allocation2 + $0x54] sm:$0xff]
      %v1361 = vld [vmem:[#allocation2 + $0x5c] sm:$0xff]
      %v1362 = vld [vmem:[#allocation2 + $0x64] sm:$0xff]
      %v1363 = vld [vmem:[#allocation2 + $0x6c] sm:$0xff]
      %v1364 = vld [vmem:[#allocation2 + $0x74] sm:$0xff]
      %v1365 = vld [vmem:[#allocation2 + $0x7c] sm:$0xff]
      %v1366 = vpack.c.bf16 %v1353, %v1352
      %v1367 = vpack.c.bf16 %v1355, %v1354
      %v1368 = vpack.c.bf16 %v1357, %v1356
      %v1369 = vpack.c.bf16 %v1359, %v1358
      %v1370 = vpack.c.bf16 %v1361, %v1360
      %v1371 = vpack.c.bf16 %v1363, %v1362
      %v1372 = vpack.c.bf16 %v1365, %v1364
      %s1373 = scalar_lea.vmem %s2, 96
      %v1374 = vld [vmem:[%s1373] sm:$0xf]
      %v1375 = vld [vmem:[%s1373 + $0x4] sm:$0xf]
      %v1376 = vld [vmem:[%s1373 + $0x8] sm:$0xf]
      %v1377 = vld [vmem:[%s1373 + $0xc] sm:$0xf]
      %v1382 = vunpack.c.l.b16 %v1374
      %v1383 = vunpack.c.l.b16 %v1375
      %v1384 = vunpack.c.l.b16 %v1376
      %v1385 = vunpack.c.l.b16 %v1377
      %v1386 = vpack.c.b16 %v1383, %v1382
      %v1387 = vpack.c.b16 %v1385, %v1384
      %v1391 = vsel %vm352, %v1366, 0
      %v1394 = vsel %vm352, %v1367, 0
      %v1397 = vsel %vm352, %v1368, 0
      %v1400 = vsel %vm352, %v1369, 0
      %v1403 = vsel %vm352, %v1370, 0
      %v1406 = vsel %vm352, %v1371, 0
      %v1409 = vsel %vm352, %v1372, 0
      %1411 = vmatprep.subr.bf16.mxu0 0
      %1412 = vmatpush1.bf16.msra.mxu0 %v1386
      %1413 = vmatprep.subr.bf16.mxu0 0
      %1414 = vmatpush1.bf16.msra.mxu0 %v1387
      %1415 = vmatprep.subr.bf16.mxu0 0
      %1416 = vmatpush1.bf16.msra.mxu0 0
      %1417 = vmatprep.subr.bf16.mxu0 0
      %1418 = vmatpush1.bf16.msra.mxu0 0
      %1419 = vmatprep.subr.bf16.mxu0 0
      %1420 = vmatpush1.bf16.msra.mxu0 0
      %1421 = vmatprep.subr.bf16.mxu0 0
      %1422 = vmatpush1.bf16.msra.mxu0 0
      %1423 = vmatprep.subr.bf16.mxu0 0
      %1424 = vmatpush1.bf16.msra.mxu0 0
      %1425 = vmatprep.subr.bf16.mxu0 0
      %1426 = vmatpush1.bf16.msra.mxu0 0
      %1427 = vmatprep.subr.bf16.mxu0 0
      %1428 = vmatpush1.bf16.msra.mxu0 0
      %1429 = vmatprep.subr.bf16.mxu0 0
      %1430 = vmatpush1.bf16.msra.mxu0 0
      %1431 = vmatprep.subr.bf16.mxu0 0
      %1432 = vmatpush1.bf16.msra.mxu0 0
      %1433 = vmatprep.subr.bf16.mxu0 0
      %1434 = vmatpush1.bf16.msra.mxu0 0
      %1435 = vmatprep.subr.bf16.mxu0 0
      %1436 = vmatpush1.bf16.msra.mxu0 0
      %1437 = vmatprep.subr.bf16.mxu0 0
      %1438 = vmatpush1.bf16.msra.mxu0 0
      %1439 = vmatprep.subr.bf16.mxu0 0
      %1440 = vmatpush1.bf16.msra.mxu0 0
      %1441 = vmatprep.subr.bf16.mxu0 0
      %1442 = vmatpush1.bf16.msra.mxu0 0
      %1443 = vmatprep.mubr.bf16.mxu0 0
      %1444 = vmatmul.mubr.bf16.gmra.mrb[0].mxu0 %v1391
      %v1445 = vpop.f32.mrb[0].mxu0
      %v1446 = vadd.f32 0.0, %v1445
      %v1447 = vpop.f32.mrb[0].mxu0
      %v1448 = vpop.f32.mrb[0].mxu0
      %v1449 = vadd.f32 0.0, %v1448
      %v1450 = vpop.f32.mrb[0].mxu0
      %1451 = vmatprep.mubr.bf16.mxu0 0
      %1452 = vmatmul.mubr.bf16.gmra.mrb[0].mxu0 %v1394
      %v1453 = vpop.f32.mrb[0].mxu0
      %v1454 = vadd.f32 0.0, %v1453
      %v1455 = vpop.f32.mrb[0].mxu0
      %v1456 = vpop.f32.mrb[0].mxu0
      %v1457 = vadd.f32 0.0, %v1456
      %v1458 = vpop.f32.mrb[0].mxu0
      %1459 = vmatprep.mubr.bf16.mxu0 0
      %1460 = vmatmul.mubr.bf16.gmra.mrb[0].mxu0 %v1397
      %v1461 = vpop.f32.mrb[0].mxu0
      %v1462 = vadd.f32 0.0, %v1461
      %v1463 = vpop.f32.mrb[0].mxu0
      %v1464 = vpop.f32.mrb[0].mxu0
      %v1465 = vadd.f32 0.0, %v1464
      %v1466 = vpop.f32.mrb[0].mxu0
      %1467 = vmatprep.mubr.bf16.mxu0 0
      %1468 = vmatmul.mubr.bf16.gmra.mrb[0].mxu0 %v1400
      %v1469 = vpop.f32.mrb[0].mxu0
      %v1470 = vadd.f32 0.0, %v1469
      %v1471 = vpop.f32.mrb[0].mxu0
      %v1472 = vpop.f32.mrb[0].mxu0
      %v1473 = vadd.f32 0.0, %v1472
      %v1474 = vpop.f32.mrb[0].mxu0
      %1475 = vmatprep.mubr.bf16.mxu0 0
      %1476 = vmatmul.mubr.bf16.gmra.mrb[0].mxu0 %v1403
      %v1477 = vpop.f32.mrb[0].mxu0
      %v1478 = vadd.f32 0.0, %v1477
      %v1479 = vpop.f32.mrb[0].mxu0
      %v1480 = vpop.f32.mrb[0].mxu0
      %v1481 = vadd.f32 0.0, %v1480
      %v1482 = vpop.f32.mrb[0].mxu0
      %1483 = vmatprep.mubr.bf16.mxu0 0
      %1484 = vmatmul.mubr.bf16.gmra.mrb[0].mxu0 %v1406
      %v1485 = vpop.f32.mrb[0].mxu0
      %v1486 = vadd.f32 0.0, %v1485
      %v1487 = vpop.f32.mrb[0].mxu0
      %v1488 = vpop.f32.mrb[0].mxu0
      %v1489 = vadd.f32 0.0, %v1488
      %v1490 = vpop.f32.mrb[0].mxu0
      %1491 = vmatprep.mubr.bf16.mxu0 0
      %1492 = vmatmul.mubr.bf16.gmra.mrb[0].mxu0 %v1409
      %v1493 = vpop.f32.mrb[0].mxu0
      %v1494 = vadd.f32 0.0, %v1493
      %v1495 = vpop.f32.mrb[0].mxu0
      %v1496 = vpop.f32.mrb[0].mxu0
      %v1497 = vadd.f32 0.0, %v1496
      %v1498 = vpop.f32.mrb[0].mxu0
      %1499 = vdwg.mxu0
      %v1500 = vadd.f32 %v1338, %v1446
      %v1501 = vadd.f32 %v1339, %v1449
      %v1502 = vadd.f32 %v1340, %v1454
      %v1503 = vadd.f32 %v1341, %v1457
      %v1504 = vadd.f32 %v1342, %v1462
      %v1505 = vadd.f32 %v1343, %v1465
      %v1506 = vadd.f32 %v1344, %v1470
      %v1507 = vadd.f32 %v1345, %v1473
      %v1508 = vadd.f32 %v1346, %v1478
      %v1509 = vadd.f32 %v1347, %v1481
      %v1510 = vadd.f32 %v1348, %v1486
      %v1511 = vadd.f32 %v1349, %v1489
      %v1512 = vadd.f32 %v1350, %v1494
      %v1513 = vadd.f32 %v1351, %v1497
      %v1514 = vld [vmem:[#allocation2 + $0x15] sm:$0xff]
      %v1515 = vld [vmem:[#allocation2 + $0x1d] sm:$0xff]
      %v1516 = vld [vmem:[#allocation2 + $0x25] sm:$0xff]
      %v1517 = vld [vmem:[#allocation2 + $0x2d] sm:$0xff]
      %v1518 = vld [vmem:[#allocation2 + $0x35] sm:$0xff]
      %v1519 = vld [vmem:[#allocation2 + $0x3d] sm:$0xff]
      %v1520 = vld [vmem:[#allocation2 + $0x45] sm:$0xff]
      %v1521 = vld [vmem:[#allocation2 + $0x4d] sm:$0xff]
      %v1522 = vld [vmem:[#allocation2 + $0x55] sm:$0xff]
      %v1523 = vld [vmem:[#allocation2 + $0x5d] sm:$0xff]
      %v1524 = vld [vmem:[#allocation2 + $0x65] sm:$0xff]
      %v1525 = vld [vmem:[#allocation2 + $0x6d] sm:$0xff]
      %v1526 = vld [vmem:[#allocation2 + $0x75] sm:$0xff]
      %v1527 = vld [vmem:[#allocation2 + $0x7d] sm:$0xff]
      %v1528 = vpack.c.bf16 %v1515, %v1514
      %v1529 = vpack.c.bf16 %v1517, %v1516
      %v1530 = vpack.c.bf16 %v1519, %v1518
      %v1531 = vpack.c.bf16 %v1521, %v1520
      %v1532 = vpack.c.bf16 %v1523, %v1522
      %v1533 = vpack.c.bf16 %v1525, %v1524
      %v1534 = vpack.c.bf16 %v1527, %v1526
      %s1535 = scalar_lea.vmem %s2, 112
      %v1536 = vld [vmem:[%s1535] sm:$0xf]
      %v1537 = vld [vmem:[%s1535 + $0x4] sm:$0xf]
      %v1538 = vld [vmem:[%s1535 + $0x8] sm:$0xf]
      %v1539 = vld [vmem:[%s1535 + $0xc] sm:$0xf]
      %v1544 = vunpack.c.l.b16 %v1536
      %v1545 = vunpack.c.l.b16 %v1537
      %v1546 = vunpack.c.l.b16 %v1538
      %v1547 = vunpack.c.l.b16 %v1539
      %v1548 = vpack.c.b16 %v1545, %v1544
      %v1549 = vpack.c.b16 %v1547, %v1546
      %v1553 = vsel %vm352, %v1528, 0
      %v1556 = vsel %vm352, %v1529, 0
      %v1559 = vsel %vm352, %v1530, 0
      %v1562 = vsel %vm352, %v1531, 0
      %v1565 = vsel %vm352, %v1532, 0
      %v1568 = vsel %vm352, %v1533, 0
      %v1571 = vsel %vm352, %v1534, 0
      %1573 = vmatprep.subr.bf16.mxu0 0
      %1574 = vmatpush1.bf16.msra.mxu0 %v1548
      %1575 = vmatprep.subr.bf16.mxu0 0
      %1576 = vmatpush1.bf16.msra.mxu0 %v1549
      %1577 = vmatprep.subr.bf16.mxu0 0
      %1578 = vmatpush1.bf16.msra.mxu0 0
      %1579 = vmatprep.subr.bf16.mxu0 0
      %1580 = vmatpush1.bf16.msra.mxu0 0
      %1581 = vmatprep.subr.bf16.mxu0 0
      %1582 = vmatpush1.bf16.msra.mxu0 0
      %1583 = vmatprep.subr.bf16.mxu0 0
      %1584 = vmatpush1.bf16.msra.mxu0 0
      %1585 = vmatprep.subr.bf16.mxu0 0
      %1586 = vmatpush1.bf16.msra.mxu0 0
      %1587 = vmatprep.subr.bf16.mxu0 0
      %1588 = vmatpush1.bf16.msra.mxu0 0
      %1589 = vmatprep.subr.bf16.mxu0 0
      %1590 = vmatpush1.bf16.msra.mxu0 0
      %1591 = vmatprep.subr.bf16.mxu0 0
      %1592 = vmatpush1.bf16.msra.mxu0 0
      %1593 = vmatprep.subr.bf16.mxu0 0
      %1594 = vmatpush1.bf16.msra.mxu0 0
      %1595 = vmatprep.subr.bf16.mxu0 0
      %1596 = vmatpush1.bf16.msra.mxu0 0
      %1597 = vmatprep.subr.bf16.mxu0 0
      %1598 = vmatpush1.bf16.msra.mxu0 0
      %1599 = vmatprep.subr.bf16.mxu0 0
      %1600 = vmatpush1.bf16.msra.mxu0 0
      %1601 = vmatprep.subr.bf16.mxu0 0
      %1602 = vmatpush1.bf16.msra.mxu0 0
      %1603 = vmatprep.subr.bf16.mxu0 0
      %1604 = vmatpush1.bf16.msra.mxu0 0
      %1605 = vmatprep.mubr.bf16.mxu0 0
      %1606 = vmatmul.mubr.bf16.gmra.mrb[0].mxu0 %v1553
      %v1607 = vpop.f32.mrb[0].mxu0
      %v1608 = vadd.f32 0.0, %v1607
      %v1609 = vpop.f32.mrb[0].mxu0
      %v1610 = vpop.f32.mrb[0].mxu0
      %v1611 = vadd.f32 0.0, %v1610
      %v1612 = vpop.f32.mrb[0].mxu0
      %1613 = vmatprep.mubr.bf16.mxu0 0
      %1614 = vmatmul.mubr.bf16.gmra.mrb[0].mxu0 %v1556
      %v1615 = vpop.f32.mrb[0].mxu0
      %v1616 = vadd.f32 0.0, %v1615
      %v1617 = vpop.f32.mrb[0].mxu0
      %v1618 = vpop.f32.mrb[0].mxu0
      %v1619 = vadd.f32 0.0, %v1618
      %v1620 = vpop.f32.mrb[0].mxu0
      %1621 = vmatprep.mubr.bf16.mxu0 0
      %1622 = vmatmul.mubr.bf16.gmra.mrb[0].mxu0 %v1559
      %v1623 = vpop.f32.mrb[0].mxu0
      %v1624 = vadd.f32 0.0, %v1623
      %v1625 = vpop.f32.mrb[0].mxu0
      %v1626 = vpop.f32.mrb[0].mxu0
      %v1627 = vadd.f32 0.0, %v1626
      %v1628 = vpop.f32.mrb[0].mxu0
      %1629 = vmatprep.mubr.bf16.mxu0 0
      %1630 = vmatmul.mubr.bf16.gmra.mrb[0].mxu0 %v1562
      %v1631 = vpop.f32.mrb[0].mxu0
      %v1632 = vadd.f32 0.0, %v1631
      %v1633 = vpop.f32.mrb[0].mxu0
      %v1634 = vpop.f32.mrb[0].mxu0
      %v1635 = vadd.f32 0.0, %v1634
      %v1636 = vpop.f32.mrb[0].mxu0
      %1637 = vmatprep.mubr.bf16.mxu0 0
      %1638 = vmatmul.mubr.bf16.gmra.mrb[0].mxu0 %v1565
      %v1639 = vpop.f32.mrb[0].mxu0
      %v1640 = vadd.f32 0.0, %v1639
      %v1641 = vpop.f32.mrb[0].mxu0
      %v1642 = vpop.f32.mrb[0].mxu0
      %v1643 = vadd.f32 0.0, %v1642
      %v1644 = vpop.f32.mrb[0].mxu0
      %1645 = vmatprep.mubr.bf16.mxu0 0
      %1646 = vmatmul.mubr.bf16.gmra.mrb[0].mxu0 %v1568
      %v1647 = vpop.f32.mrb[0].mxu0
      %v1648 = vadd.f32 0.0, %v1647
      %v1649 = vpop.f32.mrb[0].mxu0
      %v1650 = vpop.f32.mrb[0].mxu0
      %v1651 = vadd.f32 0.0, %v1650
      %v1652 = vpop.f32.mrb[0].mxu0
      %1653 = vmatprep.mubr.bf16.mxu0 0
      %1654 = vmatmul.mubr.bf16.gmra.mrb[0].mxu0 %v1571
      %v1655 = vpop.f32.mrb[0].mxu0
      %v1656 = vadd.f32 0.0, %v1655
      %v1657 = vpop.f32.mrb[0].mxu0
      %v1658 = vpop.f32.mrb[0].mxu0
      %v1659 = vadd.f32 0.0, %v1658
      %v1660 = vpop.f32.mrb[0].mxu0
      %1661 = vdwg.mxu0
      %v1662 = vadd.f32 %v1500, %v1608
      %v1663 = vadd.f32 %v1501, %v1611
      %v1664 = vadd.f32 %v1502, %v1616
      %v1665 = vadd.f32 %v1503, %v1619
      %v1666 = vadd.f32 %v1504, %v1624
      %v1667 = vadd.f32 %v1505, %v1627
      %v1668 = vadd.f32 %v1506, %v1632
      %v1669 = vadd.f32 %v1507, %v1635
      %v1670 = vadd.f32 %v1508, %v1640
      %v1671 = vadd.f32 %v1509, %v1643
      %v1672 = vadd.f32 %v1510, %v1648
      %v1673 = vadd.f32 %v1511, %v1651
      %v1674 = vadd.f32 %v1512, %v1656
      %v1675 = vadd.f32 %v1513, %v1659
      %v1676 = vld [vmem:[#allocation2 + $0x16] sm:$0xff]
      %v1677 = vld [vmem:[#allocation2 + $0x1e] sm:$0xff]
      %v1678 = vld [vmem:[#allocation2 + $0x26] sm:$0xff]
      %v1679 = vld [vmem:[#allocation2 + $0x2e] sm:$0xff]
      %v1680 = vld [vmem:[#allocation2 + $0x36] sm:$0xff]
      %v1681 = vld [vmem:[#allocation2 + $0x3e] sm:$0xff]
      %v1682 = vld [vmem:[#allocation2 + $0x46] sm:$0xff]
      %v1683 = vld [vmem:[#allocation2 + $0x4e] sm:$0xff]
      %v1684 = vld [vmem:[#allocation2 + $0x56] sm:$0xff]
      %v1685 = vld [vmem:[#allocation2 + $0x5e] sm:$0xff]
      %v1686 = vld [vmem:[#allocation2 + $0x66] sm:$0xff]
      %v1687 = vld [vmem:[#allocation2 + $0x6e] sm:$0xff]
      %v1688 = vld [vmem:[#allocation2 + $0x76] sm:$0xff]
      %v1689 = vld [vmem:[#allocation2 + $0x7e] sm:$0xff]
      %v1690 = vpack.c.bf16 %v1677, %v1676
      %v1691 = vpack.c.bf16 %v1679, %v1678
      %v1692 = vpack.c.bf16 %v1681, %v1680
      %v1693 = vpack.c.bf16 %v1683, %v1682
      %v1694 = vpack.c.bf16 %v1685, %v1684
      %v1695 = vpack.c.bf16 %v1687, %v1686
      %v1696 = vpack.c.bf16 %v1689, %v1688
      %s1697 = scalar_lea.vmem %s2, 128
      %v1698 = vld [vmem:[%s1697] sm:$0xf]
      %v1699 = vld [vmem:[%s1697 + $0x4] sm:$0xf]
      %v1700 = vld [vmem:[%s1697 + $0x8] sm:$0xf]
      %v1701 = vld [vmem:[%s1697 + $0xc] sm:$0xf]
      %v1706 = vunpack.c.l.b16 %v1698
      %v1707 = vunpack.c.l.b16 %v1699
      %v1708 = vunpack.c.l.b16 %v1700
      %v1709 = vunpack.c.l.b16 %v1701
      %v1710 = vpack.c.b16 %v1707, %v1706
      %v1711 = vpack.c.b16 %v1709, %v1708
      %v1715 = vsel %vm352, %v1690, 0
      %v1718 = vsel %vm352, %v1691, 0
      %v1721 = vsel %vm352, %v1692, 0
      %v1724 = vsel %vm352, %v1693, 0
      %v1727 = vsel %vm352, %v1694, 0
      %v1730 = vsel %vm352, %v1695, 0
      %v1733 = vsel %vm352, %v1696, 0
      %1735 = vmatprep.subr.bf16.mxu0 0
      %1736 = vmatpush1.bf16.msra.mxu0 %v1710
      %1737 = vmatprep.subr.bf16.mxu0 0
      %1738 = vmatpush1.bf16.msra.mxu0 %v1711
      %1739 = vmatprep.subr.bf16.mxu0 0
      %1740 = vmatpush1.bf16.msra.mxu0 0
      %1741 = vmatprep.subr.bf16.mxu0 0
      %1742 = vmatpush1.bf16.msra.mxu0 0
      %1743 = vmatprep.subr.bf16.mxu0 0
      %1744 = vmatpush1.bf16.msra.mxu0 0
      %1745 = vmatprep.subr.bf16.mxu0 0
      %1746 = vmatpush1.bf16.msra.mxu0 0
      %1747 = vmatprep.subr.bf16.mxu0 0
      %1748 = vmatpush1.bf16.msra.mxu0 0
      %1749 = vmatprep.subr.bf16.mxu0 0
      %1750 = vmatpush1.bf16.msra.mxu0 0
      %1751 = vmatprep.subr.bf16.mxu0 0
      %1752 = vmatpush1.bf16.msra.mxu0 0
      %1753 = vmatprep.subr.bf16.mxu0 0
      %1754 = vmatpush1.bf16.msra.mxu0 0
      %1755 = vmatprep.subr.bf16.mxu0 0
      %1756 = vmatpush1.bf16.msra.mxu0 0
      %1757 = vmatprep.subr.bf16.mxu0 0
      %1758 = vmatpush1.bf16.msra.mxu0 0
      %1759 = vmatprep.subr.bf16.mxu0 0
      %1760 = vmatpush1.bf16.msra.mxu0 0
      %1761 = vmatprep.subr.bf16.mxu0 0
      %1762 = vmatpush1.bf16.msra.mxu0 0
      %1763 = vmatprep.subr.bf16.mxu0 0
      %1764 = vmatpush1.bf16.msra.mxu0 0
      %1765 = vmatprep.subr.bf16.mxu0 0
      %1766 = vmatpush1.bf16.msra.mxu0 0
      %1767 = vmatprep.mubr.bf16.mxu0 0
      %1768 = vmatmul.mubr.bf16.gmra.mrb[0].mxu0 %v1715
      %v1769 = vpop.f32.mrb[0].mxu0
      %v1770 = vadd.f32 0.0, %v1769
      %v1771 = vpop.f32.mrb[0].mxu0
      %v1772 = vpop.f32.mrb[0].mxu0
      %v1773 = vadd.f32 0.0, %v1772
      %v1774 = vpop.f32.mrb[0].mxu0
      %1775 = vmatprep.mubr.bf16.mxu0 0
      %1776 = vmatmul.mubr.bf16.gmra.mrb[0].mxu0 %v1718
      %v1777 = vpop.f32.mrb[0].mxu0
      %v1778 = vadd.f32 0.0, %v1777
      %v1779 = vpop.f32.mrb[0].mxu0
      %v1780 = vpop.f32.mrb[0].mxu0
      %v1781 = vadd.f32 0.0, %v1780
      %v1782 = vpop.f32.mrb[0].mxu0
      %1783 = vmatprep.mubr.bf16.mxu0 0
      %1784 = vmatmul.mubr.bf16.gmra.mrb[0].mxu0 %v1721
      %v1785 = vpop.f32.mrb[0].mxu0
      %v1786 = vadd.f32 0.0, %v1785
      %v1787 = vpop.f32.mrb[0].mxu0
      %v1788 = vpop.f32.mrb[0].mxu0
      %v1789 = vadd.f32 0.0, %v1788
      %v1790 = vpop.f32.mrb[0].mxu0
      %1791 = vmatprep.mubr.bf16.mxu0 0
      %1792 = vmatmul.mubr.bf16.gmra.mrb[0].mxu0 %v1724
      %v1793 = vpop.f32.mrb[0].mxu0
      %v1794 = vadd.f32 0.0, %v1793
      %v1795 = vpop.f32.mrb[0].mxu0
      %v1796 = vpop.f32.mrb[0].mxu0
      %v1797 = vadd.f32 0.0, %v1796
      %v1798 = vpop.f32.mrb[0].mxu0
      %1799 = vmatprep.mubr.bf16.mxu0 0
      %1800 = vmatmul.mubr.bf16.gmra.mrb[0].mxu0 %v1727
      %v1801 = vpop.f32.mrb[0].mxu0
      %v1802 = vadd.f32 0.0, %v1801
      %v1803 = vpop.f32.mrb[0].mxu0
      %v1804 = vpop.f32.mrb[0].mxu0
      %v1805 = vadd.f32 0.0, %v1804
      %v1806 = vpop.f32.mrb[0].mxu0
      %1807 = vmatprep.mubr.bf16.mxu0 0
      %1808 = vmatmul.mubr.bf16.gmra.mrb[0].mxu0 %v1730
      %v1809 = vpop.f32.mrb[0].mxu0
      %v1810 = vadd.f32 0.0, %v1809
      %v1811 = vpop.f32.mrb[0].mxu0
      %v1812 = vpop.f32.mrb[0].mxu0
      %v1813 = vadd.f32 0.0, %v1812
      %v1814 = vpop.f32.mrb[0].mxu0
      %1815 = vmatprep.mubr.bf16.mxu0 0
      %1816 = vmatmul.mubr.bf16.gmra.mrb[0].mxu0 %v1733
      %v1817 = vpop.f32.mrb[0].mxu0
      %v1818 = vadd.f32 0.0, %v1817
      %v1819 = vpop.f32.mrb[0].mxu0
      %v1820 = vpop.f32.mrb[0].mxu0
      %v1821 = vadd.f32 0.0, %v1820
      %v1822 = vpop.f32.mrb[0].mxu0
      %1823 = vdwg.mxu0
      %v1824 = vadd.f32 %v1662, %v1770
      %v1825 = vadd.f32 %v1663, %v1773
      %v1826 = vadd.f32 %v1664, %v1778
      %v1827 = vadd.f32 %v1665, %v1781
      %v1828 = vadd.f32 %v1666, %v1786
      %v1829 = vadd.f32 %v1667, %v1789
      %v1830 = vadd.f32 %v1668, %v1794
      %v1831 = vadd.f32 %v1669, %v1797
      %v1832 = vadd.f32 %v1670, %v1802
      %v1833 = vadd.f32 %v1671, %v1805
      %v1834 = vadd.f32 %v1672, %v1810
      %v1835 = vadd.f32 %v1673, %v1813
      %v1836 = vadd.f32 %v1674, %v1818
      %v1837 = vadd.f32 %v1675, %v1821
      %v1838 = vpack.c.bf16 %v1825, %v1824
      %v1839 = vpack.c.bf16 %v1827, %v1826
      %v1840 = vpack.c.bf16 %v1829, %v1828
      %v1841 = vpack.c.bf16 %v1831, %v1830
      %v1842 = vpack.c.bf16 %v1833, %v1832
      %v1843 = vpack.c.bf16 %v1835, %v1834
      %v1844 = vpack.c.bf16 %v1837, %v1836
      %v1852 = vunpack.c.l.b16 %v1838
      %v1853 = vunpack.c.h.b16 %v1838
      %v1854 = vunpack.c.l.b16 %v1839
      %v1855 = vunpack.c.h.b16 %v1839
      %v1856 = vunpack.c.l.b16 %v1840
      %v1857 = vunpack.c.h.b16 %v1840
      %v1858 = vunpack.c.l.b16 %v1841
      %v1859 = vunpack.c.h.b16 %v1841
      %v1860 = vunpack.c.l.b16 %v1842
      %v1861 = vunpack.c.h.b16 %v1842
      %v1862 = vunpack.c.l.b16 %v1843
      %v1863 = vunpack.c.h.b16 %v1843
      %v1864 = vunpack.c.l.b16 %v1844
      %v1865 = vunpack.c.h.b16 %v1844
      %v1866 = vpack.c.b16 %v1852, %v1852
      %v1867 = vpack.c.b16 %v1853, %v1853
      %v1868 = vpack.c.b16 %v1854, %v1854
      %v1869 = vpack.c.b16 %v1855, %v1855
      %v1870 = vpack.c.b16 %v1856, %v1856
      %v1871 = vpack.c.b16 %v1857, %v1857
      %v1872 = vpack.c.b16 %v1858, %v1858
      %v1873 = vpack.c.b16 %v1859, %v1859
      %v1874 = vpack.c.b16 %v1860, %v1860
      %v1875 = vpack.c.b16 %v1861, %v1861
      %v1876 = vpack.c.b16 %v1862, %v1862
      %v1877 = vpack.c.b16 %v1863, %v1863
      %v1878 = vpack.c.b16 %v1864, %v1864
      %v1879 = vpack.c.b16 %v1865, %v1865
      %vm1894 = vcmask 257024
      %1895 = vst.msk [vmem:[%s315] sm:$0xf] %vm1894, %v1866
      %1896 = vst.msk [vmem:[%s315 + $0x4] sm:$0xf] %vm1894, %v1867
      %1897 = vst.msk [vmem:[%s315 + $0x8] sm:$0xf] %vm1894, %v1868
      %1898 = vst.msk [vmem:[%s315 + $0xc] sm:$0xf] %vm1894, %v1869
      %1899 = vst.msk [vmem:[%s315 + $0x10] sm:$0xf] %vm1894, %v1870
      %1900 = vst.msk [vmem:[%s315 + $0x14] sm:$0xf] %vm1894, %v1871
      %1901 = vst.msk [vmem:[%s315 + $0x18] sm:$0xf] %vm1894, %v1872
      %1902 = vst.msk [vmem:[%s315 + $0x1c] sm:$0xf] %vm1894, %v1873
      %1903 = vst.msk [vmem:[%s315 + $0x20] sm:$0xf] %vm1894, %v1874
      %1904 = vst.msk [vmem:[%s315 + $0x24] sm:$0xf] %vm1894, %v1875
      %1905 = vst.msk [vmem:[%s315 + $0x28] sm:$0xf] %vm1894, %v1876
      %1906 = vst.msk [vmem:[%s315 + $0x2c] sm:$0xf] %vm1894, %v1877
      %1907 = vst.msk [vmem:[%s315 + $0x30] sm:$0xf] %vm1894, %v1878
      %1908 = vst.msk [vmem:[%s315 + $0x34] sm:$0xf] %vm1894, %v1879
      %v1909 = vld [vmem:[%s309] sm:$0xff]
      %v1910 = vld [vmem:[%s309 + $0x8] sm:$0xff]
      %v1911 = vld [vmem:[%s309 + $0x10] sm:$0xff]
      %v1912 = vld [vmem:[%s309 + $0x18] sm:$0xff]
      %v1913 = vld [vmem:[%s309 + $0x20] sm:$0xff]
      %v1914 = vld [vmem:[%s309 + $0x28] sm:$0xff]
      %v1915 = vld [vmem:[%s309 + $0x30] sm:$0xff]
      %v1916 = vld [vmem:[%s309 + $0x38] sm:$0xff]
      %v1917 = vld [vmem:[%s309 + $0x40] sm:$0xff]
      %v1918 = vld [vmem:[%s309 + $0x48] sm:$0xff]
      %v1919 = vld [vmem:[%s309 + $0x50] sm:$0xff]
      %v1920 = vld [vmem:[%s309 + $0x58] sm:$0xff]
      %v1921 = vld [vmem:[%s309 + $0x60] sm:$0xff]
      %v1922 = vld [vmem:[%s309 + $0x68] sm:$0xff]
      %1924 = vset.pattern.permute.xlu0 0
      %1925 = vperm.xlu0 %1924, %v1909
      %v1926 = vpop.permute.xlu0 %1925
      %1929 = vset.pattern.permute.xlu0 0
      %1930 = vperm.xlu0 %1929, %v1910
      %v1931 = vpop.permute.xlu0 %1930
      %1934 = vset.pattern.permute.xlu0 0
      %1935 = vperm.xlu0 %1934, %v1911
      %v1936 = vpop.permute.xlu0 %1935
      %1939 = vset.pattern.permute.xlu0 0
      %1940 = vperm.xlu0 %1939, %v1912
      %v1941 = vpop.permute.xlu0 %1940
      %1944 = vset.pattern.permute.xlu0 0
      %1945 = vperm.xlu0 %1944, %v1913
      %v1946 = vpop.permute.xlu0 %1945
      %1949 = vset.pattern.permute.xlu0 0
      %1950 = vperm.xlu0 %1949, %v1914
      %v1951 = vpop.permute.xlu0 %1950
      %1954 = vset.pattern.permute.xlu0 0
      %1955 = vperm.xlu0 %1954, %v1915
      %v1956 = vpop.permute.xlu0 %1955
      %1959 = vset.pattern.permute.xlu0 0
      %1960 = vperm.xlu0 %1959, %v1916
      %v1961 = vpop.permute.xlu0 %1960
      %1964 = vset.pattern.permute.xlu0 0
      %1965 = vperm.xlu0 %1964, %v1917
      %v1966 = vpop.permute.xlu0 %1965
      %1969 = vset.pattern.permute.xlu0 0
      %1970 = vperm.xlu0 %1969, %v1918
      %v1971 = vpop.permute.xlu0 %1970
      %1974 = vset.pattern.permute.xlu0 0
      %1975 = vperm.xlu0 %1974, %v1919
      %v1976 = vpop.permute.xlu0 %1975
      %1979 = vset.pattern.permute.xlu0 0
      %1980 = vperm.xlu0 %1979, %v1920
      %v1981 = vpop.permute.xlu0 %1980
      %1984 = vset.pattern.permute.xlu0 0
      %1985 = vperm.xlu0 %1984, %v1921
      %v1986 = vpop.permute.xlu0 %1985
      %1989 = vset.pattern.permute.xlu0 0
      %1990 = vperm.xlu0 %1989, %v1922
      %v1991 = vpop.permute.xlu0 %1990
      %v1993 = vmul.f32 %v1824, %v1926
      %v1994 = vmul.f32 %v1825, %v1931
      %v1995 = vmul.f32 %v1826, %v1936
      %v1996 = vmul.f32 %v1827, %v1941
      %v1997 = vmul.f32 %v1828, %v1946
      %v1998 = vmul.f32 %v1829, %v1951
      %v1999 = vmul.f32 %v1830, %v1956
      %v2000 = vmul.f32 %v1831, %v1961
      %v2001 = vmul.f32 %v1832, %v1966
      %v2002 = vmul.f32 %v1833, %v1971
      %v2003 = vmul.f32 %v1834, %v1976
      %v2004 = vmul.f32 %v1835, %v1981
      %v2005 = vmul.f32 %v1836, %v1986
      %v2006 = vmul.f32 %v1837, %v1991
      %v2007 = vsel %vm352, %v1993, 0.0
      %v2008 = vsel %vm352, %v1994, 0.0
      %v2009 = vadd.f32 %v2007, %v2008
      %v2010 = vsel %vm352, %v1995, 0.0
      %v2011 = vadd.f32 %v2009, %v2010
      %v2012 = vsel %vm352, %v1996, 0.0
      %v2013 = vadd.f32 %v2011, %v2012
      %v2014 = vsel %vm352, %v1997, 0.0
      %v2015 = vadd.f32 %v2013, %v2014
      %v2016 = vsel %vm352, %v1998, 0.0
      %v2017 = vadd.f32 %v2015, %v2016
      %v2018 = vsel %vm352, %v1999, 0.0
      %v2019 = vadd.f32 %v2017, %v2018
      %v2020 = vsel %vm352, %v2000, 0.0
      %v2021 = vadd.f32 %v2019, %v2020
      %v2022 = vsel %vm352, %v2001, 0.0
      %v2023 = vadd.f32 %v2021, %v2022
      %v2024 = vsel %vm352, %v2002, 0.0
      %v2025 = vadd.f32 %v2023, %v2024
      %v2026 = vsel %vm352, %v2003, 0.0
      %v2027 = vadd.f32 %v2025, %v2026
      %v2028 = vsel %vm352, %v2004, 0.0
      %v2029 = vadd.f32 %v2027, %v2028
      %v2030 = vsel %vm352, %v2005, 0.0
      %v2031 = vadd.f32 %v2029, %v2030
      %v2032 = vsel %vm352, %v2006, 0.0
      %v2033 = vadd.f32 %v2031, %v2032
      %v2034 = vrot.slane %v2033, 4
      %v2035 = vadd.f32 %v2033, %v2034
      %v2036 = vrot.slane %v2035, 2
      %v2037 = vadd.f32 %v2035, %v2036
      %v2038 = vrot.slane %v2037, 1
      %v2039 = vadd.f32 %v2037, %v2038
      %vm2040 = vcmask 253952
      %2041 = vst.msk [vmem:[%s319] sm:$0x1] %vm2040, %v2039
      %v2042 = vmul.f32 %v1824, %v1993
      %v2043 = vmul.f32 %v1825, %v1994
      %v2044 = vmul.f32 %v1826, %v1995
      %v2045 = vmul.f32 %v1827, %v1996
      %v2046 = vmul.f32 %v1828, %v1997
      %v2047 = vmul.f32 %v1829, %v1998
      %v2048 = vmul.f32 %v1830, %v1999
      %v2049 = vmul.f32 %v1831, %v2000
      %v2050 = vmul.f32 %v1832, %v2001
      %v2051 = vmul.f32 %v1833, %v2002
      %v2052 = vmul.f32 %v1834, %v2003
      %v2053 = vmul.f32 %v1835, %v2004
      %v2054 = vmul.f32 %v1836, %v2005
      %v2055 = vmul.f32 %v1837, %v2006
      %v2056 = vsel %vm352, %v2042, 0.0
      %v2057 = vsel %vm352, %v2043, 0.0
      %v2058 = vadd.f32 %v2056, %v2057
      %v2059 = vsel %vm352, %v2044, 0.0
      %v2060 = vadd.f32 %v2058, %v2059
      %v2061 = vsel %vm352, %v2045, 0.0
      %v2062 = vadd.f32 %v2060, %v2061
      %v2063 = vsel %vm352, %v2046, 0.0
      %v2064 = vadd.f32 %v2062, %v2063
      %v2065 = vsel %vm352, %v2047, 0.0
      %v2066 = vadd.f32 %v2064, %v2065
      %v2067 = vsel %vm352, %v2048, 0.0
      %v2068 = vadd.f32 %v2066, %v2067
      %v2069 = vsel %vm352, %v2049, 0.0
      %v2070 = vadd.f32 %v2068, %v2069
      %v2071 = vsel %vm352, %v2050, 0.0
      %v2072 = vadd.f32 %v2070, %v2071
      %v2073 = vsel %vm352, %v2051, 0.0
      %v2074 = vadd.f32 %v2072, %v2073
      %v2075 = vsel %vm352, %v2052, 0.0
      %v2076 = vadd.f32 %v2074, %v2075
      %v2077 = vsel %vm352, %v2053, 0.0
      %v2078 = vadd.f32 %v2076, %v2077
      %v2079 = vsel %vm352, %v2054, 0.0
      %v2080 = vadd.f32 %v2078, %v2079
      %v2081 = vsel %vm352, %v2055, 0.0
      %v2082 = vadd.f32 %v2080, %v2081
      %v2083 = vrot.slane %v2082, 4
      %v2084 = vadd.f32 %v2082, %v2083
      %v2085 = vrot.slane %v2084, 2
      %v2086 = vadd.f32 %v2084, %v2085
      %v2087 = vrot.slane %v2086, 1
      %v2088 = vadd.f32 %v2086, %v2087
      %2089 = vst.msk [vmem:[%s322] sm:$0x1] %vm2040, %v2088
      %s2090 = smul.u32 14, %s18
      %p2091 = scmp.lt.s32.totalorder %s2090, 27
      %s2092 = scalar_select %p2091, %s2090, 27
      %s2093 = smul.addr %s2092, 4
      %s2094 = scalar_lea.vmem %s4, %s2093
      %p2095 = scmp.lt.s32.totalorder %s18, 1
      %s2096 = scalar_select %p2095, %s18, 1
      %s2097 = scalar_lea.vmem %s5, %s2096
      %p2098 = scmp.lt.s32.totalorder %s18, 1
      %s2099 = scalar_select %p2098, %s18, 1
      %s2100 = scalar_lea.vmem %s6, %s2099
      // Predicated region
      $region37: #{stem_conv_forward.8} parent=35 // pred_check
        %p2101 = pneg %p137
      $region38: #{stem_conv_forward.8} parent=35 // pred_check_branch
        %2103 = sbr.rel (%p2101) target = $region40
      $region39: #{stem_conv_forward.8} parent=35 // pred_region
        %s2104 = smul.u32 14, %s18
      $region40: #{stem_conv_forward.8} parent=35 // pred_fallthru
        _
      // Predicated region
      $region41: #{stem_conv_forward.8} parent=35 // pred_check
        %p2105 = pneg %p163
      $region42: #{stem_conv_forward.8} parent=35 // pred_check_branch
        %2107 = sbr.rel (%p2105) target = $region44
      $region43: #{stem_conv_forward.8} parent=35 // pred_region
        _
      $region44: #{stem_conv_forward.8} parent=35 // pred_fallthru
        _
      // Predicated region
      $region45: #{stem_conv_forward.8} parent=35 // pred_check
        %p2108 = pneg %p189
      $region46: #{stem_conv_forward.8} parent=35 // pred_check_branch
        %2110 = sbr.rel (%p2108) target = $region48
      $region47: #{stem_conv_forward.8} parent=35 // pred_region
        _
      $region48: #{stem_conv_forward.8} parent=35 // pred_fallthru
        _
    $region36: #{stem_conv_forward.8} parent=5 // pred_fallthru
      _
    %p2111 = scmp.le.s32.totalorder 2, %s13
    // Predicated region
    $region49: #{stem_conv_forward.8} parent=5 // pred_check
      %p2112 = pneg %p2111
    $region50: #{stem_conv_forward.8} parent=5 // pred_check_branch
      %2114 = sbr.rel (%p2112) target = $region52
    $region51: #{stem_conv_forward.8} parent=5 // pred_region
      %s2115 = ssub.s32 %s13, 2
      // Predicated region
      $region53: #{stem_conv_forward.8} parent=51 // pred_check
        %p2116 = pneg %p143
      $region54: #{stem_conv_forward.8} parent=51 // pred_check_branch
        %2118 = sbr.rel (%p2116) target = $region56
      $region55: #{stem_conv_forward.8} parent=51 // pred_region
        %s2119 = smul.u32 14, %s19
        %p2120 = scmp.lt.s32.totalorder %s2119, 27
        %s2121 = scalar_select %p2120, %s2119, 27
        %s2122 = smul.addr %s2121, 4
        %s2123 = scalar_lea.vmem %s4, %s2122
      $region56: #{stem_conv_forward.8} parent=51 // pred_fallthru
        _
      // Predicated region
      $region57: #{stem_conv_forward.8} parent=51 // pred_check
        %p2124 = pneg %p169
      $region58: #{stem_conv_forward.8} parent=51 // pred_check_branch
        %2126 = sbr.rel (%p2124) target = $region60
      $region59: #{stem_conv_forward.8} parent=51 // pred_region
        %p2127 = scmp.lt.s32.totalorder %s19, 1
        %s2128 = scalar_select %p2127, %s19, 1
        %s2129 = scalar_lea.vmem %s5, %s2128
      $region60: #{stem_conv_forward.8} parent=51 // pred_fallthru
        _
      // Predicated region
      $region61: #{stem_conv_forward.8} parent=51 // pred_check
        %p2130 = pneg %p195
      $region62: #{stem_conv_forward.8} parent=51 // pred_check_branch
        %2132 = sbr.rel (%p2130) target = $region64
      $region63: #{stem_conv_forward.8} parent=51 // pred_region
        %p2133 = scmp.lt.s32.totalorder %s19, 1
        %s2134 = scalar_select %p2133, %s19, 1
        %s2135 = scalar_lea.vmem %s6, %s2134
      $region64: #{stem_conv_forward.8} parent=51 // pred_fallthru
        _
    $region52: #{stem_conv_forward.8} parent=5 // pred_fallthru
      _
  $region6: #{stem_conv_forward.8} parent=0 // loop_footer
    %s17 = sadd.s32 1, %s13
  $region7: #{stem_conv_forward.8} parent=0 // loop_footer_branch
    %12 = sbr.rel target = $region3
  $region8: #{stem_conv_forward.8} parent=0 // loop_exit
    _

// kernel: stem_conv_forward.11
$region0: #{stem_conv_forward.11}
  #allocation0 [shape = 'u32[]', space=smem, size = 0x4, offset = 0x4, fixed_abs, tag = 'smem constant byte address 0x4 - core index']
  #allocation1 [shape = 'u32[144,128]{1,0:T(1,128)}', space=vmem, size = 0x12000, scoped, tag = 'internal scratch']
  %s0 = inlined_call_operand.vmem [shape: bf16[9,32,32], index: 0, kind: input, shape index: {}]
  %s1 = inlined_call_operand.vmem [shape: f32[9,32,1], index: 1, kind: input, shape index: {}]
  %s2 = inlined_call_operand.vmem [shape: f32[1,32], index: 2, kind: input, shape index: {}]
  %s3 = inlined_call_operand.vmem [shape: f32[1,32], index: 3, kind: input, shape index: {}]
  %s4 = inlined_call_operand.hbm [shape: f32[32,32], index: 4, kind: output, shape index: {}]
  %s5 = sld [smem:[#allocation0]]
  $region128: #{stem_conv_forward.11} parent=0
    _
  %s7 = ssub.s32 1, %s5
  %s8 = scalar_select 0, %s7, %s5
  $region1: #{stem_conv_forward.11} parent=0
    #allocation2 [shape = 'u8[73728]{0}', space=vmem, size = 0x12000, scoped, tag = 'input window, operand 0']
    #allocation3 [shape = 'u8[147456]{0}', space=vmem, size = 0x24000, scoped, tag = 'input window, operand 1']
    #allocation4 [shape = 'u8[16384]{0}', space=vmem, size = 0x4000, scoped, tag = 'output window, operand 0']
    #allocation5 [shape = 's32[2]{0}', space=sflag, size = 0x8, scoped, tag = 'scoped memory for stem_conv_forward.11']
    %9 = vsyncpa [#allocation5], 0
    %s10 = scalar_lea.sflag [#allocation5], 1
    %11 = vsyncpa %s10, 0
    loop: start=0, step=1, limit=4
    $region2: #{stem_conv_forward.11} parent=1 // loop_pre_header
      _
    $region3: #{stem_conv_forward.11} parent=1 // loop_header
      %s13 = sphi 0, %s17
      %p14 = scmp.ge.s32.totalorder %s13, 4
      %s23 = sphi 0, %s25
      %s26 = sphi 0, %s23
      %s27 = sphi 0, %s26
      %s43 = sphi 0, %s27
      %s49 = sphi 0, %s51
      %s52 = sphi 0, %s49
      %s53 = sphi 0, %s52
      %s69 = sphi 0, %s53
      %s73 = sphi 0, %s73
      %s75 = sphi 0, %s73
      %s76 = sphi 0, %s75
      %s90 = sphi 0, %s76
      %s94 = sphi 0, %s94
      %s96 = sphi 0, %s94
      %s97 = sphi 0, %s96
      %s111 = sphi 0, %s97
      %s117 = sphi 0, %s119
      %s120 = sphi 0, %s117
      %s121 = sphi 0, %s120
      %s137 = sphi 0, %s121
    $region4: #{stem_conv_forward.11} parent=1 // loop_header_branch
      %16 = sbr.rel (%p14) target = $region8
    $region5: #{stem_conv_forward.11} parent=1 // loop_body
      %s18 = ssub.s32 %s13, 1
      %s19 = ssub.s32 %s13, 2
      %s20 = sadd.s32 %s13, 1
      %s21 = ssub.s32 %s13, %s20
      %p22 = scmp.eq.s32.totalorder %s21, 0
      %s24 = sadd.s32 %s23, 1
      %s25 = scalar_select %p22, %s23, %s24
      %p28 = pneg %p22
      %p29 = scmp.eq.s32.totalorder %s13, 1
      %p30 = por %p28, %p29
      %p31 = scmp.ne.s32.totalorder %s23, %s26
      %p32 = scmp.eq.s32.totalorder %s13, 0
      %p33 = por %p31, %p32
      %p34 = scmp.ne.s32.totalorder %s23, %s26
      %p35 = scmp.eq.s32.totalorder %s18, 1
      %p36 = por %p34, %p35
      %p37 = scmp.ne.s32.totalorder %s26, %s27
      %p38 = scmp.eq.s32.totalorder %s18, 0
      %p39 = por %p37, %p38
      %p40 = scmp.ne.s32.totalorder %s26, %s27
      %p41 = scmp.eq.s32.totalorder %s19, 1
      %p42 = por %p40, %p41
      %p44 = scmp.ne.s32.totalorder %s27, %s43
      %p45 = scmp.eq.s32.totalorder %s19, 0
      %p46 = por %p44, %p45
      %s47 = ssub.s32 %s13, %s20
      %p48 = scmp.eq.s32.totalorder %s47, 0
      %s50 = sadd.s32 %s49, 1
      %s51 = scalar_select %p48, %s49, %s50
      %p54 = pneg %p48
      %p55 = scmp.eq.s32.totalorder %s13, 1
      %p56 = por %p54, %p55
      %p57 = scmp.ne.s32.totalorder %s49, %s52
      %p58 = scmp.eq.s32.totalorder %s13, 0
      %p59 = por %p57, %p58
      %p60 = scmp.ne.s32.totalorder %s49, %s52
      %p61 = scmp.eq.s32.totalorder %s18, 1
      %p62 = por %p60, %p61
      %p63 = scmp.ne.s32.totalorder %s52, %s53
      %p64 = scmp.eq.s32.totalorder %s18, 0
      %p65 = por %p63, %p64
      %p66 = scmp.ne.s32.totalorder %s52, %s53
      %p67 = scmp.eq.s32.totalorder %s19, 1
      %p68 = por %p66, %p67
      %p70 = scmp.ne.s32.totalorder %s53, %s69
      %p71 = scmp.eq.s32.totalorder %s19, 0
      %p72 = por %p70, %p71
      %s74 = sadd.s32 %s73, 1
      %p77 = scmp.eq.s32.totalorder %s13, 1
      %p78 = scmp.ne.s32.totalorder %s73, %s75
      %p79 = scmp.eq.s32.totalorder %s13, 0
      %p80 = por %p78, %p79
      %p81 = scmp.ne.s32.totalorder %s73, %s75
      %p82 = scmp.eq.s32.totalorder %s18, 1
      %p83 = por %p81, %p82
      %p84 = scmp.ne.s32.totalorder %s75, %s76
      %p85 = scmp.eq.s32.totalorder %s18, 0
      %p86 = por %p84, %p85
      %p87 = scmp.ne.s32.totalorder %s75, %s76
      %p88 = scmp.eq.s32.totalorder %s19, 1
      %p89 = por %p87, %p88
      %p91 = scmp.ne.s32.totalorder %s76, %s90
      %p92 = scmp.eq.s32.totalorder %s19, 0
      %p93 = por %p91, %p92
      %s95 = sadd.s32 %s94, 1
      %p98 = scmp.eq.s32.totalorder %s13, 1
      %p99 = scmp.ne.s32.totalorder %s94, %s96
      %p100 = scmp.eq.s32.totalorder %s13, 0
      %p101 = por %p99, %p100
      %p102 = scmp.ne.s32.totalorder %s94, %s96
      %p103 = scmp.eq.s32.totalorder %s18, 1
      %p104 = por %p102, %p103
      %p105 = scmp.ne.s32.totalorder %s96, %s97
      %p106 = scmp.eq.s32.totalorder %s18, 0
      %p107 = por %p105, %p106
      %p108 = scmp.ne.s32.totalorder %s96, %s97
      %p109 = scmp.eq.s32.totalorder %s19, 1
      %p110 = por %p108, %p109
      %p112 = scmp.ne.s32.totalorder %s97, %s111
      %p113 = scmp.eq.s32.totalorder %s19, 0
      %p114 = por %p112, %p113
      %s115 = ssub.s32 %s13, %s20
      %p116 = scmp.eq.s32.totalorder %s115, 0
      %s118 = sadd.s32 %s117, 1
      %s119 = scalar_select %p116, %s117, %s118
      %p122 = pneg %p116
      %p123 = scmp.eq.s32.totalorder %s13, 1
      %p124 = por %p122, %p123
      %p125 = scmp.ne.s32.totalorder %s117, %s120
      %p126 = scmp.eq.s32.totalorder %s13, 0
      %p127 = por %p125, %p126
      %p128 = scmp.ne.s32.totalorder %s117, %s120
      %p129 = scmp.eq.s32.totalorder %s18, 1
      %p130 = por %p128, %p129
      %p131 = scmp.ne.s32.totalorder %s120, %s121
      %p132 = scmp.eq.s32.totalorder %s18, 0
      %p133 = por %p131, %p132
      %p134 = scmp.ne.s32.totalorder %s120, %s121
      %p135 = scmp.eq.s32.totalorder %s19, 1
      %p136 = por %p134, %p135
      %p138 = scmp.ne.s32.totalorder %s121, %s137
      %p139 = scmp.eq.s32.totalorder %s19, 0
      %p140 = por %p138, %p139
      %p141 = scmp.le.s32.totalorder 1, %s13
      %p142 = scmp.lt.s32.totalorder %s13, 3
      %p143 = pnand %p141, %p142
      %p144 = pneg %p143
      // Predicated region
      $region9: #{stem_conv_forward.11} parent=5 // pred_check
        _
      $region10: #{stem_conv_forward.11} parent=5 // pred_check_branch
        %146 = sbr.rel (%p143) target = $region12
      $region11: #{stem_conv_forward.11} parent=5 // pred_region
        %s147 = ssub.s32 %s13, 1
        // Predicated region
        $region13: #{stem_conv_forward.11} parent=11 // pred_check
          %p148 = pneg %p86
        $region14: #{stem_conv_forward.11} parent=11 // pred_check_branch
          %150 = sbr.rel (%p148) target = $region16
        $region15: #{stem_conv_forward.11} parent=11 // pred_region
          _
        $region16: #{stem_conv_forward.11} parent=11 // pred_fallthru
          _
        // Predicated region
        $region17: #{stem_conv_forward.11} parent=11 // pred_check
          %p151 = pneg %p107
        $region18: #{stem_conv_forward.11} parent=11 // pred_check_branch
          %153 = sbr.rel (%p151) target = $region20
        $region19: #{stem_conv_forward.11} parent=11 // pred_region
          _
        $region20: #{stem_conv_forward.11} parent=11 // pred_fallthru
          _
      $region12: #{stem_conv_forward.11} parent=5 // pred_fallthru
        _
      %p154 = scmp.lt.s32.totalorder %s13, 2
      // Predicated region
      $region21: #{stem_conv_forward.11} parent=5 // pred_check
        %p155 = pneg %p154
      $region22: #{stem_conv_forward.11} parent=5 // pred_check_branch
        %157 = sbr.rel (%p155) target = $region24
      $region23: #{stem_conv_forward.11} parent=5 // pred_region
        // Predicated region
        $region25: #{stem_conv_forward.11} parent=23 // pred_check
          %p158 = pneg %p33
        $region26: #{stem_conv_forward.11} parent=23 // pred_check_branch
          %160 = sbr.rel (%p158) target = $region28
        $region27: #{stem_conv_forward.11} parent=23 // pred_region
          %s161 = sand.u32 %s23, 1
          %s162 = sand.u32 %s23, 1
          %s163 = smul.addr %s162, 72
          %s164 = scalar_lea.vmem [#allocation2], %s163
          %s165 = smul.u32 2, %s13
          %s166 = smul.addr %s165, 4
          %s167 = scalar_lea.vmem %s0, %s166
          // Predicated region
          $region29: #{stem_conv_forward.11} parent=27 // pred_check
            _
          $region30: #{stem_conv_forward.11} parent=27 // pred_check_branch
            %169 = sbr.rel (0) target = $region32
          $region31: #{stem_conv_forward.11} parent=27 // pred_region
            // Predicated region
            $region33: #{stem_conv_forward.11} parent=31 // pred_check
              _
            $region34: #{stem_conv_forward.11} parent=31 // pred_check_branch
              %171 = sbr.rel target = $region36
            $region35: #{stem_conv_forward.11} parent=31 // pred_region
              // Predicated region
              $region48: #{stem_conv_forward.11} parent=35 // pred_check
                _
              $region49: #{stem_conv_forward.11} parent=35 // pred_check_branch
                %220 = sbr.rel (0) target = $region51
              $region50: #{stem_conv_forward.11} parent=35 // pred_region
                loop: start=0, step=1, limit=1
                $region52: #{stem_conv_forward.11} parent=50 // loop_pre_header
                  _
                $region53: #{stem_conv_forward.11} parent=50 // loop_header
                  %s222 = sphi 0, %s226
                  %p223 = scmp.ge.s32.totalorder %s222, 1
                  %s227 = sphi %s167, %s167
                  %s228 = sphi %s164, %s164
                $region54: #{stem_conv_forward.11} parent=50 // loop_header_branch
                  %225 = sbr.rel (%p223) target = $region58
                $region55: #{stem_conv_forward.11} parent=50 // loop_body
                  _
                $region56: #{stem_conv_forward.11} parent=50 // loop_footer
                  %s226 = sadd.s32 1, %s222
                $region57: #{stem_conv_forward.11} parent=50 // loop_footer_branch
                  %221 = sbr.rel target = $region53
                $region58: #{stem_conv_forward.11} parent=50 // loop_exit
                  _
                loop: start=0, step=1, limit=1
                $region59: #{stem_conv_forward.11} parent=50 // loop_pre_header
                  _
                $region60: #{stem_conv_forward.11} parent=50 // loop_header
                  %s231 = sphi 0, %s235
                  %p232 = scmp.ge.s32.totalorder %s231, 1
                  %s236 = sphi %s167, %s167
                  %s237 = sphi %s164, %s164
                $region61: #{stem_conv_forward.11} parent=50 // loop_header_branch
                  %234 = sbr.rel (%p232) target = $region65
                $region62: #{stem_conv_forward.11} parent=50 // loop_body
                  %v238 = vld [vmem:[%s236] sm:$0xf]
                  %239 = vst [vmem:[%s237] sm:$0xf] %v238
                  %v240 = vld [vmem:[%s236 + $0x4] sm:$0xf]
                  %241 = vst [vmem:[%s237 + $0x4] sm:$0xf] %v240
                  %v242 = vld [vmem:[%s236 + $0x10] sm:$0xf]
                  %243 = vst [vmem:[%s237 + $0x8] sm:$0xf] %v242
                  %v244 = vld [vmem:[%s236 + $0x14] sm:$0xf]
                  %245 = vst [vmem:[%s237 + $0xc] sm:$0xf] %v244
                  %v246 = vld [vmem:[%s236 + $0x20] sm:$0xf]
                  %247 = vst [vmem:[%s237 + $0x10] sm:$0xf] %v246
                  %v248 = vld [vmem:[%s236 + $0x24] sm:$0xf]
                  %249 = vst [vmem:[%s237 + $0x14] sm:$0xf] %v248
                  %v250 = vld [vmem:[%s236 + $0x30] sm:$0xf]
                  %251 = vst [vmem:[%s237 + $0x18] sm:$0xf] %v250
                  %v252 = vld [vmem:[%s236 + $0x34] sm:$0xf]
                  %253 = vst [vmem:[%s237 + $0x1c] sm:$0xf] %v252
                  %v254 = vld [vmem:[%s236 + $0x40] sm:$0xf]
                  %255 = vst [vmem:[%s237 + $0x20] sm:$0xf] %v254
                  %v256 = vld [vmem:[%s236 + $0x44] sm:$0xf]
                  %257 = vst [vmem:[%s237 + $0x24] sm:$0xf] %v256
                  %v258 = vld [vmem:[%s236 + $0x50] sm:$0xf]
                  %259 = vst [vmem:[%s237 + $0x28] sm:$0xf] %v258
                  %v260 = vld [vmem:[%s236 + $0x54] sm:$0xf]
                  %261 = vst [vmem:[%s237 + $0x2c] sm:$0xf] %v260
                  %v262 = vld [vmem:[%s236 + $0x60] sm:$0xf]
                  %263 = vst [vmem:[%s237 + $0x30] sm:$0xf] %v262
                  %v264 = vld [vmem:[%s236 + $0x64] sm:$0xf]
                  %265 = vst [vmem:[%s237 + $0x34] sm:$0xf] %v264
                  %v266 = vld [vmem:[%s236 + $0x70] sm:$0xf]
                  %267 = vst [vmem:[%s237 + $0x38] sm:$0xf] %v266
                  %v268 = vld [vmem:[%s236 + $0x74] sm:$0xf]
                  %269 = vst [vmem:[%s237 + $0x3c] sm:$0xf] %v268
                  %v270 = vld [vmem:[%s236 + $0x80] sm:$0xf]
                  %271 = vst [vmem:[%s237 + $0x40] sm:$0xf] %v270
                  %v272 = vld [vmem:[%s236 + $0x84] sm:$0xf]
                  %273 = vst [vmem:[%s237 + $0x44] sm:$0xf] %v272
                $region63: #{stem_conv_forward.11} parent=50 // loop_footer
                  %s235 = sadd.s32 1, %s231
                $region64: #{stem_conv_forward.11} parent=50 // loop_footer_branch
                  %230 = sbr.rel target = $region60
                $region65: #{stem_conv_forward.11} parent=50 // loop_exit
                  _
              $region51: #{stem_conv_forward.11} parent=35 // pred_fallthru
                _
            $region36: #{stem_conv_forward.11} parent=31 // pred_fallthru
              _
            // Predicated region
            $region37: #{stem_conv_forward.11} parent=31 // pred_check
              _
            $region38: #{stem_conv_forward.11} parent=31 // pred_check_branch
              %173 = sbr.rel (0) target = $region40
            $region39: #{stem_conv_forward.11} parent=31 // pred_region
              loop: start=0, step=1, limit=1
              $region41: #{stem_conv_forward.11} parent=39 // loop_pre_header
                _
              $region42: #{stem_conv_forward.11} parent=39 // loop_header
                %s176 = sphi 0, %s180
                %p177 = scmp.ge.s32.totalorder %s176, 1
                %s181 = sphi %s167, %s167
                %s182 = sphi %s164, %s164
              $region43: #{stem_conv_forward.11} parent=39 // loop_header_branch
                %179 = sbr.rel (%p177) target = $region47
              $region44: #{stem_conv_forward.11} parent=39 // loop_body
                %v183 = vld [vmem:[%s181] sm:$0xf]
                %184 = vst [vmem:[%s182] sm:$0xf] %v183
                %v185 = vld [vmem:[%s181 + $0x4] sm:$0xf]
                %186 = vst [vmem:[%s182 + $0x4] sm:$0xf] %v185
                %v187 = vld [vmem:[%s181 + $0x10] sm:$0xf]
                %188 = vst [vmem:[%s182 + $0x8] sm:$0xf] %v187
                %v189 = vld [vmem:[%s181 + $0x14] sm:$0xf]
                %190 = vst [vmem:[%s182 + $0xc] sm:$0xf] %v189
                %v191 = vld [vmem:[%s181 + $0x20] sm:$0xf]
                %192 = vst [vmem:[%s182 + $0x10] sm:$0xf] %v191
                %v193 = vld [vmem:[%s181 + $0x24] sm:$0xf]
                %194 = vst [vmem:[%s182 + $0x14] sm:$0xf] %v193
                %v195 = vld [vmem:[%s181 + $0x30] sm:$0xf]
                %196 = vst [vmem:[%s182 + $0x18] sm:$0xf] %v195
                %v197 = vld [vmem:[%s181 + $0x34] sm:$0xf]
                %198 = vst [vmem:[%s182 + $0x1c] sm:$0xf] %v197
                %v199 = vld [vmem:[%s181 + $0x40] sm:$0xf]
                %200 = vst [vmem:[%s182 + $0x20] sm:$0xf] %v199
                %v201 = vld [vmem:[%s181 + $0x44] sm:$0xf]
                %202 = vst [vmem:[%s182 + $0x24] sm:$0xf] %v201
                %v203 = vld [vmem:[%s181 + $0x50] sm:$0xf]
                %204 = vst [vmem:[%s182 + $0x28] sm:$0xf] %v203
                %v205 = vld [vmem:[%s181 + $0x54] sm:$0xf]
                %206 = vst [vmem:[%s182 + $0x2c] sm:$0xf] %v205
                %v207 = vld [vmem:[%s181 + $0x60] sm:$0xf]
                %208 = vst [vmem:[%s182 + $0x30] sm:$0xf] %v207
                %v209 = vld [vmem:[%s181 + $0x64] sm:$0xf]
                %210 = vst [vmem:[%s182 + $0x34] sm:$0xf] %v209
                %v211 = vld [vmem:[%s181 + $0x70] sm:$0xf]
                %212 = vst [vmem:[%s182 + $0x38] sm:$0xf] %v211
                %v213 = vld [vmem:[%s181 + $0x74] sm:$0xf]
                %214 = vst [vmem:[%s182 + $0x3c] sm:$0xf] %v213
                %v215 = vld [vmem:[%s181 + $0x80] sm:$0xf]
                %216 = vst [vmem:[%s182 + $0x40] sm:$0xf] %v215
                %v217 = vld [vmem:[%s181 + $0x84] sm:$0xf]
                %218 = vst [vmem:[%s182 + $0x44] sm:$0xf] %v217
              $region45: #{stem_conv_forward.11} parent=39 // loop_footer
                %s180 = sadd.s32 1, %s176
              $region46: #{stem_conv_forward.11} parent=39 // loop_footer_branch
                %175 = sbr.rel target = $region42
              $region47: #{stem_conv_forward.11} parent=39 // loop_exit
                _
            $region40: #{stem_conv_forward.11} parent=31 // pred_fallthru
              _
          $region32: #{stem_conv_forward.11} parent=27 // pred_fallthru
            _
          %274 = vnop
        $region28: #{stem_conv_forward.11} parent=23 // pred_fallthru
          _
        // Predicated region
        $region66: #{stem_conv_forward.11} parent=23 // pred_check
          %p275 = pneg %p59
        $region67: #{stem_conv_forward.11} parent=23 // pred_check_branch
          %277 = sbr.rel (%p275) target = $region69
        $region68: #{stem_conv_forward.11} parent=23 // pred_region
          %s278 = sand.u32 %s49, 1
          %s279 = sand.u32 %s49, 1
          %s280 = smul.addr %s279, 144
          %s281 = scalar_lea.vmem [#allocation3], %s280
          %s282 = smul.u32 2, %s13
          %s283 = smul.addr %s282, 8
          %s284 = scalar_lea.vmem %s1, %s283
          // Predicated region
          $region70: #{stem_conv_forward.11} parent=68 // pred_check
            _
          $region71: #{stem_conv_forward.11} parent=68 // pred_check_branch
            %286 = sbr.rel (0) target = $region73
          $region72: #{stem_conv_forward.11} parent=68 // pred_region
            // Predicated region
            $region74: #{stem_conv_forward.11} parent=72 // pred_check
              _
            $region75: #{stem_conv_forward.11} parent=72 // pred_check_branch
              %288 = sbr.rel (0) target = $region77
            $region76: #{stem_conv_forward.11} parent=72 // pred_region
              // Predicated region
              $region89: #{stem_conv_forward.11} parent=76 // pred_check
                _
              $region90: #{stem_conv_forward.11} parent=76 // pred_check_branch
                %337 = sbr.rel (0) target = $region92
              $region91: #{stem_conv_forward.11} parent=76 // pred_region
                loop: start=0, step=1, limit=1
                $region93: #{stem_conv_forward.11} parent=91 // loop_pre_header
                  _
                $region94: #{stem_conv_forward.11} parent=91 // loop_header
                  %s339 = sphi 0, %s343
                  %p340 = scmp.ge.s32.totalorder %s339, 1
                  %s344 = sphi %s284, %s284
                  %s345 = sphi %s281, %s281
                $region95: #{stem_conv_forward.11} parent=91 // loop_header_branch
                  %342 = sbr.rel (%p340) target = $region99
                $region96: #{stem_conv_forward.11} parent=91 // loop_body
                  %v346 = vld [vmem:[%s344] sm:$0xff]
                  %347 = vst [vmem:[%s345] sm:$0xff] %v346
                  %v348 = vld [vmem:[%s344 + $0x8] sm:$0xff]
                  %349 = vst [vmem:[%s345 + $0x8] sm:$0xff] %v348
                  %v350 = vld [vmem:[%s344 + $0x20] sm:$0xff]
                  %351 = vst [vmem:[%s345 + $0x10] sm:$0xff] %v350
                  %v352 = vld [vmem:[%s344 + $0x28] sm:$0xff]
                  %353 = vst [vmem:[%s345 + $0x18] sm:$0xff] %v352
                  %v354 = vld [vmem:[%s344 + $0x40] sm:$0xff]
                  %355 = vst [vmem:[%s345 + $0x20] sm:$0xff] %v354
                  %v356 = vld [vmem:[%s344 + $0x48] sm:$0xff]
                  %357 = vst [vmem:[%s345 + $0x28] sm:$0xff] %v356
                  %v358 = vld [vmem:[%s344 + $0x60] sm:$0xff]
                  %359 = vst [vmem:[%s345 + $0x30] sm:$0xff] %v358
                  %v360 = vld [vmem:[%s344 + $0x68] sm:$0xff]
                  %361 = vst [vmem:[%s345 + $0x38] sm:$0xff] %v360
                  %v362 = vld [vmem:[%s344 + $0x80] sm:$0xff]
                  %363 = vst [vmem:[%s345 + $0x40] sm:$0xff] %v362
                  %v364 = vld [vmem:[%s344 + $0x88] sm:$0xff]
                  %365 = vst [vmem:[%s345 + $0x48] sm:$0xff] %v364
                  %v366 = vld [vmem:[%s344 + $0xa0] sm:$0xff]
                  %367 = vst [vmem:[%s345 + $0x50] sm:$0xff] %v366
                  %v368 = vld [vmem:[%s344 + $0xa8] sm:$0xff]
                  %369 = vst [vmem:[%s345 + $0x58] sm:$0xff] %v368
                  %v370 = vld [vmem:[%s344 + $0xc0] sm:$0xff]
                  %371 = vst [vmem:[%s345 + $0x60] sm:$0xff] %v370
                  %v372 = vld [vmem:[%s344 + $0xc8] sm:$0xff]
                  %373 = vst [vmem:[%s345 + $0x68] sm:$0xff] %v372
                  %v374 = vld [vmem:[%s344 + $0xe0] sm:$0xff]
                  %375 = vst [vmem:[%s345 + $0x70] sm:$0xff] %v374
                  %v376 = vld [vmem:[%s344 + $0xe8] sm:$0xff]
                  %377 = vst [vmem:[%s345 + $0x78] sm:$0xff] %v376
                  %v378 = vld [vmem:[%s344 + $0x100] sm:$0xff]
                  %379 = vst [vmem:[%s345 + $0x80] sm:$0xff] %v378
                  %v380 = vld [vmem:[%s344 + $0x108] sm:$0xff]
                  %381 = vst [vmem:[%s345 + $0x88] sm:$0xff] %v380
                $region97: #{stem_conv_forward.11} parent=91 // loop_footer
                  %s343 = sadd.s32 1, %s339
                $region98: #{stem_conv_forward.11} parent=91 // loop_footer_branch
                  %338 = sbr.rel target = $region94
                $region99: #{stem_conv_forward.11} parent=91 // loop_exit
                  _
              $region92: #{stem_conv_forward.11} parent=76 // pred_fallthru
                _
              // Predicated region
              $region100: #{stem_conv_forward.11} parent=76 // pred_check
                _
              $region101: #{stem_conv_forward.11} parent=76 // pred_check_branch
                %383 = sbr.rel target = $region103
              $region102: #{stem_conv_forward.11} parent=76 // pred_region
                _
              $region103: #{stem_conv_forward.11} parent=76 // pred_fallthru
                _
            $region77: #{stem_conv_forward.11} parent=72 // pred_fallthru
              _
            // Predicated region
            $region78: #{stem_conv_forward.11} parent=72 // pred_check
              _
            $region79: #{stem_conv_forward.11} parent=72 // pred_check_branch
              %290 = sbr.rel target = $region81
            $region80: #{stem_conv_forward.11} parent=72 // pred_region
              loop: start=0, step=1, limit=1
              $region82: #{stem_conv_forward.11} parent=80 // loop_pre_header
                _
              $region83: #{stem_conv_forward.11} parent=80 // loop_header
                %s293 = sphi 0, %s297
                %p294 = scmp.ge.s32.totalorder %s293, 1
                %s298 = sphi %s284, %s284
                %s299 = sphi %s281, %s281
              $region84: #{stem_conv_forward.11} parent=80 // loop_header_branch
                %296 = sbr.rel (%p294) target = $region88
              $region85: #{stem_conv_forward.11} parent=80 // loop_body
                %v300 = vld [vmem:[%s298] sm:$0xff]
                %301 = vst [vmem:[%s299] sm:$0xff] %v300
                %v302 = vld [vmem:[%s298 + $0x8] sm:$0xff]
                %303 = vst [vmem:[%s299 + $0x8] sm:$0xff] %v302
                %v304 = vld [vmem:[%s298 + $0x20] sm:$0xff]
                %305 = vst [vmem:[%s299 + $0x10] sm:$0xff] %v304
                %v306 = vld [vmem:[%s298 + $0x28] sm:$0xff]
                %307 = vst [vmem:[%s299 + $0x18] sm:$0xff] %v306
                %v308 = vld [vmem:[%s298 + $0x40] sm:$0xff]
                %309 = vst [vmem:[%s299 + $0x20] sm:$0xff] %v308
                %v310 = vld [vmem:[%s298 + $0x48] sm:$0xff]
                %311 = vst [vmem:[%s299 + $0x28] sm:$0xff] %v310
                %v312 = vld [vmem:[%s298 + $0x60] sm:$0xff]
                %313 = vst [vmem:[%s299 + $0x30] sm:$0xff] %v312
                %v314 = vld [vmem:[%s298 + $0x68] sm:$0xff]
                %315 = vst [vmem:[%s299 + $0x38] sm:$0xff] %v314
                %v316 = vld [vmem:[%s298 + $0x80] sm:$0xff]
                %317 = vst [vmem:[%s299 + $0x40] sm:$0xff] %v316
                %v318 = vld [vmem:[%s298 + $0x88] sm:$0xff]
                %319 = vst [vmem:[%s299 + $0x48] sm:$0xff] %v318
                %v320 = vld [vmem:[%s298 + $0xa0] sm:$0xff]
                %321 = vst [vmem:[%s299 + $0x50] sm:$0xff] %v320
                %v322 = vld [vmem:[%s298 + $0xa8] sm:$0xff]
                %323 = vst [vmem:[%s299 + $0x58] sm:$0xff] %v322
                %v324 = vld [vmem:[%s298 + $0xc0] sm:$0xff]
                %325 = vst [vmem:[%s299 + $0x60] sm:$0xff] %v324
                %v326 = vld [vmem:[%s298 + $0xc8] sm:$0xff]
                %327 = vst [vmem:[%s299 + $0x68] sm:$0xff] %v326
                %v328 = vld [vmem:[%s298 + $0xe0] sm:$0xff]
                %329 = vst [vmem:[%s299 + $0x70] sm:$0xff] %v328
                %v330 = vld [vmem:[%s298 + $0xe8] sm:$0xff]
                %331 = vst [vmem:[%s299 + $0x78] sm:$0xff] %v330
                %v332 = vld [vmem:[%s298 + $0x100] sm:$0xff]
                %333 = vst [vmem:[%s299 + $0x80] sm:$0xff] %v332
                %v334 = vld [vmem:[%s298 + $0x108] sm:$0xff]
                %335 = vst [vmem:[%s299 + $0x88] sm:$0xff] %v334
              $region86: #{stem_conv_forward.11} parent=80 // loop_footer
                %s297 = sadd.s32 1, %s293
              $region87: #{stem_conv_forward.11} parent=80 // loop_footer_branch
                %292 = sbr.rel target = $region83
              $region88: #{stem_conv_forward.11} parent=80 // loop_exit
                _
            $region81: #{stem_conv_forward.11} parent=72 // pred_fallthru
              _
          $region73: #{stem_conv_forward.11} parent=68 // pred_fallthru
            _
          %384 = vnop
        $region69: #{stem_conv_forward.11} parent=23 // pred_fallthru
          _
      $region24: #{stem_conv_forward.11} parent=5 // pred_fallthru
        _
      %p385 = scmp.le.s32.totalorder 1, %s13
      %p386 = scmp.lt.s32.totalorder %s13, 3
      %p387 = pnand %p385, %p386
      %p388 = pneg %p387
      // Predicated region
      $region104: #{stem_conv_forward.11} parent=5 // pred_check
        _
      $region105: #{stem_conv_forward.11} parent=5 // pred_check_branch
        %390 = sbr.rel (%p387) target = $region107
      $region106: #{stem_conv_forward.11} parent=5 // pred_region
        %s391 = ssub.s32 %s13, 1
        %s392 = sand.u32 %s26, 1
        %s393 = sand.u32 %s26, 1
        %s394 = smul.addr %s393, 72
        %s395 = scalar_lea.vmem [#allocation2], %s394
        // Predicated region
        $region108: #{stem_conv_forward.11} parent=106 // pred_check
          %p396 = pneg %p39
        $region109: #{stem_conv_forward.11} parent=106 // pred_check_branch
          %398 = sbr.rel (%p396) target = $region111
        $region110: #{stem_conv_forward.11} parent=106 // pred_region
          _
        $region111: #{stem_conv_forward.11} parent=106 // pred_fallthru
          _
        %s399 = sand.u32 %s52, 1
        %s400 = sand.u32 %s52, 1
        %s401 = smul.addr %s400, 144
        %s402 = scalar_lea.vmem [#allocation3], %s401
        // Predicated region
        $region112: #{stem_conv_forward.11} parent=106 // pred_check
          %p403 = pneg %p65
        $region113: #{stem_conv_forward.11} parent=106 // pred_check_branch
          %405 = sbr.rel (%p403) target = $region115
        $region114: #{stem_conv_forward.11} parent=106 // pred_region
          _
        $region115: #{stem_conv_forward.11} parent=106 // pred_fallthru
          _
        %s406 = sand.u32 %s26, 1
        %s407 = sand.u32 %s26, 1
        %s408 = smul.addr %s407, 72
        %s409 = scalar_lea.vmem [#allocation2], %s408
        %p410 = pneg %p39
        %p411 = pneg %p36
        %s412 = sand.u32 %s52, 1
        %s413 = sand.u32 %s52, 1
        %s414 = smul.addr %s413, 144
        %s415 = scalar_lea.vmem [#allocation3], %s414
        %p416 = pneg %p65
        %p417 = pneg %p62
        %p418 = pneg %p86
        %p419 = pneg %p83
        %p420 = pneg %p107
        %p421 = pneg %p104
        %p422 = pneg %p133
        %p423 = pneg %p130
        %s424 = sand.u32 %s120, 1
        %s425 = scalar_lea.sflag [#allocation5], %s424
        %s426 = sand.u32 %s120, 1
        %s427 = smul.addr %s426, 16
        %s428 = scalar_lea.vmem [#allocation4], %s427
        %s429 = smul.u32 2, %s18
        %s430 = smul.u32 2, %s18
        %s431 = smul.u32 2, %s18
        %v432 = vld [vmem:[%s2] sm:$0x1]
        %v433 = vld [vmem:[%s3] sm:$0x1]
        %v434 = vld [vmem:[%s395] sm:$0xf]
        %v435 = vld [vmem:[%s395 + $0x4] sm:$0xf]
        %v436 = vunpack.c.l.bf16 %v434
        %v437 = vunpack.c.l.bf16 %v435
        %v439 = vlaneseq
        %v440 = vshrl.u32 %v439, 7
        %v441 = vsub.s32 0, %v440
        %v442 = vrot.slane %v432, %v441
        %v444 = vmul.f32 %v436, %v442
        %v445 = vmul.f32 %v437, %v442
        %v447 = vlaneseq
        %v448 = vshrl.u32 %v447, 7
        %v449 = vsub.s32 0, %v448
        %v450 = vrot.slane %v433, %v449
        %v452 = vadd.f32 %v444, %v450
        %v453 = vadd.f32 %v445, %v450
        %v454 = vmax.f32 %v452, 0.0
        %v455 = vmax.f32 %v453, 0.0
        %v456 = vld [vmem:[%s402] sm:$0xff]
        %v457 = vld [vmem:[%s402 + $0x8] sm:$0xff]
        %459 = vset.pattern.permute.xlu0 0
        %460 = vperm.xlu0 %459, %v456
        %v461 = vpop.permute.xlu0 %460
        %464 = vset.pattern.permute.xlu0 0
        %465 = vperm.xlu0 %464, %v457
        %v466 = vpop.permute.xlu0 %465
        %v468 = vmul.f32 %v454, %v461
        %v469 = vmul.f32 %v455, %v466
        %s470 = scalar_lea.vmem %s395, 8 [#allocation2]
        %v471 = vld [vmem:[%s470] sm:$0xf]
        %v472 = vld [vmem:[%s470 + $0x4] sm:$0xf]
        %v473 = vunpack.c.l.bf16 %v471
        %v474 = vunpack.c.l.bf16 %v472
        %v475 = vmul.f32 %v473, %v442
        %v476 = vmul.f32 %v474, %v442
        %v477 = vadd.f32 %v475, %v450
        %v478 = vadd.f32 %v476, %v450
        %v479 = vmax.f32 %v477, 0.0
        %v480 = vmax.f32 %v478, 0.0
        %s481 = scalar_lea.vmem %s402, 16 [#allocation3]
        %v482 = vld [vmem:[%s481] sm:$0xff]
        %v483 = vld [vmem:[%s481 + $0x8] sm:$0xff]
        %485 = vset.pattern.permute.xlu0 0
        %486 = vperm.xlu0 %485, %v482
        %v487 = vpop.permute.xlu0 %486
        %490 = vset.pattern.permute.xlu0 0
        %491 = vperm.xlu0 %490, %v483
        %v492 = vpop.permute.xlu0 %491
        %v494 = vmul.f32 %v479, %v487
        %v495 = vmul.f32 %v480, %v492
        %v496 = vmax.f32 %v468, %v494
        %v497 = vmax.f32 %v469, %v495
        %s498 = scalar_lea.vmem %s395, 16 [#allocation2]
        %v499 = vld [vmem:[%s498] sm:$0xf]
        %v500 = vld [vmem:[%s498 + $0x4] sm:$0xf]
        %v501 = vunpack.c.l.bf16 %v499
        %v502 = vunpack.c.l.bf16 %v500
        %v503 = vmul.f32 %v501, %v442
        %v504 = vmul.f32 %v502, %v442
        %v505 = vadd.f32 %v503, %v450
        %v506 = vadd.f32 %v504, %v450
        %v507 = vmax.f32 %v505, 0.0
        %v508 = vmax.f32 %v506, 0.0
        %s509 = scalar_lea.vmem %s402, 32 [#allocation3]
        %v510 = vld [vmem:[%s509] sm:$0xff]
        %v511 = vld [vmem:[%s509 + $0x8] sm:$0xff]
        %513 = vset.pattern.permute.xlu0 0
        %514 = vperm.xlu0 %513, %v510
        %v515 = vpop.permute.xlu0 %514
        %518 = vset.pattern.permute.xlu0 0
        %519 = vperm.xlu0 %518, %v511
        %v520 = vpop.permute.xlu0 %519
        %v522 = vmul.f32 %v507, %v515
        %v523 = vmul.f32 %v508, %v520
        %v524 = vmax.f32 %v496, %v522
        %v525 = vmax.f32 %v497, %v523
        %s526 = scalar_lea.vmem %s395, 24 [#allocation2]
        %v527 = vld [vmem:[%s526] sm:$0xf]
        %v528 = vld [vmem:[%s526 + $0x4] sm:$0xf]
        %v529 = vunpack.c.l.bf16 %v527
        %v530 = vunpack.c.l.bf16 %v528
        %v531 = vmul.f32 %v529, %v442
        %v532 = vmul.f32 %v530, %v442
        %v533 = vadd.f32 %v531, %v450
        %v534 = vadd.f32 %v532, %v450
        %v535 = vmax.f32 %v533, 0.0
        %v536 = vmax.f32 %v534, 0.0
        %s537 = scalar_lea.vmem %s402, 48 [#allocation3]
        %v538 = vld [vmem:[%s537] sm:$0xff]
        %v539 = vld [vmem:[%s537 + $0x8] sm:$0xff]
        %541 = vset.pattern.permute.xlu0 0
        %542 = vperm.xlu0 %541, %v538
        %v543 = vpop.permute.xlu0 %542
        %546 = vset.pattern.permute.xlu0 0
        %547 = vperm.xlu0 %546, %v539
        %v548 = vpop.permute.xlu0 %547
        %v550 = vmul.f32 %v535, %v543
        %v551 = vmul.f32 %v536, %v548
        %v552 = vmax.f32 %v524, %v550
        %v553 = vmax.f32 %v525, %v551
        %s554 = scalar_lea.vmem %s395, 32 [#allocation2]
        %v555 = vld [vmem:[%s554] sm:$0xf]
        %v556 = vld [vmem:[%s554 + $0x4] sm:$0xf]
        %v557 = vunpack.c.l.bf16 %v555
        %v558 = vunpack.c.l.bf16 %v556
        %v559 = vmul.f32 %v557, %v442
        %v560 = vmul.f32 %v558, %v442
        %v561 = vadd.f32 %v559, %v450
        %v562 = vadd.f32 %v560, %v450
        %v563 = vmax.f32 %v561, 0.0
        %v564 = vmax.f32 %v562, 0.0
        %s565 = scalar_lea.vmem %s402, 64 [#allocation3]
        %v566 = vld [vmem:[%s565] sm:$0xff]
        %v567 = vld [vmem:[%s565 + $0x8] sm:$0xff]
        %569 = vset.pattern.permute.xlu0 0
        %570 = vperm.xlu0 %569, %v566
        %v571 = vpop.permute.xlu0 %570
        %574 = vset.pattern.permute.xlu0 0
        %575 = vperm.xlu0 %574, %v567
        %v576 = vpop.permute.xlu0 %575
        %v578 = vmul.f32 %v563, %v571
        %v579 = vmul.f32 %v564, %v576
        %v580 = vmax.f32 %v552, %v578
        %v581 = vmax.f32 %v553, %v579
        %s582 = scalar_lea.vmem %s395, 40 [#allocation2]
        %v583 = vld [vmem:[%s582] sm:$0xf]
        %v584 = vld [vmem:[%s582 + $0x4] sm:$0xf]
        %v585 = vunpack.c.l.bf16 %v583
        %v586 = vunpack.c.l.bf16 %v584
        %v587 = vmul.f32 %v585, %v442
        %v588 = vmul.f32 %v586, %v442
        %v589 = vadd.f32 %v587, %v450
        %v590 = vadd.f32 %v588, %v450
        %v591 = vmax.f32 %v589, 0.0
        %v592 = vmax.f32 %v590, 0.0
        %s593 = scalar_lea.vmem %s402, 80 [#allocation3]
        %v594 = vld [vmem:[%s593] sm:$0xff]
        %v595 = vld [vmem:[%s593 + $0x8] sm:$0xff]
        %597 = vset.pattern.permute.xlu0 0
        %598 = vperm.xlu0 %597, %v594
        %v599 = vpop.permute.xlu0 %598
        %602 = vset.pattern.permute.xlu0 0
        %603 = vperm.xlu0 %602, %v595
        %v604 = vpop.permute.xlu0 %603
        %v606 = vmul.f32 %v591, %v599
        %v607 = vmul.f32 %v592, %v604
        %v608 = vmax.f32 %v580, %v606
        %v609 = vmax.f32 %v581, %v607
        %s610 = scalar_lea.vmem %s395, 48 [#allocation2]
        %v611 = vld [vmem:[%s610] sm:$0xf]
        %v612 = vld [vmem:[%s610 + $0x4] sm:$0xf]
        %v613 = vunpack.c.l.bf16 %v611
        %v614 = vunpack.c.l.bf16 %v612
        %v615 = vmul.f32 %v613, %v442
        %v616 = vmul.f32 %v614, %v442
        %v617 = vadd.f32 %v615, %v450
        %v618 = vadd.f32 %v616, %v450
        %v619 = vmax.f32 %v617, 0.0
        %v620 = vmax.f32 %v618, 0.0
        %s621 = scalar_lea.vmem %s402, 96 [#allocation3]
        %v622 = vld [vmem:[%s621] sm:$0xff]
        %v623 = vld [vmem:[%s621 + $0x8] sm:$0xff]
        %625 = vset.pattern.permute.xlu0 0
        %626 = vperm.xlu0 %625, %v622
        %v627 = vpop.permute.xlu0 %626
        %630 = vset.pattern.permute.xlu0 0
        %631 = vperm.xlu0 %630, %v623
        %v632 = vpop.permute.xlu0 %631
        %v634 = vmul.f32 %v619, %v627
        %v635 = vmul.f32 %v620, %v632
        %v636 = vmax.f32 %v608, %v634
        %v637 = vmax.f32 %v609, %v635
        %s638 = scalar_lea.vmem %s395, 56 [#allocation2]
        %v639 = vld [vmem:[%s638] sm:$0xf]
        %v640 = vld [vmem:[%s638 + $0x4] sm:$0xf]
        %v641 = vunpack.c.l.bf16 %v639
        %v642 = vunpack.c.l.bf16 %v640
        %v643 = vmul.f32 %v641, %v442
        %v644 = vmul.f32 %v642, %v442
        %v645 = vadd.f32 %v643, %v450
        %v646 = vadd.f32 %v644, %v450
        %v647 = vmax.f32 %v645, 0.0
        %v648 = vmax.f32 %v646, 0.0
        %s649 = scalar_lea.vmem %s402, 112 [#allocation3]
        %v650 = vld [vmem:[%s649] sm:$0xff]
        %v651 = vld [vmem:[%s649 + $0x8] sm:$0xff]
        %653 = vset.pattern.permute.xlu0 0
        %654 = vperm.xlu0 %653, %v650
        %v655 = vpop.permute.xlu0 %654
        %658 = vset.pattern.permute.xlu0 0
        %659 = vperm.xlu0 %658, %v651
        %v660 = vpop.permute.xlu0 %659
        %v662 = vmul.f32 %v647, %v655
        %v663 = vmul.f32 %v648, %v660
        %v664 = vmax.f32 %v636, %v662
        %v665 = vmax.f32 %v637, %v663
        %s666 = scalar_lea.vmem %s395, 64 [#allocation2]
        %v667 = vld [vmem:[%s666] sm:$0xf]
        %v668 = vld [vmem:[%s666 + $0x4] sm:$0xf]
        %v669 = vunpack.c.l.bf16 %v667
        %v670 = vunpack.c.l.bf16 %v668
        %v671 = vmul.f32 %v669, %v442
        %v672 = vmul.f32 %v670, %v442
        %v673 = vadd.f32 %v671, %v450
        %v674 = vadd.f32 %v672, %v450
        %v675 = vmax.f32 %v673, 0.0
        %v676 = vmax.f32 %v674, 0.0
        %s677 = scalar_lea.vmem %s402, 128 [#allocation3]
        %v678 = vld [vmem:[%s677] sm:$0xff]
        %v679 = vld [vmem:[%s677 + $0x8] sm:$0xff]
        %681 = vset.pattern.permute.xlu0 0
        %682 = vperm.xlu0 %681, %v678
        %v683 = vpop.permute.xlu0 %682
        %686 = vset.pattern.permute.xlu0 0
        %687 = vperm.xlu0 %686, %v679
        %v688 = vpop.permute.xlu0 %687
        %v690 = vmul.f32 %v675, %v683
        %v691 = vmul.f32 %v676, %v688
        %v692 = vmax.f32 %v664, %v690
        %v693 = vmax.f32 %v665, %v691
        %vm694 = vcmask 261120
        %695 = vst.msk [vmem:[%s428] sm:$0xff] %vm694, %v692
        %696 = vst.msk [vmem:[%s428 + $0x8] sm:$0xff] %vm694, %v693
        %s697 = sand.u32 %s120, 1
        %s698 = scalar_lea.sflag [#allocation5], %s697
        %s699 = sand.u32 %s120, 1
        %s700 = smul.addr %s699, 16
        %s701 = scalar_lea.vmem [#allocation4], %s700
        // Predicated region
        $region116: #{stem_conv_forward.11} parent=106 // pred_check
          %p702 = pneg %p130
        $region117: #{stem_conv_forward.11} parent=106 // pred_check_branch
          %704 = sbr.rel (%p702) target = $region119
        $region118: #{stem_conv_forward.11} parent=106 // pred_region
          %s705 = smul.u32 2, %s18
          %s707 = ssub.s32 256, 256
          %708 = vsyncadd %s698, %s707
          %s709 = smul.addr %s705, 128
          %s710 = scalar_lea.hbm %s4, %s709
          %s711 = sshll.u32 %s701, 4
          %s712 = int_to_ptr.vmem [resolvable:$true] %s711
          %717 = dma.vmem_to_hbm [thread:$0]  %s712, 256, %s710, %s698, 128, 128, 8
        $region119: #{stem_conv_forward.11} parent=106 // pred_fallthru
          _
      $region107: #{stem_conv_forward.11} parent=5 // pred_fallthru
        _
      %p718 = scmp.le.s32.totalorder 2, %s13
      // Predicated region
      $region120: #{stem_conv_forward.11} parent=5 // pred_check
        %p719 = pneg %p718
      $region121: #{stem_conv_forward.11} parent=5 // pred_check_branch
        %721 = sbr.rel (%p719) target = $region123
      $region122: #{stem_conv_forward.11} parent=5 // pred_region
        %s722 = ssub.s32 %s13, 2
        // Predicated region
        $region124: #{stem_conv_forward.11} parent=122 // pred_check
          %p723 = pneg %p136
        $region125: #{stem_conv_forward.11} parent=122 // pred_check_branch
          %725 = sbr.rel (%p723) target = $region127
        $region126: #{stem_conv_forward.11} parent=122 // pred_region
          %s726 = sand.u32 %s121, 1
          %s727 = scalar_lea.sflag [#allocation5], %s726
          %s728 = sand.u32 %s121, 1
          %s729 = smul.addr %s728, 16
          %s730 = scalar_lea.vmem [#allocation4], %s729
          %731 = dma.done %s727, 256
        $region127: #{stem_conv_forward.11} parent=122 // pred_fallthru
          _
      $region123: #{stem_conv_forward.11} parent=5 // pred_fallthru
        _
    $region6: #{stem_conv_forward.11} parent=1 // loop_footer
      %s17 = sadd.s32 1, %s13
    $region7: #{stem_conv_forward.11} parent=1 // loop_footer_branch
      %12 = sbr.rel target = $region3
    $region8: #{stem_conv_forward.11} parent=1 // loop_exit
      _
    %732 = vsyncpa [#allocation5], 1
    %s733 = scalar_lea.sflag [#allocation5], 1
    %734 = vsyncpa %s733, 1

</llo_original>
